<compile_context>
chip_gen: v6e
topology: v6e:2x2x1
jax: 0.10.0
libtpu: 0.0.40
codegen_flags: <defaults>
</compile_context>

<pallas_src>
import jax
import jax.numpy as jnp
from jax import lax
from jax.experimental import pallas as pl
from jax.experimental.pallas import tpu as pltpu

# ---------------- config (small synthetic ViT) ----------------
IMG = 32
PATCH = 16
CHANNELS = 3
NUM_PATCHES = (IMG // PATCH) ** 2          # 4
SEQ = NUM_PATCHES + 1                      # 5 = CLS + patches
SEQ_PAD = 8                                # padded to a full sublane group
HIDDEN = 64
NUM_HEADS = 4
HEAD_DIM = HIDDEN // NUM_HEADS             # 16
INTERMEDIATE = 128
NUM_LAYERS = 2
HEAD_HIDDEN = 256
NUM_DISTORTION = 33                        # len(distortion_label_to_idx)
NUM_SCENE = 9                              # len(scene_label_to_idx)
OUT_PAD = 128                              # lane-dense padded logits width
SCENE_OFFSET = 64                          # scene logits live at lanes [64, 64+9)
LN_EPS = 1e-12                             # HF ViT layer_norm_eps

VMEM = pltpu.MemorySpace.VMEM

# ---- bf16 big-weight slab row layout (lane width 128) ----
PW_ROWS = CHANNELS * PATCH * PATCH                   # 768 : patch-embed weight
MLP0 = PW_ROWS                                       # per layer: 64 rows w1, 128 rows w2
MLP_ROWS = HIDDEN + INTERMEDIATE                     # 192
HW2_ROW0 = MLP0 + NUM_LAYERS * MLP_ROWS              # 1152 : block-diag head layer 2
WSLAB_ROWS = HW2_ROW0 + 2 * HEAD_HIDDEN              # 1664

# ---- f32 scalar slab row layout (lane width 512) ----
SCAL_W = 2 * HEAD_HIDDEN                             # 512 (widest bias)
SCAL_BASE0 = 0                                       # rows 0..7 : embedding base
SCAL_LAYER0 = SEQ_PAD                                # 8 rows per encoder layer
R_LN1G, R_LN1B, R_BQKV, R_BO, R_LN2G, R_LN2B, R_B1, R_B2 = range(8)
SCAL_FINAL = SCAL_LAYER0 + NUM_LAYERS * 8            # 24: final_ln_g, _b, head_b1, head_b2
SCAL_ROWS = SCAL_FINAL + 4                           # 28


# ---------------- in-kernel helpers ----------------
def _layernorm(x, gamma, beta):
    mu = jnp.mean(x, axis=-1, keepdims=True)
    var = jnp.mean(jnp.square(x - mu), axis=-1, keepdims=True)
    return (x - mu) * lax.rsqrt(var + LN_EPS) * gamma + beta


def _gelu(x):
    # Exact erf-based GELU (matches HF ViT).
    return 0.5 * x * (1.0 + lax.erf(x * 0.7071067811865476))


# ---------------- fused kernel ----------------
def _make_fused_kernel(batch):
    bs = batch * SEQ_PAD
    nb = NUM_HEADS * batch        # fused (head, batch) einsum batch axis

    def kernel(patches_ref, attnw_ref, wslab_ref, headw1_ref, scal_ref, out_ref):
        f32 = jnp.float32
        bf16 = jnp.bfloat16

        def srow(r, w):
            # One row of the scalar slab, first w lanes, kept 2-D for broadcasting.
            return scal_ref[r:r + 1, :][:, :w]

        def to_heads(t):
            # (bs, NH*D) -> (NH*batch, SEQ_PAD, D); head h uses lanes [h*D,(h+1)*D).
            parts = [t[:, h * HEAD_DIM:(h + 1) * HEAD_DIM]
                     .reshape(1, batch, SEQ_PAD, HEAD_DIM) for h in range(NUM_HEADS)]
            return jnp.concatenate(parts, axis=0).reshape(nb, SEQ_PAD, HEAD_DIM)

        def from_heads(c):
            # (NH*batch, SEQ_PAD, D) -> lane-concatenated (bs, NH*D).
            c4 = c.reshape(NUM_HEADS, bs, HEAD_DIM)
            return jnp.concatenate([c4[h] for h in range(NUM_HEADS)], axis=-1)

        # --- embeddings: bf16 patch matmul + (CLS + position + patch-bias) base ---
        pe = jnp.dot(patches_ref[...], wslab_ref[0:PW_ROWS, :],
                     preferred_element_type=f32)                       # (bs, 128)
        base = scal_ref[SCAL_BASE0:SCAL_BASE0 + SEQ_PAD, :][:, :HIDDEN]  # (8, 64)
        h = (pe[:, :HIDDEN].reshape(batch, SEQ_PAD, HIDDEN) + base).reshape(bs, HIDDEN)

        # Key-padding mask for the 3 padded rows (hoisted once).
        col_ids = lax.broadcasted_iota(jnp.int32, (1, 1, SEQ_PAD), 2)
        key_mask = jnp.where(col_ids < SEQ, 0.0, -1e30).astype(f32)

        scale = 1.0 / (HEAD_DIM ** 0.5)
        for l in range(NUM_LAYERS):                 # static unroll over layers
            rs = SCAL_LAYER0 + l * 8
            x = h
            xn = _layernorm(x, srow(rs + R_LN1G, HIDDEN), srow(rs + R_LN1B, HIDDEN))

            # One lane-dense QKV matmul per layer (lanes: [q(64) | k(64) | v(64) | pad]).
            qkv = (jnp.dot(xn, attnw_ref[l, 0:HIDDEN, :], preferred_element_type=f32)
                   + srow(rs + R_BQKV, 4 * HIDDEN))                     # (bs, 256)
            q4 = to_heads(qkv[:, 0:HIDDEN])
            k4 = to_heads(qkv[:, HIDDEN:2 * HIDDEN])
            v4 = to_heads(qkv[:, 2 * HIDDEN:3 * HIDDEN])

            # Single batched einsum pair over the fused (head*batch) axis.
            s = jnp.einsum("bqd,bkd->bqk", q4, k4,
                           preferred_element_type=f32) * scale + key_mask
            s = s - jnp.max(s, axis=-1, keepdims=True)
            p = jnp.exp(s)
            p = p * pl.reciprocal(jnp.sum(p, axis=-1, keepdims=True), approx=True)
            ctx = jnp.einsum("bqk,bkd->bqd", p, v4, preferred_element_type=f32)

            # Lane-concatenate heads, one Wo matmul per layer.
            attn = (jnp.dot(from_heads(ctx), attnw_ref[l, HIDDEN:2 * HIDDEN, :],
                            preferred_element_type=f32)[:, :HIDDEN]
                    + srow(rs + R_BO, HIDDEN))
            h1 = x + attn

            # MLP: bf16 weights streamed from the packed slab, f32 accumulation.
            hn = _layernorm(h1, srow(rs + R_LN2G, HIDDEN), srow(rs + R_LN2B, HIDDEN))
            r0 = MLP0 + l * MLP_ROWS
            inter = _gelu(jnp.dot(hn.astype(bf16), wslab_ref[r0:r0 + HIDDEN, :],
                                  preferred_element_type=f32)
                          + srow(rs + R_B1, INTERMEDIATE))
            h = h1 + (jnp.dot(inter.astype(bf16),
                              wslab_ref[r0 + HIDDEN:r0 + MLP_ROWS, :],
                              preferred_element_type=f32)[:, :HIDDEN]
                      + srow(rs + R_B2, HIDDEN))

        # --- final LN on CLS rows + fused, lane-dense classifier heads (bf16 weights) ---
        cls_tok = h.reshape(batch, SEQ_PAD, HIDDEN)[:, 0, :]             # (B, 64)
        cn = _layernorm(cls_tok, srow(SCAL_FINAL + 0, HIDDEN), srow(SCAL_FINAL + 1, HIDDEN))
        hid = jnp.maximum(
            jnp.dot(cn.astype(bf16), headw1_ref[...], preferred_element_type=f32)
            + srow(SCAL_FINAL + 2, 2 * HEAD_HIDDEN), 0.0)
        logits = (jnp.dot(hid.astype(bf16), wslab_ref[HW2_ROW0:WSLAB_ROWS, :],
                          preferred_element_type=f32)
                  + srow(SCAL_FINAL + 3, OUT_PAD))
        out_ref[...] = logits.astype(out_ref.dtype)

    return kernel


# ---------------- wrappers ----------------
def extract_patches_padded(x):
    # NCHW -> (B, num_patches, C*P*P) in (C, ph, pw) flattening order (Conv2d layout),
    # then pad the sequence axis to SEQ_PAD: 1 leading zero row (CLS slot) + 3 trailing.
    b = x.shape[0]
    g = IMG // PATCH
    p = x.reshape(b, CHANNELS, g, PATCH, g, PATCH)
    p = p.transpose(0, 2, 4, 1, 3, 5).reshape(b, NUM_PATCHES, CHANNELS * PATCH * PATCH)
    p = jnp.pad(p, ((0, 0), (1, SEQ_PAD - SEQ), (0, 0)))
    return p.reshape(b * SEQ_PAD, CHANNELS * PATCH * PATCH)


@jax.jit
def vit_distortion_scene_forward(x, packed):
    batch = x.shape[0]
    patches = extract_patches_padded(x).astype(jnp.bfloat16)     # (B*SEQ_PAD, 768)
    out = pl.pallas_call(
        _make_fused_kernel(batch),
        out_shape=jax.ShapeDtypeStruct((batch, OUT_PAD), jnp.float32),
        in_specs=[pl.BlockSpec(memory_space=VMEM)] * 5,
        out_specs=pl.BlockSpec(memory_space=VMEM),
        # ~1 MiB resident footprint: no vmem_limit_bytes / grid needed at this size.
        # Do NOT add a "parallel" batch grid axis at small B (duplicates weight DMA).
    )(patches, packed["attn_w"], packed["wslab"], packed["head_w1"], packed["scal"])
    dist = out[:, :NUM_DISTORTION]
    scene = out[:, SCENE_OFFSET:SCENE_OFFSET + NUM_SCENE]
    return dist, scene


# ---------------- deterministic parameter init (module-structured) ----------------
def init_params(key):
    keys = iter(jax.random.split(key, 64))

    def nrm(shape, scale=0.02):
        return (scale * jax.random.normal(next(keys), shape)).astype(jnp.float32)

    def zeros(shape):
        return jnp.zeros(shape, jnp.float32)

    def ones(shape):
        return jnp.ones(shape, jnp.float32)

    params = {
        "patch_w": nrm((CHANNELS * PATCH * PATCH, HIDDEN)),
        "patch_b": zeros((1, HIDDEN)),
        "cls_token": nrm((1, 1, HIDDEN)),
        "pos_emb": nrm((1, SEQ, HIDDEN)),
        "final_ln_g": ones((1, HIDDEN)),
        "final_ln_b": zeros((1, HIDDEN)),
        "dist_w1": nrm((HIDDEN, HEAD_HIDDEN)),
        "dist_b1": zeros((1, HEAD_HIDDEN)),
        "dist_w2": nrm((HEAD_HIDDEN, NUM_DISTORTION)),
        "dist_b2": zeros((1, NUM_DISTORTION)),
        "scene_w1": nrm((HIDDEN, HEAD_HIDDEN)),
        "scene_b1": zeros((1, HEAD_HIDDEN)),
        "scene_w2": nrm((HEAD_HIDDEN, NUM_SCENE)),
        "scene_b2": zeros((1, NUM_SCENE)),
        "layers": [],
    }
    for _ in range(NUM_LAYERS):
        params["layers"].append({
            "ln1_g": ones((1, HIDDEN)), "ln1_b": zeros((1, HIDDEN)),
            "wq": nrm((HIDDEN, HIDDEN)), "bq": zeros((1, HIDDEN)),
            "wk": nrm((HIDDEN, HIDDEN)), "bk": zeros((1, HIDDEN)),
            "wv": nrm((HIDDEN, HIDDEN)), "bv": zeros((1, HIDDEN)),
            "wo": nrm((HIDDEN, HIDDEN)), "bo": zeros((1, HIDDEN)),
            "ln2_g": ones((1, HIDDEN)), "ln2_b": zeros((1, HIDDEN)),
            "w1": nrm((HIDDEN, INTERMEDIATE)), "b1": zeros((1, INTERMEDIATE)),
            "w2": nrm((INTERMEDIATE, HIDDEN)), "b2": zeros((1, HIDDEN)),
        })
    return params


def pack_params(params):
    """One-time repack into 5 kernel operands (done once, outside jit)."""
    layers = params["layers"]
    f32, bf16 = jnp.float32, jnp.bfloat16

    # --- attention weight slab (f32): (L, 128, 256).
    #   rows [0:64),   lanes [0:192) : packed Wq|Wk|Wv  (per-head 16-lane column blocks)
    #   rows [64:128), lanes [0:64)  : Wo
    attn_w = jnp.zeros((NUM_LAYERS, 2 * HIDDEN, 4 * HIDDEN), f32)
    for l, lp in enumerate(layers):
        wqkv = jnp.concatenate([lp["wq"], lp["wk"], lp["wv"]], axis=1)   # (64, 192)
        attn_w = attn_w.at[l, :HIDDEN, :3 * HIDDEN].set(wqkv)
        attn_w = attn_w.at[l, HIDDEN:2 * HIDDEN, :HIDDEN].set(lp["wo"])

    # --- bf16 big-weight slab: (1664, 128): patch_w | per-layer w1,w2 | head_w2 (block-diag).
    wslab = jnp.zeros((WSLAB_ROWS, 128), f32)
    wslab = wslab.at[:PW_ROWS, :HIDDEN].set(params["patch_w"])
    for l, lp in enumerate(layers):
        r = MLP0 + l * MLP_ROWS
        wslab = wslab.at[r:r + HIDDEN, :INTERMEDIATE].set(lp["w1"])
        wslab = wslab.at[r + HIDDEN:r + MLP_ROWS, :HIDDEN].set(lp["w2"])
    hw2 = jnp.zeros((2 * HEAD_HIDDEN, OUT_PAD), f32)
    hw2 = hw2.at[:HEAD_HIDDEN, :NUM_DISTORTION].set(params["dist_w2"])
    hw2 = hw2.at[HEAD_HIDDEN:, SCENE_OFFSET:SCENE_OFFSET + NUM_SCENE].set(params["scene_w2"])
    wslab = wslab.at[HW2_ROW0:, :].set(hw2)
    wslab = wslab.astype(bf16)

    # --- fused classifier head layer 1 (bf16): (64, 512) = [dist_w1 | scene_w1].
    head_w1 = jnp.concatenate([params["dist_w1"], params["scene_w1"]], axis=1).astype(bf16)

    # --- scalar slab (f32): every LN param / bias / embedding base as one (28, 512) buffer.
    scal = jnp.zeros((SCAL_ROWS, SCAL_W), f32)
    base = jnp.zeros((SEQ_PAD, HIDDEN), f32)
    base = base.at[0].set(params["cls_token"].reshape(HIDDEN) + params["pos_emb"][0, 0])
    base = base.at[1:SEQ].set(params["pos_emb"][0, 1:SEQ] + params["patch_b"][0])
    scal = scal.at[SCAL_BASE0:SCAL_BASE0 + SEQ_PAD, :HIDDEN].set(base)
    for l, lp in enumerate(layers):
        r = SCAL_LAYER0 + l * 8
        scal = scal.at[r + R_LN1G, :HIDDEN].set(lp["ln1_g"][0])
        scal = scal.at[r + R_LN1B, :HIDDEN].set(lp["ln1_b"][0])
        bqkv = jnp.concatenate([lp["bq"], lp["bk"], lp["bv"]], axis=1)[0]
        scal = scal.at[r + R_BQKV, :3 * HIDDEN].set(bqkv)
        scal = scal.at[r + R_BO, :HIDDEN].set(lp["bo"][0])
        scal = scal.at[r + R_LN2G, :HIDDEN].set(lp["ln2_g"][0])
        scal = scal.at[r + R_LN2B, :HIDDEN].set(lp["ln2_b"][0])
        scal = scal.at[r + R_B1, :INTERMEDIATE].set(lp["b1"][0])
        scal = scal.at[r + R_B2, :HIDDEN].set(lp["b2"][0])
    scal = scal.at[SCAL_FINAL + 0, :HIDDEN].set(params["final_ln_g"][0])
    scal = scal.at[SCAL_FINAL + 1, :HIDDEN].set(params["final_ln_b"][0])
    hb1 = jnp.concatenate([params["dist_b1"], params["scene_b1"]], axis=1)[0]
    scal = scal.at[SCAL_FINAL + 2, :2 * HEAD_HIDDEN].set(hb1)
    hb2 = jnp.zeros((OUT_PAD,), f32)
    hb2 = hb2.at[:NUM_DISTORTION].set(params["dist_b2"][0])
    hb2 = hb2.at[SCENE_OFFSET:SCENE_OFFSET + NUM_SCENE].set(params["scene_b2"][0])
    scal = scal.at[SCAL_FINAL + 3, :OUT_PAD].set(hb2)

    return {"attn_w": attn_w, "wslab": wslab, "head_w1": head_w1, "scal": scal}


if __name__ == "__main__":
    key = jax.random.PRNGKey(0)
    pkey, xkey = jax.random.split(key)
    params = init_params(pkey)
    packed = pack_params(params)
    x = jax.random.normal(xkey, (2, CHANNELS, IMG, IMG), dtype=jnp.float32)

    dist_pred, scene_pred = vit_distortion_scene_forward(x, packed)
    jax.block_until_ready((dist_pred, scene_pred))

    assert dist_pred.shape == (2, NUM_DISTORTION)
    assert scene_pred.shape == (2, NUM_SCENE)
    assert bool(jnp.all(jnp.isfinite(dist_pred))) and bool(jnp.all(jnp.isfinite(scene_pred)))
    print("KERNEL_OK")
</pallas_src>

<mosaic_0001>
module attributes {stable_mosaic.version = 11 : i64} {
  func.func @kernel(%arg0: memref<16x768xbf16, #tpu.memory_space<vmem>>, %arg1: memref<2x128x256xf32, #tpu.memory_space<vmem>>, %arg2: memref<1664x128xbf16, #tpu.memory_space<vmem>>, %arg3: memref<64x512xbf16, #tpu.memory_space<vmem>>, %arg4: memref<28x512xf32, #tpu.memory_space<vmem>>, %arg5: memref<2x128xf32, #tpu.memory_space<vmem>>) attributes {dimension_semantics = [], scalar_prefetch = 0 : i64, scratch_operands = 0 : i64, tpu.core_type = #tpu.core_type<tc>} {
    %c0 = arith.constant 0 : index
    %c0_0 = arith.constant 0 : index
    %0 = vector.load %arg0[%c0, %c0_0] : memref<16x768xbf16, #tpu.memory_space<vmem>>, vector<16x768xbf16>
    %c0_1 = arith.constant 0 : index
    %c0_2 = arith.constant 0 : index
    %1 = vector.load %arg2[%c0_1, %c0_2] : memref<1664x128xbf16, #tpu.memory_space<vmem>>, vector<768x128xbf16>
    %cst = arith.constant dense<0.000000e+00> : vector<16x128xf32>
    %2 = tpu.matmul %0, %1, %cst {dimension_numbers = #tpu.dot_dimension_numbers<[1], [0], [0], [1], [0, 0, 1, 1], [], []>} : vector<16x768xbf16>, vector<768x128xbf16>, vector<16x128xf32> -> vector<16x128xf32>
    %c0_3 = arith.constant 0 : index
    %c0_4 = arith.constant 0 : index
    %3 = vector.load %arg4[%c0_3, %c0_4] : memref<28x512xf32, #tpu.memory_space<vmem>>, vector<8x512xf32>
    %4 = vector.extract_strided_slice %3 {offsets = [0, 0], sizes = [8, 64], strides = [1, 1]} : vector<8x512xf32> to vector<8x64xf32>
    %5 = vector.extract_strided_slice %2 {offsets = [0, 0], sizes = [16, 64], strides = [1, 1]} : vector<16x128xf32> to vector<16x64xf32>
    %6 = vector.shape_cast %5 : vector<16x64xf32> to vector<2x8x64xf32>
    %7 = vector.shape_cast %4 : vector<8x64xf32> to vector<1x8x64xf32>
    %8 = vector.broadcast %7 : vector<1x8x64xf32> to vector<2x8x64xf32>
    %9 = arith.addf %6, %8 : vector<2x8x64xf32>
    %10 = vector.shape_cast %9 : vector<2x8x64xf32> to vector<16x64xf32>
    %11 = tpu.iota {dimensions = array<i32: 2>} : vector<1x1x8xi32>
    %c5_i32 = arith.constant 5 : i32
    %12 = vector.broadcast %c5_i32 : i32 to vector<1x1x8xi32>
    %13 = arith.cmpi slt, %11, %12 : vector<1x1x8xi32>
    %cst_5 = arith.constant 0.000000e+00 : f32
    %cst_6 = arith.constant -1.000000e+30 : f32
    %14 = vector.broadcast %cst_5 : f32 to vector<1x1x8xf32>
    %15 = vector.broadcast %cst_6 : f32 to vector<1x1x8xf32>
    %16 = arith.select %13, %14, %15 : vector<1x1x8xi1>, vector<1x1x8xf32>
    %c8 = arith.constant 8 : index
    %c0_7 = arith.constant 0 : index
    %17 = vector.load %arg4[%c8, %c0_7] : memref<28x512xf32, #tpu.memory_space<vmem>>, vector<1x512xf32>
    %18 = vector.extract_strided_slice %17 {offsets = [0, 0], sizes = [1, 64], strides = [1, 1]} : vector<1x512xf32> to vector<1x64xf32>
    %c9 = arith.constant 9 : index
    %c0_8 = arith.constant 0 : index
    %19 = vector.load %arg4[%c9, %c0_8] : memref<28x512xf32, #tpu.memory_space<vmem>>, vector<1x512xf32>
    %20 = vector.extract_strided_slice %19 {offsets = [0, 0], sizes = [1, 64], strides = [1, 1]} : vector<1x512xf32> to vector<1x64xf32>
    %cst_9 = arith.constant dense<0.000000e+00> : vector<16xf32>
    %21 = vector.multi_reduction <add>, %10, %cst_9 [1] : vector<16x64xf32> to vector<16xf32>
    %22 = vector.shape_cast %21 : vector<16xf32> to vector<16x1xf32>
    %cst_10 = arith.constant 6.400000e+01 : f32
    %23 = vector.broadcast %cst_10 : f32 to vector<16x1xf32>
    %24 = arith.divf %22, %23 : vector<16x1xf32>
    %25 = vector.broadcast %24 : vector<16x1xf32> to vector<16x64xf32>
    %26 = arith.subf %10, %25 : vector<16x64xf32>
    %27 = arith.mulf %26, %26 : vector<16x64xf32>
    %cst_11 = arith.constant dense<0.000000e+00> : vector<16xf32>
    %28 = vector.multi_reduction <add>, %27, %cst_11 [1] : vector<16x64xf32> to vector<16xf32>
    %29 = vector.shape_cast %28 : vector<16xf32> to vector<16x1xf32>
    %cst_12 = arith.constant 6.400000e+01 : f32
    %30 = vector.broadcast %cst_12 : f32 to vector<16x1xf32>
    %31 = arith.divf %29, %30 : vector<16x1xf32>
    %32 = vector.broadcast %24 : vector<16x1xf32> to vector<16x64xf32>
    %33 = arith.subf %10, %32 : vector<16x64xf32>
    %cst_13 = arith.constant 9.99999996E-13 : f32
    %34 = vector.broadcast %cst_13 : f32 to vector<16x1xf32>
    %35 = arith.addf %31, %34 : vector<16x1xf32>
    %36 = math.rsqrt %35 : vector<16x1xf32>
    %37 = vector.broadcast %36 : vector<16x1xf32> to vector<16x64xf32>
    %38 = arith.mulf %33, %37 : vector<16x64xf32>
    %39 = vector.broadcast %18 : vector<1x64xf32> to vector<16x64xf32>
    %40 = arith.mulf %38, %39 : vector<16x64xf32>
    %41 = vector.broadcast %20 : vector<1x64xf32> to vector<16x64xf32>
    %42 = arith.addf %40, %41 : vector<16x64xf32>
    %c0_14 = arith.constant 0 : index
    %c0_15 = arith.constant 0 : index
    %c0_16 = arith.constant 0 : index
    %43 = vector.load %arg1[%c0_14, %c0_15, %c0_16] : memref<2x128x256xf32, #tpu.memory_space<vmem>>, vector<1x64x256xf32>
    %44 = vector.shape_cast %43 : vector<1x64x256xf32> to vector<64x256xf32>
    %cst_17 = arith.constant dense<0.000000e+00> : vector<16x256xf32>
    %45 = tpu.matmul %42, %44, %cst_17 {dimension_numbers = #tpu.dot_dimension_numbers<[1], [0], [0], [1], [0, 0, 1, 1], [], []>} : vector<16x64xf32>, vector<64x256xf32>, vector<16x256xf32> -> vector<16x256xf32>
    %c10 = arith.constant 10 : index
    %c0_18 = arith.constant 0 : index
    %46 = vector.load %arg4[%c10, %c0_18] : memref<28x512xf32, #tpu.memory_space<vmem>>, vector<1x512xf32>
    %47 = vector.extract_strided_slice %46 {offsets = [0, 0], sizes = [1, 256], strides = [1, 1]} : vector<1x512xf32> to vector<1x256xf32>
    %48 = vector.broadcast %47 : vector<1x256xf32> to vector<16x256xf32>
    %49 = arith.addf %45, %48 : vector<16x256xf32>
    %50 = vector.extract_strided_slice %49 {offsets = [0, 0], sizes = [16, 64], strides = [1, 1]} : vector<16x256xf32> to vector<16x64xf32>
    %51 = vector.extract_strided_slice %50 {offsets = [0, 0], sizes = [16, 16], strides = [1, 1]} : vector<16x64xf32> to vector<16x16xf32>
    %52 = vector.shape_cast %51 : vector<16x16xf32> to vector<1x2x8x16xf32>
    %53 = vector.extract_strided_slice %50 {offsets = [0, 16], sizes = [16, 16], strides = [1, 1]} : vector<16x64xf32> to vector<16x16xf32>
    %54 = vector.shape_cast %53 : vector<16x16xf32> to vector<1x2x8x16xf32>
    %55 = vector.extract_strided_slice %50 {offsets = [0, 32], sizes = [16, 16], strides = [1, 1]} : vector<16x64xf32> to vector<16x16xf32>
    %56 = vector.shape_cast %55 : vector<16x16xf32> to vector<1x2x8x16xf32>
    %57 = vector.extract_strided_slice %50 {offsets = [0, 48], sizes = [16, 16], strides = [1, 1]} : vector<16x64xf32> to vector<16x16xf32>
    %58 = vector.shape_cast %57 : vector<16x16xf32> to vector<1x2x8x16xf32>
    %59 = tpu.concatenate %52, %54, %56, %58 in 0 : vector<1x2x8x16xf32>, vector<1x2x8x16xf32>, vector<1x2x8x16xf32>, vector<1x2x8x16xf32> -> vector<4x2x8x16xf32>
    %60 = vector.shape_cast %59 : vector<4x2x8x16xf32> to vector<8x8x16xf32>
    %61 = vector.extract_strided_slice %49 {offsets = [0, 64], sizes = [16, 64], strides = [1, 1]} : vector<16x256xf32> to vector<16x64xf32>
    %62 = vector.extract_strided_slice %61 {offsets = [0, 0], sizes = [16, 16], strides = [1, 1]} : vector<16x64xf32> to vector<16x16xf32>
    %63 = vector.shape_cast %62 : vector<16x16xf32> to vector<1x2x8x16xf32>
    %64 = vector.extract_strided_slice %61 {offsets = [0, 16], sizes = [16, 16], strides = [1, 1]} : vector<16x64xf32> to vector<16x16xf32>
    %65 = vector.shape_cast %64 : vector<16x16xf32> to vector<1x2x8x16xf32>
    %66 = vector.extract_strided_slice %61 {offsets = [0, 32], sizes = [16, 16], strides = [1, 1]} : vector<16x64xf32> to vector<16x16xf32>
    %67 = vector.shape_cast %66 : vector<16x16xf32> to vector<1x2x8x16xf32>
    %68 = vector.extract_strided_slice %61 {offsets = [0, 48], sizes = [16, 16], strides = [1, 1]} : vector<16x64xf32> to vector<16x16xf32>
    %69 = vector.shape_cast %68 : vector<16x16xf32> to vector<1x2x8x16xf32>
    %70 = tpu.concatenate %63, %65, %67, %69 in 0 : vector<1x2x8x16xf32>, vector<1x2x8x16xf32>, vector<1x2x8x16xf32>, vector<1x2x8x16xf32> -> vector<4x2x8x16xf32>
    %71 = vector.shape_cast %70 : vector<4x2x8x16xf32> to vector<8x8x16xf32>
    %72 = vector.extract_strided_slice %49 {offsets = [0, 128], sizes = [16, 64], strides = [1, 1]} : vector<16x256xf32> to vector<16x64xf32>
    %73 = vector.extract_strided_slice %72 {offsets = [0, 0], sizes = [16, 16], strides = [1, 1]} : vector<16x64xf32> to vector<16x16xf32>
    %74 = vector.shape_cast %73 : vector<16x16xf32> to vector<1x2x8x16xf32>
    %75 = vector.extract_strided_slice %72 {offsets = [0, 16], sizes = [16, 16], strides = [1, 1]} : vector<16x64xf32> to vector<16x16xf32>
    %76 = vector.shape_cast %75 : vector<16x16xf32> to vector<1x2x8x16xf32>
    %77 = vector.extract_strided_slice %72 {offsets = [0, 32], sizes = [16, 16], strides = [1, 1]} : vector<16x64xf32> to vector<16x16xf32>
    %78 = vector.shape_cast %77 : vector<16x16xf32> to vector<1x2x8x16xf32>
    %79 = vector.extract_strided_slice %72 {offsets = [0, 48], sizes = [16, 16], strides = [1, 1]} : vector<16x64xf32> to vector<16x16xf32>
    %80 = vector.shape_cast %79 : vector<16x16xf32> to vector<1x2x8x16xf32>
    %81 = tpu.concatenate %74, %76, %78, %80 in 0 : vector<1x2x8x16xf32>, vector<1x2x8x16xf32>, vector<1x2x8x16xf32>, vector<1x2x8x16xf32> -> vector<4x2x8x16xf32>
    %82 = vector.shape_cast %81 : vector<4x2x8x16xf32> to vector<8x8x16xf32>
    "tpu.trace_start"() <{level = 10 : i32, message = "bqd,bkd->bqk"}> : () -> ()
    %cst_19 = arith.constant dense<0.000000e+00> : vector<8x8x8xf32>
    %83 = tpu.matmul %60, %71, %cst_19 {dimension_numbers = #tpu.dot_dimension_numbers<[2], [2], [1], [1], [0, 0, 0, 1, 1, 1], [0], [0]>} : vector<8x8x16xf32>, vector<8x8x16xf32>, vector<8x8x8xf32> -> vector<8x8x8xf32>
    "tpu.trace_stop"() : () -> ()
    %cst_20 = arith.constant 2.500000e-01 : f32
    %84 = vector.broadcast %cst_20 : f32 to vector<8x8x8xf32>
    %85 = arith.mulf %83, %84 : vector<8x8x8xf32>
    %86 = vector.broadcast %16 : vector<1x1x8xf32> to vector<8x8x8xf32>
    %87 = arith.addf %85, %86 : vector<8x8x8xf32>
    %cst_21 = arith.constant dense<0xFF800000> : vector<8x8xf32>
    %88 = vector.multi_reduction <maximumf>, %87, %cst_21 [2] : vector<8x8x8xf32> to vector<8x8xf32>
    %89 = vector.shape_cast %88 : vector<8x8xf32> to vector<8x8x1xf32>
    %90 = vector.broadcast %89 : vector<8x8x1xf32> to vector<8x8x8xf32>
    %91 = arith.subf %87, %90 : vector<8x8x8xf32>
    %92 = math.exp %91 : vector<8x8x8xf32>
    %cst_22 = arith.constant dense<0.000000e+00> : vector<8x8xf32>
    %93 = vector.multi_reduction <add>, %92, %cst_22 [2] : vector<8x8x8xf32> to vector<8x8xf32>
    %94 = vector.shape_cast %93 : vector<8x8xf32> to vector<8x8x1xf32>
    %95 = tpu.reciprocal %94 {approx = true} : vector<8x8x1xf32> -> vector<8x8x1xf32>
    %96 = vector.broadcast %95 : vector<8x8x1xf32> to vector<8x8x8xf32>
    %97 = arith.mulf %92, %96 : vector<8x8x8xf32>
    "tpu.trace_start"() <{level = 10 : i32, message = "bqk,bkd->bqd"}> : () -> ()
    %cst_23 = arith.constant dense<0.000000e+00> : vector<8x8x16xf32>
    %98 = tpu.matmul %97, %82, %cst_23 {dimension_numbers = #tpu.dot_dimension_numbers<[2], [1], [1], [2], [0, 0, 0, 1, 1, 2], [0], [0]>} : vector<8x8x8xf32>, vector<8x8x16xf32>, vector<8x8x16xf32> -> vector<8x8x16xf32>
    "tpu.trace_stop"() : () -> ()
    %99 = vector.shape_cast %98 : vector<8x8x16xf32> to vector<4x16x16xf32>
    %100 = vector.extract_strided_slice %99 {offsets = [0, 0, 0], sizes = [1, 16, 16], strides = [1, 1, 1]} : vector<4x16x16xf32> to vector<1x16x16xf32>
    %101 = vector.shape_cast %100 : vector<1x16x16xf32> to vector<16x16xf32>
    %102 = vector.extract_strided_slice %99 {offsets = [1, 0, 0], sizes = [1, 16, 16], strides = [1, 1, 1]} : vector<4x16x16xf32> to vector<1x16x16xf32>
    %103 = vector.shape_cast %102 : vector<1x16x16xf32> to vector<16x16xf32>
    %104 = vector.extract_strided_slice %99 {offsets = [2, 0, 0], sizes = [1, 16, 16], strides = [1, 1, 1]} : vector<4x16x16xf32> to vector<1x16x16xf32>
    %105 = vector.shape_cast %104 : vector<1x16x16xf32> to vector<16x16xf32>
    %106 = vector.extract_strided_slice %99 {offsets = [3, 0, 0], sizes = [1, 16, 16], strides = [1, 1, 1]} : vector<4x16x16xf32> to vector<1x16x16xf32>
    %107 = vector.shape_cast %106 : vector<1x16x16xf32> to vector<16x16xf32>
    %108 = tpu.concatenate %101, %103, %105, %107 in 1 : vector<16x16xf32>, vector<16x16xf32>, vector<16x16xf32>, vector<16x16xf32> -> vector<16x64xf32>
    %c0_24 = arith.constant 0 : index
    %c64 = arith.constant 64 : index
    %c0_25 = arith.constant 0 : index
    %109 = vector.load %arg1[%c0_24, %c64, %c0_25] : memref<2x128x256xf32, #tpu.memory_space<vmem>>, vector<1x64x256xf32>
    %110 = vector.shape_cast %109 : vector<1x64x256xf32> to vector<64x256xf32>
    %cst_26 = arith.constant dense<0.000000e+00> : vector<16x256xf32>
    %111 = tpu.matmul %108, %110, %cst_26 {dimension_numbers = #tpu.dot_dimension_numbers<[1], [0], [0], [1], [0, 0, 1, 1], [], []>} : vector<16x64xf32>, vector<64x256xf32>, vector<16x256xf32> -> vector<16x256xf32>
    %112 = vector.extract_strided_slice %111 {offsets = [0, 0], sizes = [16, 64], strides = [1, 1]} : vector<16x256xf32> to vector<16x64xf32>
    %c11 = arith.constant 11 : index
    %c0_27 = arith.constant 0 : index
    %113 = vector.load %arg4[%c11, %c0_27] : memref<28x512xf32, #tpu.memory_space<vmem>>, vector<1x512xf32>
    %114 = vector.extract_strided_slice %113 {offsets = [0, 0], sizes = [1, 64], strides = [1, 1]} : vector<1x512xf32> to vector<1x64xf32>
    %115 = vector.broadcast %114 : vector<1x64xf32> to vector<16x64xf32>
    %116 = arith.addf %112, %115 : vector<16x64xf32>
    %117 = arith.addf %10, %116 : vector<16x64xf32>
    %c12 = arith.constant 12 : index
    %c0_28 = arith.constant 0 : index
    %118 = vector.load %arg4[%c12, %c0_28] : memref<28x512xf32, #tpu.memory_space<vmem>>, vector<1x512xf32>
    %119 = vector.extract_strided_slice %118 {offsets = [0, 0], sizes = [1, 64], strides = [1, 1]} : vector<1x512xf32> to vector<1x64xf32>
    %c13 = arith.constant 13 : index
    %c0_29 = arith.constant 0 : index
    %120 = vector.load %arg4[%c13, %c0_29] : memref<28x512xf32, #tpu.memory_space<vmem>>, vector<1x512xf32>
    %121 = vector.extract_strided_slice %120 {offsets = [0, 0], sizes = [1, 64], strides = [1, 1]} : vector<1x512xf32> to vector<1x64xf32>
    %cst_30 = arith.constant dense<0.000000e+00> : vector<16xf32>
    %122 = vector.multi_reduction <add>, %117, %cst_30 [1] : vector<16x64xf32> to vector<16xf32>
    %123 = vector.shape_cast %122 : vector<16xf32> to vector<16x1xf32>
    %cst_31 = arith.constant 6.400000e+01 : f32
    %124 = vector.broadcast %cst_31 : f32 to vector<16x1xf32>
    %125 = arith.divf %123, %124 : vector<16x1xf32>
    %126 = vector.broadcast %125 : vector<16x1xf32> to vector<16x64xf32>
    %127 = arith.subf %117, %126 : vector<16x64xf32>
    %128 = arith.mulf %127, %127 : vector<16x64xf32>
    %cst_32 = arith.constant dense<0.000000e+00> : vector<16xf32>
    %129 = vector.multi_reduction <add>, %128, %cst_32 [1] : vector<16x64xf32> to vector<16xf32>
    %130 = vector.shape_cast %129 : vector<16xf32> to vector<16x1xf32>
    %cst_33 = arith.constant 6.400000e+01 : f32
    %131 = vector.broadcast %cst_33 : f32 to vector<16x1xf32>
    %132 = arith.divf %130, %131 : vector<16x1xf32>
    %133 = vector.broadcast %125 : vector<16x1xf32> to vector<16x64xf32>
    %134 = arith.subf %117, %133 : vector<16x64xf32>
    %cst_34 = arith.constant 9.99999996E-13 : f32
    %135 = vector.broadcast %cst_34 : f32 to vector<16x1xf32>
    %136 = arith.addf %132, %135 : vector<16x1xf32>
    %137 = math.rsqrt %136 : vector<16x1xf32>
    %138 = vector.broadcast %137 : vector<16x1xf32> to vector<16x64xf32>
    %139 = arith.mulf %134, %138 : vector<16x64xf32>
    %140 = vector.broadcast %119 : vector<1x64xf32> to vector<16x64xf32>
    %141 = arith.mulf %139, %140 : vector<16x64xf32>
    %142 = vector.broadcast %121 : vector<1x64xf32> to vector<16x64xf32>
    %143 = arith.addf %141, %142 : vector<16x64xf32>
    %144 = arith.truncf %143 : vector<16x64xf32> to vector<16x64xbf16>
    %c768 = arith.constant 768 : index
    %c0_35 = arith.constant 0 : index
    %145 = vector.load %arg2[%c768, %c0_35] : memref<1664x128xbf16, #tpu.memory_space<vmem>>, vector<64x128xbf16>
    %cst_36 = arith.constant dense<0.000000e+00> : vector<16x128xf32>
    %146 = tpu.matmul %144, %145, %cst_36 {dimension_numbers = #tpu.dot_dimension_numbers<[1], [0], [0], [1], [0, 0, 1, 1], [], []>} : vector<16x64xbf16>, vector<64x128xbf16>, vector<16x128xf32> -> vector<16x128xf32>
    %c14 = arith.constant 14 : index
    %c0_37 = arith.constant 0 : index
    %147 = vector.load %arg4[%c14, %c0_37] : memref<28x512xf32, #tpu.memory_space<vmem>>, vector<1x512xf32>
    %148 = vector.extract_strided_slice %147 {offsets = [0, 0], sizes = [1, 128], strides = [1, 1]} : vector<1x512xf32> to vector<1x128xf32>
    %149 = vector.broadcast %148 : vector<1x128xf32> to vector<16x128xf32>
    %150 = arith.addf %146, %149 : vector<16x128xf32>
    %cst_38 = arith.constant 5.000000e-01 : f32
    %151 = vector.broadcast %cst_38 : f32 to vector<16x128xf32>
    %152 = arith.mulf %151, %150 : vector<16x128xf32>
    %cst_39 = arith.constant 0.707106769 : f32
    %153 = vector.broadcast %cst_39 : f32 to vector<16x128xf32>
    %154 = arith.mulf %150, %153 : vector<16x128xf32>
    %155 = math.erf %154 : vector<16x128xf32>
    %cst_40 = arith.constant 1.000000e+00 : f32
    %156 = vector.broadcast %cst_40 : f32 to vector<16x128xf32>
    %157 = arith.addf %156, %155 : vector<16x128xf32>
    %158 = arith.mulf %152, %157 : vector<16x128xf32>
    %159 = arith.truncf %158 : vector<16x128xf32> to vector<16x128xbf16>
    %c832 = arith.constant 832 : index
    %c0_41 = arith.constant 0 : index
    %160 = vector.load %arg2[%c832, %c0_41] : memref<1664x128xbf16, #tpu.memory_space<vmem>>, vector<128x128xbf16>
    %cst_42 = arith.constant dense<0.000000e+00> : vector<16x128xf32>
    %161 = tpu.matmul %159, %160, %cst_42 {dimension_numbers = #tpu.dot_dimension_numbers<[1], [0], [0], [1], [0, 0, 1, 1], [], []>} : vector<16x128xbf16>, vector<128x128xbf16>, vector<16x128xf32> -> vector<16x128xf32>
    %162 = vector.extract_strided_slice %161 {offsets = [0, 0], sizes = [16, 64], strides = [1, 1]} : vector<16x128xf32> to vector<16x64xf32>
    %c15 = arith.constant 15 : index
    %c0_43 = arith.constant 0 : index
    %163 = vector.load %arg4[%c15, %c0_43] : memref<28x512xf32, #tpu.memory_space<vmem>>, vector<1x512xf32>
    %164 = vector.extract_strided_slice %163 {offsets = [0, 0], sizes = [1, 64], strides = [1, 1]} : vector<1x512xf32> to vector<1x64xf32>
    %165 = vector.broadcast %164 : vector<1x64xf32> to vector<16x64xf32>
    %166 = arith.addf %162, %165 : vector<16x64xf32>
    %167 = arith.addf %117, %166 : vector<16x64xf32>
    %c16 = arith.constant 16 : index
    %c0_44 = arith.constant 0 : index
    %168 = vector.load %arg4[%c16, %c0_44] : memref<28x512xf32, #tpu.memory_space<vmem>>, vector<1x512xf32>
    %169 = vector.extract_strided_slice %168 {offsets = [0, 0], sizes = [1, 64], strides = [1, 1]} : vector<1x512xf32> to vector<1x64xf32>
    %c17 = arith.constant 17 : index
    %c0_45 = arith.constant 0 : index
    %170 = vector.load %arg4[%c17, %c0_45] : memref<28x512xf32, #tpu.memory_space<vmem>>, vector<1x512xf32>
    %171 = vector.extract_strided_slice %170 {offsets = [0, 0], sizes = [1, 64], strides = [1, 1]} : vector<1x512xf32> to vector<1x64xf32>
    %cst_46 = arith.constant dense<0.000000e+00> : vector<16xf32>
    %172 = vector.multi_reduction <add>, %167, %cst_46 [1] : vector<16x64xf32> to vector<16xf32>
    %173 = vector.shape_cast %172 : vector<16xf32> to vector<16x1xf32>
    %cst_47 = arith.constant 6.400000e+01 : f32
    %174 = vector.broadcast %cst_47 : f32 to vector<16x1xf32>
    %175 = arith.divf %173, %174 : vector<16x1xf32>
    %176 = vector.broadcast %175 : vector<16x1xf32> to vector<16x64xf32>
    %177 = arith.subf %167, %176 : vector<16x64xf32>
    %178 = arith.mulf %177, %177 : vector<16x64xf32>
    %cst_48 = arith.constant dense<0.000000e+00> : vector<16xf32>
    %179 = vector.multi_reduction <add>, %178, %cst_48 [1] : vector<16x64xf32> to vector<16xf32>
    %180 = vector.shape_cast %179 : vector<16xf32> to vector<16x1xf32>
    %cst_49 = arith.constant 6.400000e+01 : f32
    %181 = vector.broadcast %cst_49 : f32 to vector<16x1xf32>
    %182 = arith.divf %180, %181 : vector<16x1xf32>
    %183 = vector.broadcast %175 : vector<16x1xf32> to vector<16x64xf32>
    %184 = arith.subf %167, %183 : vector<16x64xf32>
    %cst_50 = arith.constant 9.99999996E-13 : f32
    %185 = vector.broadcast %cst_50 : f32 to vector<16x1xf32>
    %186 = arith.addf %182, %185 : vector<16x1xf32>
    %187 = math.rsqrt %186 : vector<16x1xf32>
    %188 = vector.broadcast %187 : vector<16x1xf32> to vector<16x64xf32>
    %189 = arith.mulf %184, %188 : vector<16x64xf32>
    %190 = vector.broadcast %169 : vector<1x64xf32> to vector<16x64xf32>
    %191 = arith.mulf %189, %190 : vector<16x64xf32>
    %192 = vector.broadcast %171 : vector<1x64xf32> to vector<16x64xf32>
    %193 = arith.addf %191, %192 : vector<16x64xf32>
    %c1 = arith.constant 1 : index
    %c0_51 = arith.constant 0 : index
    %c0_52 = arith.constant 0 : index
    %194 = vector.load %arg1[%c1, %c0_51, %c0_52] : memref<2x128x256xf32, #tpu.memory_space<vmem>>, vector<1x64x256xf32>
    %195 = vector.shape_cast %194 : vector<1x64x256xf32> to vector<64x256xf32>
    %cst_53 = arith.constant dense<0.000000e+00> : vector<16x256xf32>
    %196 = tpu.matmul %193, %195, %cst_53 {dimension_numbers = #tpu.dot_dimension_numbers<[1], [0], [0], [1], [0, 0, 1, 1], [], []>} : vector<16x64xf32>, vector<64x256xf32>, vector<16x256xf32> -> vector<16x256xf32>
    %c18 = arith.constant 18 : index
    %c0_54 = arith.constant 0 : index
    %197 = vector.load %arg4[%c18, %c0_54] : memref<28x512xf32, #tpu.memory_space<vmem>>, vector<1x512xf32>
    %198 = vector.extract_strided_slice %197 {offsets = [0, 0], sizes = [1, 256], strides = [1, 1]} : vector<1x512xf32> to vector<1x256xf32>
    %199 = vector.broadcast %198 : vector<1x256xf32> to vector<16x256xf32>
    %200 = arith.addf %196, %199 : vector<16x256xf32>
    %201 = vector.extract_strided_slice %200 {offsets = [0, 0], sizes = [16, 64], strides = [1, 1]} : vector<16x256xf32> to vector<16x64xf32>
    %202 = vector.extract_strided_slice %201 {offsets = [0, 0], sizes = [16, 16], strides = [1, 1]} : vector<16x64xf32> to vector<16x16xf32>
    %203 = vector.shape_cast %202 : vector<16x16xf32> to vector<1x2x8x16xf32>
    %204 = vector.extract_strided_slice %201 {offsets = [0, 16], sizes = [16, 16], strides = [1, 1]} : vector<16x64xf32> to vector<16x16xf32>
    %205 = vector.shape_cast %204 : vector<16x16xf32> to vector<1x2x8x16xf32>
    %206 = vector.extract_strided_slice %201 {offsets = [0, 32], sizes = [16, 16], strides = [1, 1]} : vector<16x64xf32> to vector<16x16xf32>
    %207 = vector.shape_cast %206 : vector<16x16xf32> to vector<1x2x8x16xf32>
    %208 = vector.extract_strided_slice %201 {offsets = [0, 48], sizes = [16, 16], strides = [1, 1]} : vector<16x64xf32> to vector<16x16xf32>
    %209 = vector.shape_cast %208 : vector<16x16xf32> to vector<1x2x8x16xf32>
    %210 = tpu.concatenate %203, %205, %207, %209 in 0 : vector<1x2x8x16xf32>, vector<1x2x8x16xf32>, vector<1x2x8x16xf32>, vector<1x2x8x16xf32> -> vector<4x2x8x16xf32>
    %211 = vector.shape_cast %210 : vector<4x2x8x16xf32> to vector<8x8x16xf32>
    %212 = vector.extract_strided_slice %200 {offsets = [0, 64], sizes = [16, 64], strides = [1, 1]} : vector<16x256xf32> to vector<16x64xf32>
    %213 = vector.extract_strided_slice %212 {offsets = [0, 0], sizes = [16, 16], strides = [1, 1]} : vector<16x64xf32> to vector<16x16xf32>
    %214 = vector.shape_cast %213 : vector<16x16xf32> to vector<1x2x8x16xf32>
    %215 = vector.extract_strided_slice %212 {offsets = [0, 16], sizes = [16, 16], strides = [1, 1]} : vector<16x64xf32> to vector<16x16xf32>
    %216 = vector.shape_cast %215 : vector<16x16xf32> to vector<1x2x8x16xf32>
    %217 = vector.extract_strided_slice %212 {offsets = [0, 32], sizes = [16, 16], strides = [1, 1]} : vector<16x64xf32> to vector<16x16xf32>
    %218 = vector.shape_cast %217 : vector<16x16xf32> to vector<1x2x8x16xf32>
    %219 = vector.extract_strided_slice %212 {offsets = [0, 48], sizes = [16, 16], strides = [1, 1]} : vector<16x64xf32> to vector<16x16xf32>
    %220 = vector.shape_cast %219 : vector<16x16xf32> to vector<1x2x8x16xf32>
    %221 = tpu.concatenate %214, %216, %218, %220 in 0 : vector<1x2x8x16xf32>, vector<1x2x8x16xf32>, vector<1x2x8x16xf32>, vector<1x2x8x16xf32> -> vector<4x2x8x16xf32>
    %222 = vector.shape_cast %221 : vector<4x2x8x16xf32> to vector<8x8x16xf32>
    %223 = vector.extract_strided_slice %200 {offsets = [0, 128], sizes = [16, 64], strides = [1, 1]} : vector<16x256xf32> to vector<16x64xf32>
    %224 = vector.extract_strided_slice %223 {offsets = [0, 0], sizes = [16, 16], strides = [1, 1]} : vector<16x64xf32> to vector<16x16xf32>
    %225 = vector.shape_cast %224 : vector<16x16xf32> to vector<1x2x8x16xf32>
    %226 = vector.extract_strided_slice %223 {offsets = [0, 16], sizes = [16, 16], strides = [1, 1]} : vector<16x64xf32> to vector<16x16xf32>
    %227 = vector.shape_cast %226 : vector<16x16xf32> to vector<1x2x8x16xf32>
    %228 = vector.extract_strided_slice %223 {offsets = [0, 32], sizes = [16, 16], strides = [1, 1]} : vector<16x64xf32> to vector<16x16xf32>
    %229 = vector.shape_cast %228 : vector<16x16xf32> to vector<1x2x8x16xf32>
    %230 = vector.extract_strided_slice %223 {offsets = [0, 48], sizes = [16, 16], strides = [1, 1]} : vector<16x64xf32> to vector<16x16xf32>
    %231 = vector.shape_cast %230 : vector<16x16xf32> to vector<1x2x8x16xf32>
    %232 = tpu.concatenate %225, %227, %229, %231 in 0 : vector<1x2x8x16xf32>, vector<1x2x8x16xf32>, vector<1x2x8x16xf32>, vector<1x2x8x16xf32> -> vector<4x2x8x16xf32>
    %233 = vector.shape_cast %232 : vector<4x2x8x16xf32> to vector<8x8x16xf32>
    "tpu.trace_start"() <{level = 10 : i32, message = "bqd,bkd->bqk"}> : () -> ()
    %cst_55 = arith.constant dense<0.000000e+00> : vector<8x8x8xf32>
    %234 = tpu.matmul %211, %222, %cst_55 {dimension_numbers = #tpu.dot_dimension_numbers<[2], [2], [1], [1], [0, 0, 0, 1, 1, 1], [0], [0]>} : vector<8x8x16xf32>, vector<8x8x16xf32>, vector<8x8x8xf32> -> vector<8x8x8xf32>
    "tpu.trace_stop"() : () -> ()
    %cst_56 = arith.constant 2.500000e-01 : f32
    %235 = vector.broadcast %cst_56 : f32 to vector<8x8x8xf32>
    %236 = arith.mulf %234, %235 : vector<8x8x8xf32>
    %237 = vector.broadcast %16 : vector<1x1x8xf32> to vector<8x8x8xf32>
    %238 = arith.addf %236, %237 : vector<8x8x8xf32>
    %cst_57 = arith.constant dense<0xFF800000> : vector<8x8xf32>
    %239 = vector.multi_reduction <maximumf>, %238, %cst_57 [2] : vector<8x8x8xf32> to vector<8x8xf32>
    %240 = vector.shape_cast %239 : vector<8x8xf32> to vector<8x8x1xf32>
    %241 = vector.broadcast %240 : vector<8x8x1xf32> to vector<8x8x8xf32>
    %242 = arith.subf %238, %241 : vector<8x8x8xf32>
    %243 = math.exp %242 : vector<8x8x8xf32>
    %cst_58 = arith.constant dense<0.000000e+00> : vector<8x8xf32>
    %244 = vector.multi_reduction <add>, %243, %cst_58 [2] : vector<8x8x8xf32> to vector<8x8xf32>
    %245 = vector.shape_cast %244 : vector<8x8xf32> to vector<8x8x1xf32>
    %246 = tpu.reciprocal %245 {approx = true} : vector<8x8x1xf32> -> vector<8x8x1xf32>
    %247 = vector.broadcast %246 : vector<8x8x1xf32> to vector<8x8x8xf32>
    %248 = arith.mulf %243, %247 : vector<8x8x8xf32>
    "tpu.trace_start"() <{level = 10 : i32, message = "bqk,bkd->bqd"}> : () -> ()
    %cst_59 = arith.constant dense<0.000000e+00> : vector<8x8x16xf32>
    %249 = tpu.matmul %248, %233, %cst_59 {dimension_numbers = #tpu.dot_dimension_numbers<[2], [1], [1], [2], [0, 0, 0, 1, 1, 2], [0], [0]>} : vector<8x8x8xf32>, vector<8x8x16xf32>, vector<8x8x16xf32> -> vector<8x8x16xf32>
    "tpu.trace_stop"() : () -> ()
    %250 = vector.shape_cast %249 : vector<8x8x16xf32> to vector<4x16x16xf32>
    %251 = vector.extract_strided_slice %250 {offsets = [0, 0, 0], sizes = [1, 16, 16], strides = [1, 1, 1]} : vector<4x16x16xf32> to vector<1x16x16xf32>
    %252 = vector.shape_cast %251 : vector<1x16x16xf32> to vector<16x16xf32>
    %253 = vector.extract_strided_slice %250 {offsets = [1, 0, 0], sizes = [1, 16, 16], strides = [1, 1, 1]} : vector<4x16x16xf32> to vector<1x16x16xf32>
    %254 = vector.shape_cast %253 : vector<1x16x16xf32> to vector<16x16xf32>
    %255 = vector.extract_strided_slice %250 {offsets = [2, 0, 0], sizes = [1, 16, 16], strides = [1, 1, 1]} : vector<4x16x16xf32> to vector<1x16x16xf32>
    %256 = vector.shape_cast %255 : vector<1x16x16xf32> to vector<16x16xf32>
    %257 = vector.extract_strided_slice %250 {offsets = [3, 0, 0], sizes = [1, 16, 16], strides = [1, 1, 1]} : vector<4x16x16xf32> to vector<1x16x16xf32>
    %258 = vector.shape_cast %257 : vector<1x16x16xf32> to vector<16x16xf32>
    %259 = tpu.concatenate %252, %254, %256, %258 in 1 : vector<16x16xf32>, vector<16x16xf32>, vector<16x16xf32>, vector<16x16xf32> -> vector<16x64xf32>
    %c1_60 = arith.constant 1 : index
    %c64_61 = arith.constant 64 : index
    %c0_62 = arith.constant 0 : index
    %260 = vector.load %arg1[%c1_60, %c64_61, %c0_62] : memref<2x128x256xf32, #tpu.memory_space<vmem>>, vector<1x64x256xf32>
    %261 = vector.shape_cast %260 : vector<1x64x256xf32> to vector<64x256xf32>
    %cst_63 = arith.constant dense<0.000000e+00> : vector<16x256xf32>
    %262 = tpu.matmul %259, %261, %cst_63 {dimension_numbers = #tpu.dot_dimension_numbers<[1], [0], [0], [1], [0, 0, 1, 1], [], []>} : vector<16x64xf32>, vector<64x256xf32>, vector<16x256xf32> -> vector<16x256xf32>
    %263 = vector.extract_strided_slice %262 {offsets = [0, 0], sizes = [16, 64], strides = [1, 1]} : vector<16x256xf32> to vector<16x64xf32>
    %c19 = arith.constant 19 : index
    %c0_64 = arith.constant 0 : index
    %264 = vector.load %arg4[%c19, %c0_64] : memref<28x512xf32, #tpu.memory_space<vmem>>, vector<1x512xf32>
    %265 = vector.extract_strided_slice %264 {offsets = [0, 0], sizes = [1, 64], strides = [1, 1]} : vector<1x512xf32> to vector<1x64xf32>
    %266 = vector.broadcast %265 : vector<1x64xf32> to vector<16x64xf32>
    %267 = arith.addf %263, %266 : vector<16x64xf32>
    %268 = arith.addf %167, %267 : vector<16x64xf32>
    %c20 = arith.constant 20 : index
    %c0_65 = arith.constant 0 : index
    %269 = vector.load %arg4[%c20, %c0_65] : memref<28x512xf32, #tpu.memory_space<vmem>>, vector<1x512xf32>
    %270 = vector.extract_strided_slice %269 {offsets = [0, 0], sizes = [1, 64], strides = [1, 1]} : vector<1x512xf32> to vector<1x64xf32>
    %c21 = arith.constant 21 : index
    %c0_66 = arith.constant 0 : index
    %271 = vector.load %arg4[%c21, %c0_66] : memref<28x512xf32, #tpu.memory_space<vmem>>, vector<1x512xf32>
    %272 = vector.extract_strided_slice %271 {offsets = [0, 0], sizes = [1, 64], strides = [1, 1]} : vector<1x512xf32> to vector<1x64xf32>
    %cst_67 = arith.constant dense<0.000000e+00> : vector<16xf32>
    %273 = vector.multi_reduction <add>, %268, %cst_67 [1] : vector<16x64xf32> to vector<16xf32>
    %274 = vector.shape_cast %273 : vector<16xf32> to vector<16x1xf32>
    %cst_68 = arith.constant 6.400000e+01 : f32
    %275 = vector.broadcast %cst_68 : f32 to vector<16x1xf32>
    %276 = arith.divf %274, %275 : vector<16x1xf32>
    %277 = vector.broadcast %276 : vector<16x1xf32> to vector<16x64xf32>
    %278 = arith.subf %268, %277 : vector<16x64xf32>
    %279 = arith.mulf %278, %278 : vector<16x64xf32>
    %cst_69 = arith.constant dense<0.000000e+00> : vector<16xf32>
    %280 = vector.multi_reduction <add>, %279, %cst_69 [1] : vector<16x64xf32> to vector<16xf32>
    %281 = vector.shape_cast %280 : vector<16xf32> to vector<16x1xf32>
    %cst_70 = arith.constant 6.400000e+01 : f32
    %282 = vector.broadcast %cst_70 : f32 to vector<16x1xf32>
    %283 = arith.divf %281, %282 : vector<16x1xf32>
    %284 = vector.broadcast %276 : vector<16x1xf32> to vector<16x64xf32>
    %285 = arith.subf %268, %284 : vector<16x64xf32>
    %cst_71 = arith.constant 9.99999996E-13 : f32
    %286 = vector.broadcast %cst_71 : f32 to vector<16x1xf32>
    %287 = arith.addf %283, %286 : vector<16x1xf32>
    %288 = math.rsqrt %287 : vector<16x1xf32>
    %289 = vector.broadcast %288 : vector<16x1xf32> to vector<16x64xf32>
    %290 = arith.mulf %285, %289 : vector<16x64xf32>
    %291 = vector.broadcast %270 : vector<1x64xf32> to vector<16x64xf32>
    %292 = arith.mulf %290, %291 : vector<16x64xf32>
    %293 = vector.broadcast %272 : vector<1x64xf32> to vector<16x64xf32>
    %294 = arith.addf %292, %293 : vector<16x64xf32>
    %295 = arith.truncf %294 : vector<16x64xf32> to vector<16x64xbf16>
    %c960 = arith.constant 960 : index
    %c0_72 = arith.constant 0 : index
    %296 = vector.load %arg2[%c960, %c0_72] : memref<1664x128xbf16, #tpu.memory_space<vmem>>, vector<64x128xbf16>
    %cst_73 = arith.constant dense<0.000000e+00> : vector<16x128xf32>
    %297 = tpu.matmul %295, %296, %cst_73 {dimension_numbers = #tpu.dot_dimension_numbers<[1], [0], [0], [1], [0, 0, 1, 1], [], []>} : vector<16x64xbf16>, vector<64x128xbf16>, vector<16x128xf32> -> vector<16x128xf32>
    %c22 = arith.constant 22 : index
    %c0_74 = arith.constant 0 : index
    %298 = vector.load %arg4[%c22, %c0_74] : memref<28x512xf32, #tpu.memory_space<vmem>>, vector<1x512xf32>
    %299 = vector.extract_strided_slice %298 {offsets = [0, 0], sizes = [1, 128], strides = [1, 1]} : vector<1x512xf32> to vector<1x128xf32>
    %300 = vector.broadcast %299 : vector<1x128xf32> to vector<16x128xf32>
    %301 = arith.addf %297, %300 : vector<16x128xf32>
    %cst_75 = arith.constant 5.000000e-01 : f32
    %302 = vector.broadcast %cst_75 : f32 to vector<16x128xf32>
    %303 = arith.mulf %302, %301 : vector<16x128xf32>
    %cst_76 = arith.constant 0.707106769 : f32
    %304 = vector.broadcast %cst_76 : f32 to vector<16x128xf32>
    %305 = arith.mulf %301, %304 : vector<16x128xf32>
    %306 = math.erf %305 : vector<16x128xf32>
    %cst_77 = arith.constant 1.000000e+00 : f32
    %307 = vector.broadcast %cst_77 : f32 to vector<16x128xf32>
    %308 = arith.addf %307, %306 : vector<16x128xf32>
    %309 = arith.mulf %303, %308 : vector<16x128xf32>
    %310 = arith.truncf %309 : vector<16x128xf32> to vector<16x128xbf16>
    %c1024 = arith.constant 1024 : index
    %c0_78 = arith.constant 0 : index
    %311 = vector.load %arg2[%c1024, %c0_78] : memref<1664x128xbf16, #tpu.memory_space<vmem>>, vector<128x128xbf16>
    %cst_79 = arith.constant dense<0.000000e+00> : vector<16x128xf32>
    %312 = tpu.matmul %310, %311, %cst_79 {dimension_numbers = #tpu.dot_dimension_numbers<[1], [0], [0], [1], [0, 0, 1, 1], [], []>} : vector<16x128xbf16>, vector<128x128xbf16>, vector<16x128xf32> -> vector<16x128xf32>
    %313 = vector.extract_strided_slice %312 {offsets = [0, 0], sizes = [16, 64], strides = [1, 1]} : vector<16x128xf32> to vector<16x64xf32>
    %c23 = arith.constant 23 : index
    %c0_80 = arith.constant 0 : index
    %314 = vector.load %arg4[%c23, %c0_80] : memref<28x512xf32, #tpu.memory_space<vmem>>, vector<1x512xf32>
    %315 = vector.extract_strided_slice %314 {offsets = [0, 0], sizes = [1, 64], strides = [1, 1]} : vector<1x512xf32> to vector<1x64xf32>
    %316 = vector.broadcast %315 : vector<1x64xf32> to vector<16x64xf32>
    %317 = arith.addf %313, %316 : vector<16x64xf32>
    %318 = arith.addf %268, %317 : vector<16x64xf32>
    %319 = vector.shape_cast %318 : vector<16x64xf32> to vector<2x8x64xf32>
    %320 = vector.extract_strided_slice %319 {offsets = [0, 0, 0], sizes = [2, 1, 64], strides = [1, 1, 1]} : vector<2x8x64xf32> to vector<2x1x64xf32>
    %321 = vector.shape_cast %320 : vector<2x1x64xf32> to vector<2x64xf32>
    %c24 = arith.constant 24 : index
    %c0_81 = arith.constant 0 : index
    %322 = vector.load %arg4[%c24, %c0_81] : memref<28x512xf32, #tpu.memory_space<vmem>>, vector<1x512xf32>
    %323 = vector.extract_strided_slice %322 {offsets = [0, 0], sizes = [1, 64], strides = [1, 1]} : vector<1x512xf32> to vector<1x64xf32>
    %c25 = arith.constant 25 : index
    %c0_82 = arith.constant 0 : index
    %324 = vector.load %arg4[%c25, %c0_82] : memref<28x512xf32, #tpu.memory_space<vmem>>, vector<1x512xf32>
    %325 = vector.extract_strided_slice %324 {offsets = [0, 0], sizes = [1, 64], strides = [1, 1]} : vector<1x512xf32> to vector<1x64xf32>
    %cst_83 = arith.constant dense<0.000000e+00> : vector<2xf32>
    %326 = vector.multi_reduction <add>, %321, %cst_83 [1] : vector<2x64xf32> to vector<2xf32>
    %327 = vector.shape_cast %326 : vector<2xf32> to vector<2x1xf32>
    %cst_84 = arith.constant 6.400000e+01 : f32
    %328 = vector.broadcast %cst_84 : f32 to vector<2x1xf32>
    %329 = arith.divf %327, %328 : vector<2x1xf32>
    %330 = vector.broadcast %329 : vector<2x1xf32> to vector<2x64xf32>
    %331 = arith.subf %321, %330 : vector<2x64xf32>
    %332 = arith.mulf %331, %331 : vector<2x64xf32>
    %cst_85 = arith.constant dense<0.000000e+00> : vector<2xf32>
    %333 = vector.multi_reduction <add>, %332, %cst_85 [1] : vector<2x64xf32> to vector<2xf32>
    %334 = vector.shape_cast %333 : vector<2xf32> to vector<2x1xf32>
    %cst_86 = arith.constant 6.400000e+01 : f32
    %335 = vector.broadcast %cst_86 : f32 to vector<2x1xf32>
    %336 = arith.divf %334, %335 : vector<2x1xf32>
    %337 = vector.broadcast %329 : vector<2x1xf32> to vector<2x64xf32>
    %338 = arith.subf %321, %337 : vector<2x64xf32>
    %cst_87 = arith.constant 9.99999996E-13 : f32
    %339 = vector.broadcast %cst_87 : f32 to vector<2x1xf32>
    %340 = arith.addf %336, %339 : vector<2x1xf32>
    %341 = math.rsqrt %340 : vector<2x1xf32>
    %342 = vector.broadcast %341 : vector<2x1xf32> to vector<2x64xf32>
    %343 = arith.mulf %338, %342 : vector<2x64xf32>
    %344 = vector.broadcast %323 : vector<1x64xf32> to vector<2x64xf32>
    %345 = arith.mulf %343, %344 : vector<2x64xf32>
    %346 = vector.broadcast %325 : vector<1x64xf32> to vector<2x64xf32>
    %347 = arith.addf %345, %346 : vector<2x64xf32>
    %348 = arith.truncf %347 : vector<2x64xf32> to vector<2x64xbf16>
    %c0_88 = arith.constant 0 : index
    %c0_89 = arith.constant 0 : index
    %349 = vector.load %arg3[%c0_88, %c0_89] : memref<64x512xbf16, #tpu.memory_space<vmem>>, vector<64x512xbf16>
    %cst_90 = arith.constant dense<0.000000e+00> : vector<2x512xf32>
    %350 = tpu.matmul %348, %349, %cst_90 {dimension_numbers = #tpu.dot_dimension_numbers<[1], [0], [0], [1], [0, 0, 1, 1], [], []>} : vector<2x64xbf16>, vector<64x512xbf16>, vector<2x512xf32> -> vector<2x512xf32>
    %c26 = arith.constant 26 : index
    %c0_91 = arith.constant 0 : index
    %351 = vector.load %arg4[%c26, %c0_91] : memref<28x512xf32, #tpu.memory_space<vmem>>, vector<1x512xf32>
    %352 = vector.broadcast %351 : vector<1x512xf32> to vector<2x512xf32>
    %353 = arith.addf %350, %352 : vector<2x512xf32>
    %cst_92 = arith.constant 0.000000e+00 : f32
    %354 = vector.broadcast %cst_92 : f32 to vector<2x512xf32>
    %355 = arith.maximumf %353, %354 : vector<2x512xf32>
    %356 = arith.truncf %355 : vector<2x512xf32> to vector<2x512xbf16>
    %c1152 = arith.constant 1152 : index
    %c0_93 = arith.constant 0 : index
    %357 = vector.load %arg2[%c1152, %c0_93] : memref<1664x128xbf16, #tpu.memory_space<vmem>>, vector<512x128xbf16>
    %cst_94 = arith.constant dense<0.000000e+00> : vector<2x128xf32>
    %358 = tpu.matmul %356, %357, %cst_94 {dimension_numbers = #tpu.dot_dimension_numbers<[1], [0], [0], [1], [0, 0, 1, 1], [], []>} : vector<2x512xbf16>, vector<512x128xbf16>, vector<2x128xf32> -> vector<2x128xf32>
    %c27 = arith.constant 27 : index
    %c0_95 = arith.constant 0 : index
    %359 = vector.load %arg4[%c27, %c0_95] : memref<28x512xf32, #tpu.memory_space<vmem>>, vector<1x512xf32>
    %360 = vector.extract_strided_slice %359 {offsets = [0, 0], sizes = [1, 128], strides = [1, 1]} : vector<1x512xf32> to vector<1x128xf32>
    %361 = vector.broadcast %360 : vector<1x128xf32> to vector<2x128xf32>
    %362 = arith.addf %358, %361 : vector<2x128xf32>
    %c0_96 = arith.constant 0 : index
    %c0_97 = arith.constant 0 : index
    %363 = vector.load %arg5[%c0_96, %c0_97] : memref<2x128xf32, #tpu.memory_space<vmem>>, vector<2x128xf32>
    tpu.vector_store %arg5[%c0_96, %c0_97], %362 {strides = array<i32>} : memref<2x128xf32, #tpu.memory_space<vmem>>, vector<2x128xf32>,
    return
  }
}

</mosaic_0001>

<llo_original>
// kernel: vit_distortion_scene_forward.1
$region0: #{vit_distortion_scene_forward.1}
  #allocation0 [shape = 'u32[]', space=smem, size = 0x4, offset = 0x4, fixed_abs, tag = 'smem constant byte address 0x4 - core index']
  #allocation1 [shape = 'u32[144,128]{1,0:T(1,128)}', space=vmem, size = 0x12000, scoped, tag = 'internal scratch']
  %s0 = inlined_call_operand.vmem [shape: bf16[16,768], index: 0, kind: input, shape index: {}]
  %s1 = inlined_call_operand.hbm [shape: f32[2,128,256], index: 1, kind: input, shape index: {}]
  %s2 = inlined_call_operand.vmem [shape: bf16[1664,128], index: 2, kind: input, shape index: {}]
  %s3 = inlined_call_operand.vmem [shape: bf16[64,512], index: 3, kind: input, shape index: {}]
  %s4 = inlined_call_operand.vmem [shape: f32[28,512], index: 4, kind: input, shape index: {}]
  %s5 = inlined_call_operand.vmem [shape: f32[2,128], index: 5, kind: output, shape index: {}]
  %s6 = sld [smem:[#allocation0]]
  $region34: #{vit_distortion_scene_forward.1} parent=0
    _
  %s8 = ssub.s32 1, %s6
  %s9 = scalar_select 0, %s8, %s6
  $region1: #{vit_distortion_scene_forward.1} parent=0
    #allocation2 [shape = 'u8[262144]{0}', space=vmem, size = 0x40000, scoped, tag = 'input window, operand 1, single buffered']
    #allocation3 [shape = 's32[1]{0}', space=sflag, size = 0x4, scoped, tag = 'scoped memory for vit_distortion_scene_forward.1']
    %10 = vsyncpa [#allocation3], 0
    // Predicated region
    $region2: #{vit_distortion_scene_forward.1} parent=1 // pred_check
      _
    $region3: #{vit_distortion_scene_forward.1} parent=1 // pred_check_branch
      %12 = sbr.rel (0) target = $region5
    $region4: #{vit_distortion_scene_forward.1} parent=1 // pred_region
      _
    $region5: #{vit_distortion_scene_forward.1} parent=1 // pred_fallthru
      _
    // Predicated region
    $region6: #{vit_distortion_scene_forward.1} parent=1 // pred_check
      _
    $region7: #{vit_distortion_scene_forward.1} parent=1 // pred_check_branch
      %14 = sbr.rel (0) target = $region9
    $region8: #{vit_distortion_scene_forward.1} parent=1 // pred_region
      %s16 = ssub.s32 8192, 8192
      %17 = vsyncadd [#allocation3], %s16
      %s18 = sshll.u32 [#allocation2], 4
      %s19 = int_to_ptr.vmem [resolvable:$true] %s18
      %24 = dma.hbm_to_vmem [thread:$0]  %s1, 8192, %s19, [#allocation3], 256, 256, 16
    $region9: #{vit_distortion_scene_forward.1} parent=1 // pred_fallthru
      _
    // Predicated region
    $region10: #{vit_distortion_scene_forward.1} parent=1 // pred_check
      _
    $region11: #{vit_distortion_scene_forward.1} parent=1 // pred_check_branch
      %26 = sbr.rel (0) target = $region13
    $region12: #{vit_distortion_scene_forward.1} parent=1 // pred_region
      _
    $region13: #{vit_distortion_scene_forward.1} parent=1 // pred_fallthru
      _
    // Predicated region
    $region14: #{vit_distortion_scene_forward.1} parent=1 // pred_check
      _
    $region15: #{vit_distortion_scene_forward.1} parent=1 // pred_check_branch
      %28 = sbr.rel (0) target = $region17
    $region16: #{vit_distortion_scene_forward.1} parent=1 // pred_region
      _
    $region17: #{vit_distortion_scene_forward.1} parent=1 // pred_fallthru
      _
    // Predicated region
    $region18: #{vit_distortion_scene_forward.1} parent=1 // pred_check
      _
    $region19: #{vit_distortion_scene_forward.1} parent=1 // pred_check_branch
      %30 = sbr.rel (0) target = $region21
    $region20: #{vit_distortion_scene_forward.1} parent=1 // pred_region
      _
    $region21: #{vit_distortion_scene_forward.1} parent=1 // pred_fallthru
      _
    // Predicated region
    $region22: #{vit_distortion_scene_forward.1} parent=1 // pred_check
      _
    $region23: #{vit_distortion_scene_forward.1} parent=1 // pred_check_branch
      %32 = sbr.rel (0) target = $region25
    $region24: #{vit_distortion_scene_forward.1} parent=1 // pred_region
      %33 = dma.done [#allocation3], 8192
    $region25: #{vit_distortion_scene_forward.1} parent=1 // pred_fallthru
      _
    %v35 = vld [vmem:[%s0] sm:$0xff]
    %v36 = vld [vmem:[%s0 + $0x8] sm:$0xff]
    %v37 = vld [vmem:[%s0 + $0x10] sm:$0xff]
    %v38 = vld [vmem:[%s0 + $0x18] sm:$0xff]
    %v39 = vld [vmem:[%s0 + $0x20] sm:$0xff]
    %v40 = vld [vmem:[%s0 + $0x28] sm:$0xff]
    %v41 = vld [vmem:[%s2] sm:$0xf]
    %v42 = vld [vmem:[%s2 + $0x4] sm:$0xf]
    %v43 = vld [vmem:[%s2 + $0x8] sm:$0xf]
    %v44 = vld [vmem:[%s2 + $0xc] sm:$0xf]
    %v45 = vld [vmem:[%s2 + $0x10] sm:$0xf]
    %v46 = vld [vmem:[%s2 + $0x14] sm:$0xf]
    %v47 = vld [vmem:[%s2 + $0x18] sm:$0xf]
    %v48 = vld [vmem:[%s2 + $0x1c] sm:$0xf]
    %v49 = vld [vmem:[%s2 + $0x20] sm:$0xf]
    %v50 = vld [vmem:[%s2 + $0x24] sm:$0xf]
    %v51 = vld [vmem:[%s2 + $0x28] sm:$0xf]
    %v52 = vld [vmem:[%s2 + $0x2c] sm:$0xf]
    %v53 = vld [vmem:[%s2 + $0x30] sm:$0xf]
    %v54 = vld [vmem:[%s2 + $0x34] sm:$0xf]
    %v55 = vld [vmem:[%s2 + $0x38] sm:$0xf]
    %v56 = vld [vmem:[%s2 + $0x3c] sm:$0xf]
    %v57 = vld [vmem:[%s2 + $0x40] sm:$0xf]
    %v58 = vld [vmem:[%s2 + $0x44] sm:$0xf]
    %v59 = vld [vmem:[%s2 + $0x48] sm:$0xf]
    %v60 = vld [vmem:[%s2 + $0x4c] sm:$0xf]
    %v61 = vld [vmem:[%s2 + $0x50] sm:$0xf]
    %v62 = vld [vmem:[%s2 + $0x54] sm:$0xf]
    %v63 = vld [vmem:[%s2 + $0x58] sm:$0xf]
    %v64 = vld [vmem:[%s2 + $0x5c] sm:$0xf]
    %v65 = vld [vmem:[%s2 + $0x60] sm:$0xf]
    %v66 = vld [vmem:[%s2 + $0x64] sm:$0xf]
    %v67 = vld [vmem:[%s2 + $0x68] sm:$0xf]
    %v68 = vld [vmem:[%s2 + $0x6c] sm:$0xf]
    %v69 = vld [vmem:[%s2 + $0x70] sm:$0xf]
    %v70 = vld [vmem:[%s2 + $0x74] sm:$0xf]
    %v71 = vld [vmem:[%s2 + $0x78] sm:$0xf]
    %v72 = vld [vmem:[%s2 + $0x7c] sm:$0xf]
    %v73 = vld [vmem:[%s2 + $0x80] sm:$0xf]
    %v74 = vld [vmem:[%s2 + $0x84] sm:$0xf]
    %v75 = vld [vmem:[%s2 + $0x88] sm:$0xf]
    %v76 = vld [vmem:[%s2 + $0x8c] sm:$0xf]
    %v77 = vld [vmem:[%s2 + $0x90] sm:$0xf]
    %v78 = vld [vmem:[%s2 + $0x94] sm:$0xf]
    %v79 = vld [vmem:[%s2 + $0x98] sm:$0xf]
    %v80 = vld [vmem:[%s2 + $0x9c] sm:$0xf]
    %v81 = vld [vmem:[%s2 + $0xa0] sm:$0xf]
    %v82 = vld [vmem:[%s2 + $0xa4] sm:$0xf]
    %v83 = vld [vmem:[%s2 + $0xa8] sm:$0xf]
    %v84 = vld [vmem:[%s2 + $0xac] sm:$0xf]
    %v85 = vld [vmem:[%s2 + $0xb0] sm:$0xf]
    %v86 = vld [vmem:[%s2 + $0xb4] sm:$0xf]
    %v87 = vld [vmem:[%s2 + $0xb8] sm:$0xf]
    %v88 = vld [vmem:[%s2 + $0xbc] sm:$0xf]
    %v89 = vld [vmem:[%s2 + $0xc0] sm:$0xf]
    %v90 = vld [vmem:[%s2 + $0xc4] sm:$0xf]
    %v91 = vld [vmem:[%s2 + $0xc8] sm:$0xf]
    %v92 = vld [vmem:[%s2 + $0xcc] sm:$0xf]
    %v93 = vld [vmem:[%s2 + $0xd0] sm:$0xf]
    %v94 = vld [vmem:[%s2 + $0xd4] sm:$0xf]
    %v95 = vld [vmem:[%s2 + $0xd8] sm:$0xf]
    %v96 = vld [vmem:[%s2 + $0xdc] sm:$0xf]
    %v97 = vld [vmem:[%s2 + $0xe0] sm:$0xf]
    %v98 = vld [vmem:[%s2 + $0xe4] sm:$0xf]
    %v99 = vld [vmem:[%s2 + $0xe8] sm:$0xf]
    %v100 = vld [vmem:[%s2 + $0xec] sm:$0xf]
    %v101 = vld [vmem:[%s2 + $0xf0] sm:$0xf]
    %v102 = vld [vmem:[%s2 + $0xf4] sm:$0xf]
    %v103 = vld [vmem:[%s2 + $0xf8] sm:$0xf]
    %v104 = vld [vmem:[%s2 + $0xfc] sm:$0xf]
    %v105 = vld [vmem:[%s2 + $0x100] sm:$0xf]
    %v106 = vld [vmem:[%s2 + $0x104] sm:$0xf]
    %v107 = vld [vmem:[%s2 + $0x108] sm:$0xf]
    %v108 = vld [vmem:[%s2 + $0x10c] sm:$0xf]
    %v109 = vld [vmem:[%s2 + $0x110] sm:$0xf]
    %v110 = vld [vmem:[%s2 + $0x114] sm:$0xf]
    %v111 = vld [vmem:[%s2 + $0x118] sm:$0xf]
    %v112 = vld [vmem:[%s2 + $0x11c] sm:$0xf]
    %v113 = vld [vmem:[%s2 + $0x120] sm:$0xf]
    %v114 = vld [vmem:[%s2 + $0x124] sm:$0xf]
    %v115 = vld [vmem:[%s2 + $0x128] sm:$0xf]
    %v116 = vld [vmem:[%s2 + $0x12c] sm:$0xf]
    %v117 = vld [vmem:[%s2 + $0x130] sm:$0xf]
    %v118 = vld [vmem:[%s2 + $0x134] sm:$0xf]
    %v119 = vld [vmem:[%s2 + $0x138] sm:$0xf]
    %v120 = vld [vmem:[%s2 + $0x13c] sm:$0xf]
    %v121 = vld [vmem:[%s2 + $0x140] sm:$0xf]
    %v122 = vld [vmem:[%s2 + $0x144] sm:$0xf]
    %v123 = vld [vmem:[%s2 + $0x148] sm:$0xf]
    %v124 = vld [vmem:[%s2 + $0x14c] sm:$0xf]
    %v125 = vld [vmem:[%s2 + $0x150] sm:$0xf]
    %v126 = vld [vmem:[%s2 + $0x154] sm:$0xf]
    %v127 = vld [vmem:[%s2 + $0x158] sm:$0xf]
    %v128 = vld [vmem:[%s2 + $0x15c] sm:$0xf]
    %v129 = vld [vmem:[%s2 + $0x160] sm:$0xf]
    %v130 = vld [vmem:[%s2 + $0x164] sm:$0xf]
    %v131 = vld [vmem:[%s2 + $0x168] sm:$0xf]
    %v132 = vld [vmem:[%s2 + $0x16c] sm:$0xf]
    %v133 = vld [vmem:[%s2 + $0x170] sm:$0xf]
    %v134 = vld [vmem:[%s2 + $0x174] sm:$0xf]
    %v135 = vld [vmem:[%s2 + $0x178] sm:$0xf]
    %v136 = vld [vmem:[%s2 + $0x17c] sm:$0xf]
    %v143 = vunpack.c.l.b16 %v35
    %v144 = vunpack.c.h.b16 %v35
    %v145 = vunpack.c.l.b16 %v36
    %v146 = vunpack.c.h.b16 %v36
    %v147 = vunpack.c.l.b16 %v37
    %v148 = vunpack.c.h.b16 %v37
    %v149 = vunpack.c.l.b16 %v38
    %v150 = vunpack.c.h.b16 %v38
    %v151 = vunpack.c.l.b16 %v39
    %v152 = vunpack.c.h.b16 %v39
    %v153 = vunpack.c.l.b16 %v40
    %v154 = vunpack.c.h.b16 %v40
    %v155 = vpack.c.b16 %v149, %v143
    %v156 = vpack.c.b16 %v150, %v144
    %v157 = vpack.c.b16 %v151, %v145
    %v158 = vpack.c.b16 %v152, %v146
    %v159 = vpack.c.b16 %v153, %v147
    %v160 = vpack.c.b16 %v154, %v148
    %v263 = vunpack.c.l.b16 %v41
    %v264 = vunpack.c.l.b16 %v42
    %v265 = vunpack.c.l.b16 %v43
    %v266 = vunpack.c.l.b16 %v44
    %v267 = vunpack.c.l.b16 %v45
    %v268 = vunpack.c.l.b16 %v46
    %v269 = vunpack.c.l.b16 %v47
    %v270 = vunpack.c.l.b16 %v48
    %v271 = vunpack.c.l.b16 %v49
    %v272 = vunpack.c.l.b16 %v50
    %v273 = vunpack.c.l.b16 %v51
    %v274 = vunpack.c.l.b16 %v52
    %v275 = vunpack.c.l.b16 %v53
    %v276 = vunpack.c.l.b16 %v54
    %v277 = vunpack.c.l.b16 %v55
    %v278 = vunpack.c.l.b16 %v56
    %v279 = vunpack.c.l.b16 %v57
    %v280 = vunpack.c.l.b16 %v58
    %v281 = vunpack.c.l.b16 %v59
    %v282 = vunpack.c.l.b16 %v60
    %v283 = vunpack.c.l.b16 %v61
    %v284 = vunpack.c.l.b16 %v62
    %v285 = vunpack.c.l.b16 %v63
    %v286 = vunpack.c.l.b16 %v64
    %v287 = vunpack.c.l.b16 %v65
    %v288 = vunpack.c.l.b16 %v66
    %v289 = vunpack.c.l.b16 %v67
    %v290 = vunpack.c.l.b16 %v68
    %v291 = vunpack.c.l.b16 %v69
    %v292 = vunpack.c.l.b16 %v70
    %v293 = vunpack.c.l.b16 %v71
    %v294 = vunpack.c.l.b16 %v72
    %v295 = vunpack.c.l.b16 %v73
    %v296 = vunpack.c.l.b16 %v74
    %v297 = vunpack.c.l.b16 %v75
    %v298 = vunpack.c.l.b16 %v76
    %v299 = vunpack.c.l.b16 %v77
    %v300 = vunpack.c.l.b16 %v78
    %v301 = vunpack.c.l.b16 %v79
    %v302 = vunpack.c.l.b16 %v80
    %v303 = vunpack.c.l.b16 %v81
    %v304 = vunpack.c.l.b16 %v82
    %v305 = vunpack.c.l.b16 %v83
    %v306 = vunpack.c.l.b16 %v84
    %v307 = vunpack.c.l.b16 %v85
    %v308 = vunpack.c.l.b16 %v86
    %v309 = vunpack.c.l.b16 %v87
    %v310 = vunpack.c.l.b16 %v88
    %v311 = vunpack.c.l.b16 %v89
    %v312 = vunpack.c.l.b16 %v90
    %v313 = vunpack.c.l.b16 %v91
    %v314 = vunpack.c.l.b16 %v92
    %v315 = vunpack.c.l.b16 %v93
    %v316 = vunpack.c.l.b16 %v94
    %v317 = vunpack.c.l.b16 %v95
    %v318 = vunpack.c.l.b16 %v96
    %v319 = vunpack.c.l.b16 %v97
    %v320 = vunpack.c.l.b16 %v98
    %v321 = vunpack.c.l.b16 %v99
    %v322 = vunpack.c.l.b16 %v100
    %v323 = vunpack.c.l.b16 %v101
    %v324 = vunpack.c.l.b16 %v102
    %v325 = vunpack.c.l.b16 %v103
    %v326 = vunpack.c.l.b16 %v104
    %v327 = vunpack.c.l.b16 %v105
    %v328 = vunpack.c.l.b16 %v106
    %v329 = vunpack.c.l.b16 %v107
    %v330 = vunpack.c.l.b16 %v108
    %v331 = vunpack.c.l.b16 %v109
    %v332 = vunpack.c.l.b16 %v110
    %v333 = vunpack.c.l.b16 %v111
    %v334 = vunpack.c.l.b16 %v112
    %v335 = vunpack.c.l.b16 %v113
    %v336 = vunpack.c.l.b16 %v114
    %v337 = vunpack.c.l.b16 %v115
    %v338 = vunpack.c.l.b16 %v116
    %v339 = vunpack.c.l.b16 %v117
    %v340 = vunpack.c.l.b16 %v118
    %v341 = vunpack.c.l.b16 %v119
    %v342 = vunpack.c.l.b16 %v120
    %v343 = vunpack.c.l.b16 %v121
    %v344 = vunpack.c.l.b16 %v122
    %v345 = vunpack.c.l.b16 %v123
    %v346 = vunpack.c.l.b16 %v124
    %v347 = vunpack.c.l.b16 %v125
    %v348 = vunpack.c.l.b16 %v126
    %v349 = vunpack.c.l.b16 %v127
    %v350 = vunpack.c.l.b16 %v128
    %v351 = vunpack.c.l.b16 %v129
    %v352 = vunpack.c.l.b16 %v130
    %v353 = vunpack.c.l.b16 %v131
    %v354 = vunpack.c.l.b16 %v132
    %v355 = vunpack.c.l.b16 %v133
    %v356 = vunpack.c.l.b16 %v134
    %v357 = vunpack.c.l.b16 %v135
    %v358 = vunpack.c.l.b16 %v136
    %v359 = vpack.c.b16 %v264, %v263
    %v360 = vpack.c.b16 %v266, %v265
    %v361 = vpack.c.b16 %v268, %v267
    %v362 = vpack.c.b16 %v270, %v269
    %v363 = vpack.c.b16 %v272, %v271
    %v364 = vpack.c.b16 %v274, %v273
    %v365 = vpack.c.b16 %v276, %v275
    %v366 = vpack.c.b16 %v278, %v277
    %v367 = vpack.c.b16 %v280, %v279
    %v368 = vpack.c.b16 %v282, %v281
    %v369 = vpack.c.b16 %v284, %v283
    %v370 = vpack.c.b16 %v286, %v285
    %v371 = vpack.c.b16 %v288, %v287
    %v372 = vpack.c.b16 %v290, %v289
    %v373 = vpack.c.b16 %v292, %v291
    %v374 = vpack.c.b16 %v294, %v293
    %v375 = vpack.c.b16 %v296, %v295
    %v376 = vpack.c.b16 %v298, %v297
    %v377 = vpack.c.b16 %v300, %v299
    %v378 = vpack.c.b16 %v302, %v301
    %v379 = vpack.c.b16 %v304, %v303
    %v380 = vpack.c.b16 %v306, %v305
    %v381 = vpack.c.b16 %v308, %v307
    %v382 = vpack.c.b16 %v310, %v309
    %v383 = vpack.c.b16 %v312, %v311
    %v384 = vpack.c.b16 %v314, %v313
    %v385 = vpack.c.b16 %v316, %v315
    %v386 = vpack.c.b16 %v318, %v317
    %v387 = vpack.c.b16 %v320, %v319
    %v388 = vpack.c.b16 %v322, %v321
    %v389 = vpack.c.b16 %v324, %v323
    %v390 = vpack.c.b16 %v326, %v325
    %v391 = vpack.c.b16 %v328, %v327
    %v392 = vpack.c.b16 %v330, %v329
    %v393 = vpack.c.b16 %v332, %v331
    %v394 = vpack.c.b16 %v334, %v333
    %v395 = vpack.c.b16 %v336, %v335
    %v396 = vpack.c.b16 %v338, %v337
    %v397 = vpack.c.b16 %v340, %v339
    %v398 = vpack.c.b16 %v342, %v341
    %v399 = vpack.c.b16 %v344, %v343
    %v400 = vpack.c.b16 %v346, %v345
    %v401 = vpack.c.b16 %v348, %v347
    %v402 = vpack.c.b16 %v350, %v349
    %v403 = vpack.c.b16 %v352, %v351
    %v404 = vpack.c.b16 %v354, %v353
    %v405 = vpack.c.b16 %v356, %v355
    %v406 = vpack.c.b16 %v358, %v357
    %455 = vmatprep.subr.bf16.mxu0 0
    %456 = vmatpush1.bf16.msra.mxu0 %v366
    %457 = vmatprep.subr.bf16.mxu0 0
    %458 = vmatpush1.bf16.msra.mxu0 %v365
    %459 = vmatprep.subr.bf16.mxu0 0
    %460 = vmatpush1.bf16.msra.mxu0 %v364
    %461 = vmatprep.subr.bf16.mxu0 0
    %462 = vmatpush1.bf16.msra.mxu0 %v363
    %463 = vmatprep.subr.bf16.mxu0 0
    %464 = vmatpush1.bf16.msra.mxu0 %v362
    %465 = vmatprep.subr.bf16.mxu0 0
    %466 = vmatpush1.bf16.msra.mxu0 %v361
    %467 = vmatprep.subr.bf16.mxu0 0
    %468 = vmatpush1.bf16.msra.mxu0 %v360
    %469 = vmatprep.subr.bf16.mxu0 0
    %470 = vmatpush1.bf16.msra.mxu0 %v359
    %471 = vmatprep.subr.bf16.mxu0 0
    %472 = vmatpush2.bf16.msra.mxu0 %v374
    %473 = vmatprep.subr.bf16.mxu0 0
    %474 = vmatpush2.bf16.msra.mxu0 %v373
    %475 = vmatprep.subr.bf16.mxu0 0
    %476 = vmatpush2.bf16.msra.mxu0 %v372
    %477 = vmatprep.subr.bf16.mxu0 0
    %478 = vmatpush2.bf16.msra.mxu0 %v371
    %479 = vmatprep.subr.bf16.mxu0 0
    %480 = vmatpush2.bf16.msra.mxu0 %v370
    %481 = vmatprep.subr.bf16.mxu0 0
    %482 = vmatpush2.bf16.msra.mxu0 %v369
    %483 = vmatprep.subr.bf16.mxu0 0
    %484 = vmatpush2.bf16.msra.mxu0 %v368
    %485 = vmatprep.subr.bf16.mxu0 0
    %486 = vmatpush2.bf16.msra.mxu0 %v367
    %487 = vmatprep.mubr.bf16.mxu0 %v156
    %488 = vmatmul.mubr.bf16.gmra.mxu0 %v155
    %v489 = vpop.f32.mrf.mxu0
    %v490 = vadd.f32 0.0, %v489
    %v491 = vpop.f32.mrf.mxu0
    %v492 = vpop.f32.mrf.mxu0
    %v493 = vadd.f32 0.0, %v492
    %v494 = vpop.f32.mrf.mxu0
    %495 = vdwg.mxu0
    %496 = vmatprep.subr.bf16.mxu0 0
    %497 = vmatpush1.bf16.msra.mxu0 %v382
    %498 = vmatprep.subr.bf16.mxu0 0
    %499 = vmatpush1.bf16.msra.mxu0 %v381
    %500 = vmatprep.subr.bf16.mxu0 0
    %501 = vmatpush1.bf16.msra.mxu0 %v380
    %502 = vmatprep.subr.bf16.mxu0 0
    %503 = vmatpush1.bf16.msra.mxu0 %v379
    %504 = vmatprep.subr.bf16.mxu0 0
    %505 = vmatpush1.bf16.msra.mxu0 %v378
    %506 = vmatprep.subr.bf16.mxu0 0
    %507 = vmatpush1.bf16.msra.mxu0 %v377
    %508 = vmatprep.subr.bf16.mxu0 0
    %509 = vmatpush1.bf16.msra.mxu0 %v376
    %510 = vmatprep.subr.bf16.mxu0 0
    %511 = vmatpush1.bf16.msra.mxu0 %v375
    %512 = vmatprep.subr.bf16.mxu0 0
    %513 = vmatpush2.bf16.msra.mxu0 %v390
    %514 = vmatprep.subr.bf16.mxu0 0
    %515 = vmatpush2.bf16.msra.mxu0 %v389
    %516 = vmatprep.subr.bf16.mxu0 0
    %517 = vmatpush2.bf16.msra.mxu0 %v388
    %518 = vmatprep.subr.bf16.mxu0 0
    %519 = vmatpush2.bf16.msra.mxu0 %v387
    %520 = vmatprep.subr.bf16.mxu0 0
    %521 = vmatpush2.bf16.msra.mxu0 %v386
    %522 = vmatprep.subr.bf16.mxu0 0
    %523 = vmatpush2.bf16.msra.mxu0 %v385
    %524 = vmatprep.subr.bf16.mxu0 0
    %525 = vmatpush2.bf16.msra.mxu0 %v384
    %526 = vmatprep.subr.bf16.mxu0 0
    %527 = vmatpush2.bf16.msra.mxu0 %v383
    %528 = vmatprep.mubr.bf16.mxu0 %v158
    %529 = vmatmul.mubr.bf16.gmra.mxu0 %v157
    %v530 = vpop.f32.mrf.mxu0
    %v531 = vadd.f32 %v490, %v530
    %v532 = vpop.f32.mrf.mxu0
    %v533 = vpop.f32.mrf.mxu0
    %v534 = vadd.f32 %v493, %v533
    %v535 = vpop.f32.mrf.mxu0
    %536 = vdwg.mxu0
    %537 = vmatprep.subr.bf16.mxu0 0
    %538 = vmatpush1.bf16.msra.mxu0 %v398
    %539 = vmatprep.subr.bf16.mxu0 0
    %540 = vmatpush1.bf16.msra.mxu0 %v397
    %541 = vmatprep.subr.bf16.mxu0 0
    %542 = vmatpush1.bf16.msra.mxu0 %v396
    %543 = vmatprep.subr.bf16.mxu0 0
    %544 = vmatpush1.bf16.msra.mxu0 %v395
    %545 = vmatprep.subr.bf16.mxu0 0
    %546 = vmatpush1.bf16.msra.mxu0 %v394
    %547 = vmatprep.subr.bf16.mxu0 0
    %548 = vmatpush1.bf16.msra.mxu0 %v393
    %549 = vmatprep.subr.bf16.mxu0 0
    %550 = vmatpush1.bf16.msra.mxu0 %v392
    %551 = vmatprep.subr.bf16.mxu0 0
    %552 = vmatpush1.bf16.msra.mxu0 %v391
    %553 = vmatprep.subr.bf16.mxu0 0
    %554 = vmatpush2.bf16.msra.mxu0 %v406
    %555 = vmatprep.subr.bf16.mxu0 0
    %556 = vmatpush2.bf16.msra.mxu0 %v405
    %557 = vmatprep.subr.bf16.mxu0 0
    %558 = vmatpush2.bf16.msra.mxu0 %v404
    %559 = vmatprep.subr.bf16.mxu0 0
    %560 = vmatpush2.bf16.msra.mxu0 %v403
    %561 = vmatprep.subr.bf16.mxu0 0
    %562 = vmatpush2.bf16.msra.mxu0 %v402
    %563 = vmatprep.subr.bf16.mxu0 0
    %564 = vmatpush2.bf16.msra.mxu0 %v401
    %565 = vmatprep.subr.bf16.mxu0 0
    %566 = vmatpush2.bf16.msra.mxu0 %v400
    %567 = vmatprep.subr.bf16.mxu0 0
    %568 = vmatpush2.bf16.msra.mxu0 %v399
    %569 = vmatprep.mubr.bf16.mxu0 %v160
    %570 = vmatmul.mubr.bf16.gmra.mxu0 %v159
    %v571 = vpop.f32.mrf.mxu0
    %v572 = vadd.f32 %v531, %v571
    %v573 = vpop.f32.mrf.mxu0
    %v574 = vpop.f32.mrf.mxu0
    %v575 = vadd.f32 %v534, %v574
    %v576 = vpop.f32.mrf.mxu0
    %577 = vdwg.mxu0
    %v578 = vld [vmem:[%s4] sm:$0xff]
    %v579 = vadd.f32 %v572, %v578
    %v580 = vadd.f32 %v575, %v578
    %v581 = vlaneseq
    %v582 = vand.u32 %v581, 127
    %vm583 = vcmp.lt.s32.totalorder %v582, 5
    %v584 = vsel %vm583, 0.0, -1e+30
    %s585 = scalar_lea.vmem %s4, 32
    %v586 = vld [vmem:[%s585] ss:$8 sm:$0xf]
    %s587 = scalar_lea.vmem %s4, 33
    %v588 = vld [vmem:[%s587] ss:$8 sm:$0xf]
    %vm589 = vcmask 523264
    %v590 = vsel %vm589, %v579, 0.0
    %591 = vadd.xlane.f32.xlu0 %v590
    %v592 = vpop.xlane.xlu0 %591
    %v593 = vsel %vm589, %v580, 0.0
    %594 = vadd.xlane.f32.xlu0 %v593
    %v595 = vpop.xlane.xlu0 %594
    %v596 = vrcp.pop 64.0
    %v597 = vmul.f32 %v592, %v596
    %v598 = vmul.f32 %v595, %v596
    %v599 = vsub.f32 %v579, %v597
    %v600 = vsub.f32 %v580, %v598
    %v601 = vmul.f32 %v599, %v599
    %v602 = vmul.f32 %v600, %v600
    %v603 = vsel %vm589, %v601, 0.0
    %604 = vadd.xlane.f32.xlu0 %v603
    %v605 = vpop.xlane.xlu0 %604
    %v606 = vsel %vm589, %v602, 0.0
    %607 = vadd.xlane.f32.xlu0 %v606
    %v608 = vpop.xlane.xlu0 %607
    %v609 = vmul.f32 %v605, %v596
    %v610 = vmul.f32 %v608, %v596
    %v611 = vadd.f32 %v609, 1e-12
    %v612 = vadd.f32 %v610, 1e-12
    %v613 = vrsqrt.pop %v611
    %v614 = vrsqrt.pop %v612
    %v615 = vmul.f32 %v599, %v613
    %v616 = vmul.f32 %v600, %v614
    %v618 = vlaneseq
    %v619 = vshrl.u32 %v618, 7
    %v620 = vsub.s32 0, %v619
    %v621 = vrot.slane %v586, %v620
    %v623 = vmul.f32 %v615, %v621
    %v624 = vmul.f32 %v616, %v621
    %v626 = vlaneseq
    %v627 = vshrl.u32 %v626, 7
    %v628 = vsub.s32 0, %v627
    %v629 = vrot.slane %v588, %v628
    %v631 = vadd.f32 %v623, %v629
    %v632 = vadd.f32 %v624, %v629
    %v633 = vld [vmem:[#allocation2] sm:$0xff]
    %v634 = vld [vmem:[#allocation2 + $0x8] sm:$0xff]
    %v635 = vld [vmem:[#allocation2 + $0x10] sm:$0xff]
    %v636 = vld [vmem:[#allocation2 + $0x18] sm:$0xff]
    %v637 = vld [vmem:[#allocation2 + $0x20] sm:$0xff]
    %v638 = vld [vmem:[#allocation2 + $0x28] sm:$0xff]
    %v639 = vld [vmem:[#allocation2 + $0x30] sm:$0xff]
    %v640 = vld [vmem:[#allocation2 + $0x38] sm:$0xff]
    %v641 = vld [vmem:[#allocation2 + $0x40] sm:$0xff]
    %v642 = vld [vmem:[#allocation2 + $0x48] sm:$0xff]
    %v643 = vld [vmem:[#allocation2 + $0x50] sm:$0xff]
    %v644 = vld [vmem:[#allocation2 + $0x58] sm:$0xff]
    %v645 = vld [vmem:[#allocation2 + $0x60] sm:$0xff]
    %v646 = vld [vmem:[#allocation2 + $0x68] sm:$0xff]
    %v647 = vld [vmem:[#allocation2 + $0x70] sm:$0xff]
    %v648 = vld [vmem:[#allocation2 + $0x78] sm:$0xff]
    %s649 = scalar_lea.vmem %s4, 34
    %v650 = vld [vmem:[%s649] ss:$8 sm:$0xf]
    %v652 = vlaneseq
    %v653 = vshrl.u32 %v652, 7
    %v654 = vsub.s32 0, %v653
    %v655 = vrot.slane %v650, %v654
    %v656 = vlaneseq
    %v657 = vshrl.u32 %v656, 7
    %v658 = vsub.s32 1, %v657
    %v659 = vrot.slane %v650, %v658
    %v663 = vsel %vm589, %v631, 0
    %v666 = vsel %vm589, %v632, 0
    %668 = vmatprep.subr.mxu0 0.0
    %669 = vmatpush1.msra.mxu0 0.0
    %670 = vmatprep.subr.mxu0 0.0
    %671 = vmatpush1.msra.mxu0 0.0
    %672 = vmatprep.subr.mxu0 0.0
    %673 = vmatpush1.msra.mxu0 0.0
    %674 = vmatprep.subr.mxu0 0.0
    %675 = vmatpush1.msra.mxu0 0.0
    %676 = vmatprep.subr.mxu0 0.0
    %677 = vmatpush1.msra.mxu0 0.0
    %678 = vmatprep.subr.mxu0 0.0
    %679 = vmatpush1.msra.mxu0 0.0
    %680 = vmatprep.subr.mxu0 0.0
    %681 = vmatpush1.msra.mxu0 0.0
    %682 = vmatprep.subr.mxu0 0.0
    %683 = vmatpush1.msra.mxu0 0.0
    %684 = vmatprep.subr.mxu0 %v648
    %685 = vmatpush1.msra.mxu0 %v647
    %686 = vmatprep.subr.mxu0 %v646
    %687 = vmatpush1.msra.mxu0 %v645
    %688 = vmatprep.subr.mxu0 %v644
    %689 = vmatpush1.msra.mxu0 %v643
    %690 = vmatprep.subr.mxu0 %v642
    %691 = vmatpush1.msra.mxu0 %v641
    %692 = vmatprep.subr.mxu0 %v640
    %693 = vmatpush1.msra.mxu0 %v639
    %694 = vmatprep.subr.mxu0 %v638
    %695 = vmatpush1.msra.mxu0 %v637
    %696 = vmatprep.subr.mxu0 %v636
    %697 = vmatpush1.msra.mxu0 %v635
    %698 = vmatprep.subr.mxu0 %v634
    %699 = vmatpush1.msra.mxu0 %v633
    %700 = vmatprep.subr.mxu0 0.0
    %701 = vmatpush2.msra.mxu0 0.0
    %702 = vmatprep.subr.mxu0 0.0
    %703 = vmatpush2.msra.mxu0 0.0
    %704 = vmatprep.subr.mxu0 0.0
    %705 = vmatpush2.msra.mxu0 0.0
    %706 = vmatprep.subr.mxu0 0.0
    %707 = vmatpush2.msra.mxu0 0.0
    %708 = vmatprep.subr.mxu0 0.0
    %709 = vmatpush2.msra.mxu0 0.0
    %710 = vmatprep.subr.mxu0 0.0
    %711 = vmatpush2.msra.mxu0 0.0
    %712 = vmatprep.subr.mxu0 0.0
    %713 = vmatpush2.msra.mxu0 0.0
    %714 = vmatprep.subr.mxu0 0.0
    %715 = vmatpush2.msra.mxu0 0.0
    %716 = vmatprep.subr.mxu0 0.0
    %717 = vmatpush2.msra.mxu0 0.0
    %718 = vmatprep.subr.mxu0 0.0
    %719 = vmatpush2.msra.mxu0 0.0
    %720 = vmatprep.subr.mxu0 0.0
    %721 = vmatpush2.msra.mxu0 0.0
    %722 = vmatprep.subr.mxu0 0.0
    %723 = vmatpush2.msra.mxu0 0.0
    %724 = vmatprep.subr.mxu0 0.0
    %725 = vmatpush2.msra.mxu0 0.0
    %726 = vmatprep.subr.mxu0 0.0
    %727 = vmatpush2.msra.mxu0 0.0
    %728 = vmatprep.subr.mxu0 0.0
    %729 = vmatpush2.msra.mxu0 0.0
    %730 = vmatprep.subr.mxu0 0.0
    %731 = vmatpush2.msra.mxu0 0.0
    %732 = vmatprep.mubr.f32.mxu0 0.0
    %733 = vmatmul.mubr.f32.gmra.mxu0 %v663
    %v734 = vpop.f32.mrf.mxu0
    %v735 = vadd.f32 %v655, %v734
    %v736 = vpop.f32.mrf.mxu0
    %v737 = vadd.f32 %v659, %v736
    %738 = vmatprep.mubr.f32.mxu0 0.0
    %739 = vmatmul.mubr.f32.gmra.mxu0 %v666
    %v740 = vpop.f32.mrf.mxu0
    %v741 = vadd.f32 %v655, %v740
    %v742 = vpop.f32.mrf.mxu0
    %v743 = vadd.f32 %v659, %v742
    %744 = vdwg.mxu0
    %747 = vrot.lane.b32.xlu0 %v735, 112
    %v748 = vpop.permute.xlu0 %747
    %749 = vrot.lane.b32.xlu0 %v741, 112
    %v750 = vpop.permute.xlu0 %749
    %751 = vrot.lane.b32.xlu0 %v735, 96
    %v752 = vpop.permute.xlu0 %751
    %753 = vrot.lane.b32.xlu0 %v741, 96
    %v754 = vpop.permute.xlu0 %753
    %755 = vrot.lane.b32.xlu0 %v735, 80
    %v756 = vpop.permute.xlu0 %755
    %757 = vrot.lane.b32.xlu0 %v741, 80
    %v758 = vpop.permute.xlu0 %757
    %761 = vrot.lane.b32.xlu0 %v737, 112
    %v762 = vpop.permute.xlu0 %761
    %763 = vrot.lane.b32.xlu0 %v743, 112
    %v764 = vpop.permute.xlu0 %763
    %767 = vrot.lane.b32.xlu0 %v737, 96
    %v768 = vpop.permute.xlu0 %767
    %769 = vrot.lane.b32.xlu0 %v743, 96
    %v770 = vpop.permute.xlu0 %769
    %773 = vrot.lane.b32.xlu0 %v737, 80
    %v774 = vpop.permute.xlu0 %773
    %775 = vrot.lane.b32.xlu0 %v743, 80
    %v776 = vpop.permute.xlu0 %775
    %779 = vrot.lane.b32.xlu0 %v735, 64
    %v780 = vpop.permute.xlu0 %779
    %vm781 = vcmask 130048
    %v782 = vsel %vm781, %v735, 0
    %v784 = vsel %vm781, %v780, 0
    %786 = vmatprep.subr.mxu0 0.0
    %787 = vmatpush1.xpose.msra.mxu0 0.0
    %788 = vmatprep.subr.mxu0 0.0
    %789 = vmatpush1.xpose.msra.mxu0 0.0
    %790 = vmatprep.subr.mxu0 0.0
    %791 = vmatpush1.xpose.msra.mxu0 0.0
    %792 = vmatprep.subr.mxu0 0.0
    %793 = vmatpush1.xpose.msra.mxu0 0.0
    %794 = vmatprep.subr.mxu0 0.0
    %795 = vmatpush1.xpose.msra.mxu0 0.0
    %796 = vmatprep.subr.mxu0 0.0
    %797 = vmatpush1.xpose.msra.mxu0 0.0
    %798 = vmatprep.subr.mxu0 0.0
    %799 = vmatpush1.xpose.msra.mxu0 0.0
    %800 = vmatprep.subr.mxu0 0.0
    %801 = vmatpush1.xpose.msra.mxu0 0.0
    %802 = vmatprep.subr.mxu0 0.0
    %803 = vmatpush1.xpose.msra.mxu0 0.0
    %804 = vmatprep.subr.mxu0 0.0
    %805 = vmatpush1.xpose.msra.mxu0 0.0
    %806 = vmatprep.subr.mxu0 0.0
    %807 = vmatpush1.xpose.msra.mxu0 0.0
    %808 = vmatprep.subr.mxu0 0.0
    %809 = vmatpush1.xpose.msra.mxu0 0.0
    %810 = vmatprep.subr.mxu0 0.0
    %811 = vmatpush1.xpose.msra.mxu0 0.0
    %812 = vmatprep.subr.mxu0 0.0
    %813 = vmatpush1.xpose.msra.mxu0 0.0
    %814 = vmatprep.subr.mxu0 0.0
    %815 = vmatpush1.xpose.msra.mxu0 0.0
    %816 = vmatprep.subr.mxu0 0.0
    %817 = vmatpush1.xpose.msra.mxu0 %v784
    %818 = vmatprep.subr.mxu0 0.0
    %819 = vmatpush2.xpose.msra.mxu0 0.0
    %820 = vmatprep.subr.mxu0 0.0
    %821 = vmatpush2.xpose.msra.mxu0 0.0
    %822 = vmatprep.subr.mxu0 0.0
    %823 = vmatpush2.xpose.msra.mxu0 0.0
    %824 = vmatprep.subr.mxu0 0.0
    %825 = vmatpush2.xpose.msra.mxu0 0.0
    %826 = vmatprep.subr.mxu0 0.0
    %827 = vmatpush2.xpose.msra.mxu0 0.0
    %828 = vmatprep.subr.mxu0 0.0
    %829 = vmatpush2.xpose.msra.mxu0 0.0
    %830 = vmatprep.subr.mxu0 0.0
    %831 = vmatpush2.xpose.msra.mxu0 0.0
    %832 = vmatprep.subr.mxu0 0.0
    %833 = vmatpush2.xpose.msra.mxu0 0.0
    %834 = vmatprep.subr.mxu0 0.0
    %835 = vmatpush2.xpose.msra.mxu0 0.0
    %836 = vmatprep.subr.mxu0 0.0
    %837 = vmatpush2.xpose.msra.mxu0 0.0
    %838 = vmatprep.subr.mxu0 0.0
    %839 = vmatpush2.xpose.msra.mxu0 0.0
    %840 = vmatprep.subr.mxu0 0.0
    %841 = vmatpush2.xpose.msra.mxu0 0.0
    %842 = vmatprep.subr.mxu0 0.0
    %843 = vmatpush2.xpose.msra.mxu0 0.0
    %844 = vmatprep.subr.mxu0 0.0
    %845 = vmatpush2.xpose.msra.mxu0 0.0
    %846 = vmatprep.subr.mxu0 0.0
    %847 = vmatpush2.xpose.msra.mxu0 0.0
    %848 = vmatprep.subr.mxu0 0.0
    %849 = vmatpush2.xpose.msra.mxu0 0.0
    %850 = vmatprep.mubr.f32.mxu0 0.0
    %851 = vmatmul.mubr.f32.gmra.mxu0 %v782
    %v852 = vpop.f32.mrf.mxu0
    %v853 = vadd.f32 0.0, %v852
    %v854 = vpop.f32.mrf.mxu0
    %855 = vdwg.mxu0
    %856 = vrot.lane.b32.xlu0 %v741, 64
    %v857 = vpop.permute.xlu0 %856
    %v858 = vsel %vm781, %v741, 0
    %v860 = vsel %vm781, %v857, 0
    %862 = vmatprep.subr.mxu0 0.0
    %863 = vmatpush1.xpose.msra.mxu0 0.0
    %864 = vmatprep.subr.mxu0 0.0
    %865 = vmatpush1.xpose.msra.mxu0 0.0
    %866 = vmatprep.subr.mxu0 0.0
    %867 = vmatpush1.xpose.msra.mxu0 0.0
    %868 = vmatprep.subr.mxu0 0.0
    %869 = vmatpush1.xpose.msra.mxu0 0.0
    %870 = vmatprep.subr.mxu0 0.0
    %871 = vmatpush1.xpose.msra.mxu0 0.0
    %872 = vmatprep.subr.mxu0 0.0
    %873 = vmatpush1.xpose.msra.mxu0 0.0
    %874 = vmatprep.subr.mxu0 0.0
    %875 = vmatpush1.xpose.msra.mxu0 0.0
    %876 = vmatprep.subr.mxu0 0.0
    %877 = vmatpush1.xpose.msra.mxu0 0.0
    %878 = vmatprep.subr.mxu0 0.0
    %879 = vmatpush1.xpose.msra.mxu0 0.0
    %880 = vmatprep.subr.mxu0 0.0
    %881 = vmatpush1.xpose.msra.mxu0 0.0
    %882 = vmatprep.subr.mxu0 0.0
    %883 = vmatpush1.xpose.msra.mxu0 0.0
    %884 = vmatprep.subr.mxu0 0.0
    %885 = vmatpush1.xpose.msra.mxu0 0.0
    %886 = vmatprep.subr.mxu0 0.0
    %887 = vmatpush1.xpose.msra.mxu0 0.0
    %888 = vmatprep.subr.mxu0 0.0
    %889 = vmatpush1.xpose.msra.mxu0 0.0
    %890 = vmatprep.subr.mxu0 0.0
    %891 = vmatpush1.xpose.msra.mxu0 0.0
    %892 = vmatprep.subr.mxu0 0.0
    %893 = vmatpush1.xpose.msra.mxu0 %v860
    %894 = vmatprep.subr.mxu0 0.0
    %895 = vmatpush2.xpose.msra.mxu0 0.0
    %896 = vmatprep.subr.mxu0 0.0
    %897 = vmatpush2.xpose.msra.mxu0 0.0
    %898 = vmatprep.subr.mxu0 0.0
    %899 = vmatpush2.xpose.msra.mxu0 0.0
    %900 = vmatprep.subr.mxu0 0.0
    %901 = vmatpush2.xpose.msra.mxu0 0.0
    %902 = vmatprep.subr.mxu0 0.0
    %903 = vmatpush2.xpose.msra.mxu0 0.0
    %904 = vmatprep.subr.mxu0 0.0
    %905 = vmatpush2.xpose.msra.mxu0 0.0
    %906 = vmatprep.subr.mxu0 0.0
    %907 = vmatpush2.xpose.msra.mxu0 0.0
    %908 = vmatprep.subr.mxu0 0.0
    %909 = vmatpush2.xpose.msra.mxu0 0.0
    %910 = vmatprep.subr.mxu0 0.0
    %911 = vmatpush2.xpose.msra.mxu0 0.0
    %912 = vmatprep.subr.mxu0 0.0
    %913 = vmatpush2.xpose.msra.mxu0 0.0
    %914 = vmatprep.subr.mxu0 0.0
    %915 = vmatpush2.xpose.msra.mxu0 0.0
    %916 = vmatprep.subr.mxu0 0.0
    %917 = vmatpush2.xpose.msra.mxu0 0.0
    %918 = vmatprep.subr.mxu0 0.0
    %919 = vmatpush2.xpose.msra.mxu0 0.0
    %920 = vmatprep.subr.mxu0 0.0
    %921 = vmatpush2.xpose.msra.mxu0 0.0
    %922 = vmatprep.subr.mxu0 0.0
    %923 = vmatpush2.xpose.msra.mxu0 0.0
    %924 = vmatprep.subr.mxu0 0.0
    %925 = vmatpush2.xpose.msra.mxu0 0.0
    %926 = vmatprep.mubr.f32.mxu0 0.0
    %927 = vmatmul.mubr.f32.gmra.mxu0 %v858
    %v928 = vpop.f32.mrf.mxu0
    %v929 = vadd.f32 0.0, %v928
    %v930 = vpop.f32.mrf.mxu0
    %931 = vdwg.mxu0
    %932 = vrot.lane.b32.xlu0 %v748, 64
    %v933 = vpop.permute.xlu0 %932
    %v934 = vsel %vm781, %v748, 0
    %v936 = vsel %vm781, %v933, 0
    %938 = vmatprep.subr.mxu0 0.0
    %939 = vmatpush1.xpose.msra.mxu0 0.0
    %940 = vmatprep.subr.mxu0 0.0
    %941 = vmatpush1.xpose.msra.mxu0 0.0
    %942 = vmatprep.subr.mxu0 0.0
    %943 = vmatpush1.xpose.msra.mxu0 0.0
    %944 = vmatprep.subr.mxu0 0.0
    %945 = vmatpush1.xpose.msra.mxu0 0.0
    %946 = vmatprep.subr.mxu0 0.0
    %947 = vmatpush1.xpose.msra.mxu0 0.0
    %948 = vmatprep.subr.mxu0 0.0
    %949 = vmatpush1.xpose.msra.mxu0 0.0
    %950 = vmatprep.subr.mxu0 0.0
    %951 = vmatpush1.xpose.msra.mxu0 0.0
    %952 = vmatprep.subr.mxu0 0.0
    %953 = vmatpush1.xpose.msra.mxu0 0.0
    %954 = vmatprep.subr.mxu0 0.0
    %955 = vmatpush1.xpose.msra.mxu0 0.0
    %956 = vmatprep.subr.mxu0 0.0
    %957 = vmatpush1.xpose.msra.mxu0 0.0
    %958 = vmatprep.subr.mxu0 0.0
    %959 = vmatpush1.xpose.msra.mxu0 0.0
    %960 = vmatprep.subr.mxu0 0.0
    %961 = vmatpush1.xpose.msra.mxu0 0.0
    %962 = vmatprep.subr.mxu0 0.0
    %963 = vmatpush1.xpose.msra.mxu0 0.0
    %964 = vmatprep.subr.mxu0 0.0
    %965 = vmatpush1.xpose.msra.mxu0 0.0
    %966 = vmatprep.subr.mxu0 0.0
    %967 = vmatpush1.xpose.msra.mxu0 0.0
    %968 = vmatprep.subr.mxu0 0.0
    %969 = vmatpush1.xpose.msra.mxu0 %v936
    %970 = vmatprep.subr.mxu0 0.0
    %971 = vmatpush2.xpose.msra.mxu0 0.0
    %972 = vmatprep.subr.mxu0 0.0
    %973 = vmatpush2.xpose.msra.mxu0 0.0
    %974 = vmatprep.subr.mxu0 0.0
    %975 = vmatpush2.xpose.msra.mxu0 0.0
    %976 = vmatprep.subr.mxu0 0.0
    %977 = vmatpush2.xpose.msra.mxu0 0.0
    %978 = vmatprep.subr.mxu0 0.0
    %979 = vmatpush2.xpose.msra.mxu0 0.0
    %980 = vmatprep.subr.mxu0 0.0
    %981 = vmatpush2.xpose.msra.mxu0 0.0
    %982 = vmatprep.subr.mxu0 0.0
    %983 = vmatpush2.xpose.msra.mxu0 0.0
    %984 = vmatprep.subr.mxu0 0.0
    %985 = vmatpush2.xpose.msra.mxu0 0.0
    %986 = vmatprep.subr.mxu0 0.0
    %987 = vmatpush2.xpose.msra.mxu0 0.0
    %988 = vmatprep.subr.mxu0 0.0
    %989 = vmatpush2.xpose.msra.mxu0 0.0
    %990 = vmatprep.subr.mxu0 0.0
    %991 = vmatpush2.xpose.msra.mxu0 0.0
    %992 = vmatprep.subr.mxu0 0.0
    %993 = vmatpush2.xpose.msra.mxu0 0.0
    %994 = vmatprep.subr.mxu0 0.0
    %995 = vmatpush2.xpose.msra.mxu0 0.0
    %996 = vmatprep.subr.mxu0 0.0
    %997 = vmatpush2.xpose.msra.mxu0 0.0
    %998 = vmatprep.subr.mxu0 0.0
    %999 = vmatpush2.xpose.msra.mxu0 0.0
    %1000 = vmatprep.subr.mxu0 0.0
    %1001 = vmatpush2.xpose.msra.mxu0 0.0
    %1002 = vmatprep.mubr.f32.mxu0 0.0
    %1003 = vmatmul.mubr.f32.gmra.mxu0 %v934
    %v1004 = vpop.f32.mrf.mxu0
    %v1005 = vadd.f32 0.0, %v1004
    %v1006 = vpop.f32.mrf.mxu0
    %1007 = vdwg.mxu0
    %1008 = vrot.lane.b32.xlu0 %v750, 64
    %v1009 = vpop.permute.xlu0 %1008
    %v1010 = vsel %vm781, %v750, 0
    %v1012 = vsel %vm781, %v1009, 0
    %1014 = vmatprep.subr.mxu0 0.0
    %1015 = vmatpush1.xpose.msra.mxu0 0.0
    %1016 = vmatprep.subr.mxu0 0.0
    %1017 = vmatpush1.xpose.msra.mxu0 0.0
    %1018 = vmatprep.subr.mxu0 0.0
    %1019 = vmatpush1.xpose.msra.mxu0 0.0
    %1020 = vmatprep.subr.mxu0 0.0
    %1021 = vmatpush1.xpose.msra.mxu0 0.0
    %1022 = vmatprep.subr.mxu0 0.0
    %1023 = vmatpush1.xpose.msra.mxu0 0.0
    %1024 = vmatprep.subr.mxu0 0.0
    %1025 = vmatpush1.xpose.msra.mxu0 0.0
    %1026 = vmatprep.subr.mxu0 0.0
    %1027 = vmatpush1.xpose.msra.mxu0 0.0
    %1028 = vmatprep.subr.mxu0 0.0
    %1029 = vmatpush1.xpose.msra.mxu0 0.0
    %1030 = vmatprep.subr.mxu0 0.0
    %1031 = vmatpush1.xpose.msra.mxu0 0.0
    %1032 = vmatprep.subr.mxu0 0.0
    %1033 = vmatpush1.xpose.msra.mxu0 0.0
    %1034 = vmatprep.subr.mxu0 0.0
    %1035 = vmatpush1.xpose.msra.mxu0 0.0
    %1036 = vmatprep.subr.mxu0 0.0
    %1037 = vmatpush1.xpose.msra.mxu0 0.0
    %1038 = vmatprep.subr.mxu0 0.0
    %1039 = vmatpush1.xpose.msra.mxu0 0.0
    %1040 = vmatprep.subr.mxu0 0.0
    %1041 = vmatpush1.xpose.msra.mxu0 0.0
    %1042 = vmatprep.subr.mxu0 0.0
    %1043 = vmatpush1.xpose.msra.mxu0 0.0
    %1044 = vmatprep.subr.mxu0 0.0
    %1045 = vmatpush1.xpose.msra.mxu0 %v1012
    %1046 = vmatprep.subr.mxu0 0.0
    %1047 = vmatpush2.xpose.msra.mxu0 0.0
    %1048 = vmatprep.subr.mxu0 0.0
    %1049 = vmatpush2.xpose.msra.mxu0 0.0
    %1050 = vmatprep.subr.mxu0 0.0
    %1051 = vmatpush2.xpose.msra.mxu0 0.0
    %1052 = vmatprep.subr.mxu0 0.0
    %1053 = vmatpush2.xpose.msra.mxu0 0.0
    %1054 = vmatprep.subr.mxu0 0.0
    %1055 = vmatpush2.xpose.msra.mxu0 0.0
    %1056 = vmatprep.subr.mxu0 0.0
    %1057 = vmatpush2.xpose.msra.mxu0 0.0
    %1058 = vmatprep.subr.mxu0 0.0
    %1059 = vmatpush2.xpose.msra.mxu0 0.0
    %1060 = vmatprep.subr.mxu0 0.0
    %1061 = vmatpush2.xpose.msra.mxu0 0.0
    %1062 = vmatprep.subr.mxu0 0.0
    %1063 = vmatpush2.xpose.msra.mxu0 0.0
    %1064 = vmatprep.subr.mxu0 0.0
    %1065 = vmatpush2.xpose.msra.mxu0 0.0
    %1066 = vmatprep.subr.mxu0 0.0
    %1067 = vmatpush2.xpose.msra.mxu0 0.0
    %1068 = vmatprep.subr.mxu0 0.0
    %1069 = vmatpush2.xpose.msra.mxu0 0.0
    %1070 = vmatprep.subr.mxu0 0.0
    %1071 = vmatpush2.xpose.msra.mxu0 0.0
    %1072 = vmatprep.subr.mxu0 0.0
    %1073 = vmatpush2.xpose.msra.mxu0 0.0
    %1074 = vmatprep.subr.mxu0 0.0
    %1075 = vmatpush2.xpose.msra.mxu0 0.0
    %1076 = vmatprep.subr.mxu0 0.0
    %1077 = vmatpush2.xpose.msra.mxu0 0.0
    %1078 = vmatprep.mubr.f32.mxu0 0.0
    %1079 = vmatmul.mubr.f32.gmra.mxu0 %v1010
    %v1080 = vpop.f32.mrf.mxu0
    %v1081 = vadd.f32 0.0, %v1080
    %v1082 = vpop.f32.mrf.mxu0
    %1083 = vdwg.mxu0
    %1084 = vrot.lane.b32.xlu0 %v752, 64
    %v1085 = vpop.permute.xlu0 %1084
    %v1086 = vsel %vm781, %v752, 0
    %v1088 = vsel %vm781, %v1085, 0
    %1090 = vmatprep.subr.mxu0 0.0
    %1091 = vmatpush1.xpose.msra.mxu0 0.0
    %1092 = vmatprep.subr.mxu0 0.0
    %1093 = vmatpush1.xpose.msra.mxu0 0.0
    %1094 = vmatprep.subr.mxu0 0.0
    %1095 = vmatpush1.xpose.msra.mxu0 0.0
    %1096 = vmatprep.subr.mxu0 0.0
    %1097 = vmatpush1.xpose.msra.mxu0 0.0
    %1098 = vmatprep.subr.mxu0 0.0
    %1099 = vmatpush1.xpose.msra.mxu0 0.0
    %1100 = vmatprep.subr.mxu0 0.0
    %1101 = vmatpush1.xpose.msra.mxu0 0.0
    %1102 = vmatprep.subr.mxu0 0.0
    %1103 = vmatpush1.xpose.msra.mxu0 0.0
    %1104 = vmatprep.subr.mxu0 0.0
    %1105 = vmatpush1.xpose.msra.mxu0 0.0
    %1106 = vmatprep.subr.mxu0 0.0
    %1107 = vmatpush1.xpose.msra.mxu0 0.0
    %1108 = vmatprep.subr.mxu0 0.0
    %1109 = vmatpush1.xpose.msra.mxu0 0.0
    %1110 = vmatprep.subr.mxu0 0.0
    %1111 = vmatpush1.xpose.msra.mxu0 0.0
    %1112 = vmatprep.subr.mxu0 0.0
    %1113 = vmatpush1.xpose.msra.mxu0 0.0
    %1114 = vmatprep.subr.mxu0 0.0
    %1115 = vmatpush1.xpose.msra.mxu0 0.0
    %1116 = vmatprep.subr.mxu0 0.0
    %1117 = vmatpush1.xpose.msra.mxu0 0.0
    %1118 = vmatprep.subr.mxu0 0.0
    %1119 = vmatpush1.xpose.msra.mxu0 0.0
    %1120 = vmatprep.subr.mxu0 0.0
    %1121 = vmatpush1.xpose.msra.mxu0 %v1088
    %1122 = vmatprep.subr.mxu0 0.0
    %1123 = vmatpush2.xpose.msra.mxu0 0.0
    %1124 = vmatprep.subr.mxu0 0.0
    %1125 = vmatpush2.xpose.msra.mxu0 0.0
    %1126 = vmatprep.subr.mxu0 0.0
    %1127 = vmatpush2.xpose.msra.mxu0 0.0
    %1128 = vmatprep.subr.mxu0 0.0
    %1129 = vmatpush2.xpose.msra.mxu0 0.0
    %1130 = vmatprep.subr.mxu0 0.0
    %1131 = vmatpush2.xpose.msra.mxu0 0.0
    %1132 = vmatprep.subr.mxu0 0.0
    %1133 = vmatpush2.xpose.msra.mxu0 0.0
    %1134 = vmatprep.subr.mxu0 0.0
    %1135 = vmatpush2.xpose.msra.mxu0 0.0
    %1136 = vmatprep.subr.mxu0 0.0
    %1137 = vmatpush2.xpose.msra.mxu0 0.0
    %1138 = vmatprep.subr.mxu0 0.0
    %1139 = vmatpush2.xpose.msra.mxu0 0.0
    %1140 = vmatprep.subr.mxu0 0.0
    %1141 = vmatpush2.xpose.msra.mxu0 0.0
    %1142 = vmatprep.subr.mxu0 0.0
    %1143 = vmatpush2.xpose.msra.mxu0 0.0
    %1144 = vmatprep.subr.mxu0 0.0
    %1145 = vmatpush2.xpose.msra.mxu0 0.0
    %1146 = vmatprep.subr.mxu0 0.0
    %1147 = vmatpush2.xpose.msra.mxu0 0.0
    %1148 = vmatprep.subr.mxu0 0.0
    %1149 = vmatpush2.xpose.msra.mxu0 0.0
    %1150 = vmatprep.subr.mxu0 0.0
    %1151 = vmatpush2.xpose.msra.mxu0 0.0
    %1152 = vmatprep.subr.mxu0 0.0
    %1153 = vmatpush2.xpose.msra.mxu0 0.0
    %1154 = vmatprep.mubr.f32.mxu0 0.0
    %1155 = vmatmul.mubr.f32.gmra.mxu0 %v1086
    %v1156 = vpop.f32.mrf.mxu0
    %v1157 = vadd.f32 0.0, %v1156
    %v1158 = vpop.f32.mrf.mxu0
    %1159 = vdwg.mxu0
    %1160 = vrot.lane.b32.xlu0 %v754, 64
    %v1161 = vpop.permute.xlu0 %1160
    %v1162 = vsel %vm781, %v754, 0
    %v1164 = vsel %vm781, %v1161, 0
    %1166 = vmatprep.subr.mxu0 0.0
    %1167 = vmatpush1.xpose.msra.mxu0 0.0
    %1168 = vmatprep.subr.mxu0 0.0
    %1169 = vmatpush1.xpose.msra.mxu0 0.0
    %1170 = vmatprep.subr.mxu0 0.0
    %1171 = vmatpush1.xpose.msra.mxu0 0.0
    %1172 = vmatprep.subr.mxu0 0.0
    %1173 = vmatpush1.xpose.msra.mxu0 0.0
    %1174 = vmatprep.subr.mxu0 0.0
    %1175 = vmatpush1.xpose.msra.mxu0 0.0
    %1176 = vmatprep.subr.mxu0 0.0
    %1177 = vmatpush1.xpose.msra.mxu0 0.0
    %1178 = vmatprep.subr.mxu0 0.0
    %1179 = vmatpush1.xpose.msra.mxu0 0.0
    %1180 = vmatprep.subr.mxu0 0.0
    %1181 = vmatpush1.xpose.msra.mxu0 0.0
    %1182 = vmatprep.subr.mxu0 0.0
    %1183 = vmatpush1.xpose.msra.mxu0 0.0
    %1184 = vmatprep.subr.mxu0 0.0
    %1185 = vmatpush1.xpose.msra.mxu0 0.0
    %1186 = vmatprep.subr.mxu0 0.0
    %1187 = vmatpush1.xpose.msra.mxu0 0.0
    %1188 = vmatprep.subr.mxu0 0.0
    %1189 = vmatpush1.xpose.msra.mxu0 0.0
    %1190 = vmatprep.subr.mxu0 0.0
    %1191 = vmatpush1.xpose.msra.mxu0 0.0
    %1192 = vmatprep.subr.mxu0 0.0
    %1193 = vmatpush1.xpose.msra.mxu0 0.0
    %1194 = vmatprep.subr.mxu0 0.0
    %1195 = vmatpush1.xpose.msra.mxu0 0.0
    %1196 = vmatprep.subr.mxu0 0.0
    %1197 = vmatpush1.xpose.msra.mxu0 %v1164
    %1198 = vmatprep.subr.mxu0 0.0
    %1199 = vmatpush2.xpose.msra.mxu0 0.0
    %1200 = vmatprep.subr.mxu0 0.0
    %1201 = vmatpush2.xpose.msra.mxu0 0.0
    %1202 = vmatprep.subr.mxu0 0.0
    %1203 = vmatpush2.xpose.msra.mxu0 0.0
    %1204 = vmatprep.subr.mxu0 0.0
    %1205 = vmatpush2.xpose.msra.mxu0 0.0
    %1206 = vmatprep.subr.mxu0 0.0
    %1207 = vmatpush2.xpose.msra.mxu0 0.0
    %1208 = vmatprep.subr.mxu0 0.0
    %1209 = vmatpush2.xpose.msra.mxu0 0.0
    %1210 = vmatprep.subr.mxu0 0.0
    %1211 = vmatpush2.xpose.msra.mxu0 0.0
    %1212 = vmatprep.subr.mxu0 0.0
    %1213 = vmatpush2.xpose.msra.mxu0 0.0
    %1214 = vmatprep.subr.mxu0 0.0
    %1215 = vmatpush2.xpose.msra.mxu0 0.0
    %1216 = vmatprep.subr.mxu0 0.0
    %1217 = vmatpush2.xpose.msra.mxu0 0.0
    %1218 = vmatprep.subr.mxu0 0.0
    %1219 = vmatpush2.xpose.msra.mxu0 0.0
    %1220 = vmatprep.subr.mxu0 0.0
    %1221 = vmatpush2.xpose.msra.mxu0 0.0
    %1222 = vmatprep.subr.mxu0 0.0
    %1223 = vmatpush2.xpose.msra.mxu0 0.0
    %1224 = vmatprep.subr.mxu0 0.0
    %1225 = vmatpush2.xpose.msra.mxu0 0.0
    %1226 = vmatprep.subr.mxu0 0.0
    %1227 = vmatpush2.xpose.msra.mxu0 0.0
    %1228 = vmatprep.subr.mxu0 0.0
    %1229 = vmatpush2.xpose.msra.mxu0 0.0
    %1230 = vmatprep.mubr.f32.mxu0 0.0
    %1231 = vmatmul.mubr.f32.gmra.mxu0 %v1162
    %v1232 = vpop.f32.mrf.mxu0
    %v1233 = vadd.f32 0.0, %v1232
    %v1234 = vpop.f32.mrf.mxu0
    %1235 = vdwg.mxu0
    %1236 = vrot.lane.b32.xlu0 %v756, 64
    %v1237 = vpop.permute.xlu0 %1236
    %v1238 = vsel %vm781, %v756, 0
    %v1240 = vsel %vm781, %v1237, 0
    %1242 = vmatprep.subr.mxu0 0.0
    %1243 = vmatpush1.xpose.msra.mxu0 0.0
    %1244 = vmatprep.subr.mxu0 0.0
    %1245 = vmatpush1.xpose.msra.mxu0 0.0
    %1246 = vmatprep.subr.mxu0 0.0
    %1247 = vmatpush1.xpose.msra.mxu0 0.0
    %1248 = vmatprep.subr.mxu0 0.0
    %1249 = vmatpush1.xpose.msra.mxu0 0.0
    %1250 = vmatprep.subr.mxu0 0.0
    %1251 = vmatpush1.xpose.msra.mxu0 0.0
    %1252 = vmatprep.subr.mxu0 0.0
    %1253 = vmatpush1.xpose.msra.mxu0 0.0
    %1254 = vmatprep.subr.mxu0 0.0
    %1255 = vmatpush1.xpose.msra.mxu0 0.0
    %1256 = vmatprep.subr.mxu0 0.0
    %1257 = vmatpush1.xpose.msra.mxu0 0.0
    %1258 = vmatprep.subr.mxu0 0.0
    %1259 = vmatpush1.xpose.msra.mxu0 0.0
    %1260 = vmatprep.subr.mxu0 0.0
    %1261 = vmatpush1.xpose.msra.mxu0 0.0
    %1262 = vmatprep.subr.mxu0 0.0
    %1263 = vmatpush1.xpose.msra.mxu0 0.0
    %1264 = vmatprep.subr.mxu0 0.0
    %1265 = vmatpush1.xpose.msra.mxu0 0.0
    %1266 = vmatprep.subr.mxu0 0.0
    %1267 = vmatpush1.xpose.msra.mxu0 0.0
    %1268 = vmatprep.subr.mxu0 0.0
    %1269 = vmatpush1.xpose.msra.mxu0 0.0
    %1270 = vmatprep.subr.mxu0 0.0
    %1271 = vmatpush1.xpose.msra.mxu0 0.0
    %1272 = vmatprep.subr.mxu0 0.0
    %1273 = vmatpush1.xpose.msra.mxu0 %v1240
    %1274 = vmatprep.subr.mxu0 0.0
    %1275 = vmatpush2.xpose.msra.mxu0 0.0
    %1276 = vmatprep.subr.mxu0 0.0
    %1277 = vmatpush2.xpose.msra.mxu0 0.0
    %1278 = vmatprep.subr.mxu0 0.0
    %1279 = vmatpush2.xpose.msra.mxu0 0.0
    %1280 = vmatprep.subr.mxu0 0.0
    %1281 = vmatpush2.xpose.msra.mxu0 0.0
    %1282 = vmatprep.subr.mxu0 0.0
    %1283 = vmatpush2.xpose.msra.mxu0 0.0
    %1284 = vmatprep.subr.mxu0 0.0
    %1285 = vmatpush2.xpose.msra.mxu0 0.0
    %1286 = vmatprep.subr.mxu0 0.0
    %1287 = vmatpush2.xpose.msra.mxu0 0.0
    %1288 = vmatprep.subr.mxu0 0.0
    %1289 = vmatpush2.xpose.msra.mxu0 0.0
    %1290 = vmatprep.subr.mxu0 0.0
    %1291 = vmatpush2.xpose.msra.mxu0 0.0
    %1292 = vmatprep.subr.mxu0 0.0
    %1293 = vmatpush2.xpose.msra.mxu0 0.0
    %1294 = vmatprep.subr.mxu0 0.0
    %1295 = vmatpush2.xpose.msra.mxu0 0.0
    %1296 = vmatprep.subr.mxu0 0.0
    %1297 = vmatpush2.xpose.msra.mxu0 0.0
    %1298 = vmatprep.subr.mxu0 0.0
    %1299 = vmatpush2.xpose.msra.mxu0 0.0
    %1300 = vmatprep.subr.mxu0 0.0
    %1301 = vmatpush2.xpose.msra.mxu0 0.0
    %1302 = vmatprep.subr.mxu0 0.0
    %1303 = vmatpush2.xpose.msra.mxu0 0.0
    %1304 = vmatprep.subr.mxu0 0.0
    %1305 = vmatpush2.xpose.msra.mxu0 0.0
    %1306 = vmatprep.mubr.f32.mxu0 0.0
    %1307 = vmatmul.mubr.f32.gmra.mxu0 %v1238
    %v1308 = vpop.f32.mrf.mxu0
    %v1309 = vadd.f32 0.0, %v1308
    %v1310 = vpop.f32.mrf.mxu0
    %1311 = vdwg.mxu0
    %1312 = vrot.lane.b32.xlu0 %v758, 64
    %v1313 = vpop.permute.xlu0 %1312
    %v1314 = vsel %vm781, %v758, 0
    %v1316 = vsel %vm781, %v1313, 0
    %1318 = vmatprep.subr.mxu0 0.0
    %1319 = vmatpush1.xpose.msra.mxu0 0.0
    %1320 = vmatprep.subr.mxu0 0.0
    %1321 = vmatpush1.xpose.msra.mxu0 0.0
    %1322 = vmatprep.subr.mxu0 0.0
    %1323 = vmatpush1.xpose.msra.mxu0 0.0
    %1324 = vmatprep.subr.mxu0 0.0
    %1325 = vmatpush1.xpose.msra.mxu0 0.0
    %1326 = vmatprep.subr.mxu0 0.0
    %1327 = vmatpush1.xpose.msra.mxu0 0.0
    %1328 = vmatprep.subr.mxu0 0.0
    %1329 = vmatpush1.xpose.msra.mxu0 0.0
    %1330 = vmatprep.subr.mxu0 0.0
    %1331 = vmatpush1.xpose.msra.mxu0 0.0
    %1332 = vmatprep.subr.mxu0 0.0
    %1333 = vmatpush1.xpose.msra.mxu0 0.0
    %1334 = vmatprep.subr.mxu0 0.0
    %1335 = vmatpush1.xpose.msra.mxu0 0.0
    %1336 = vmatprep.subr.mxu0 0.0
    %1337 = vmatpush1.xpose.msra.mxu0 0.0
    %1338 = vmatprep.subr.mxu0 0.0
    %1339 = vmatpush1.xpose.msra.mxu0 0.0
    %1340 = vmatprep.subr.mxu0 0.0
    %1341 = vmatpush1.xpose.msra.mxu0 0.0
    %1342 = vmatprep.subr.mxu0 0.0
    %1343 = vmatpush1.xpose.msra.mxu0 0.0
    %1344 = vmatprep.subr.mxu0 0.0
    %1345 = vmatpush1.xpose.msra.mxu0 0.0
    %1346 = vmatprep.subr.mxu0 0.0
    %1347 = vmatpush1.xpose.msra.mxu0 0.0
    %1348 = vmatprep.subr.mxu0 0.0
    %1349 = vmatpush1.xpose.msra.mxu0 %v1316
    %1350 = vmatprep.subr.mxu0 0.0
    %1351 = vmatpush2.xpose.msra.mxu0 0.0
    %1352 = vmatprep.subr.mxu0 0.0
    %1353 = vmatpush2.xpose.msra.mxu0 0.0
    %1354 = vmatprep.subr.mxu0 0.0
    %1355 = vmatpush2.xpose.msra.mxu0 0.0
    %1356 = vmatprep.subr.mxu0 0.0
    %1357 = vmatpush2.xpose.msra.mxu0 0.0
    %1358 = vmatprep.subr.mxu0 0.0
    %1359 = vmatpush2.xpose.msra.mxu0 0.0
    %1360 = vmatprep.subr.mxu0 0.0
    %1361 = vmatpush2.xpose.msra.mxu0 0.0
    %1362 = vmatprep.subr.mxu0 0.0
    %1363 = vmatpush2.xpose.msra.mxu0 0.0
    %1364 = vmatprep.subr.mxu0 0.0
    %1365 = vmatpush2.xpose.msra.mxu0 0.0
    %1366 = vmatprep.subr.mxu0 0.0
    %1367 = vmatpush2.xpose.msra.mxu0 0.0
    %1368 = vmatprep.subr.mxu0 0.0
    %1369 = vmatpush2.xpose.msra.mxu0 0.0
    %1370 = vmatprep.subr.mxu0 0.0
    %1371 = vmatpush2.xpose.msra.mxu0 0.0
    %1372 = vmatprep.subr.mxu0 0.0
    %1373 = vmatpush2.xpose.msra.mxu0 0.0
    %1374 = vmatprep.subr.mxu0 0.0
    %1375 = vmatpush2.xpose.msra.mxu0 0.0
    %1376 = vmatprep.subr.mxu0 0.0
    %1377 = vmatpush2.xpose.msra.mxu0 0.0
    %1378 = vmatprep.subr.mxu0 0.0
    %1379 = vmatpush2.xpose.msra.mxu0 0.0
    %1380 = vmatprep.subr.mxu0 0.0
    %1381 = vmatpush2.xpose.msra.mxu0 0.0
    %1382 = vmatprep.mubr.f32.mxu0 0.0
    %1383 = vmatmul.mubr.f32.gmra.mxu0 %v1314
    %v1384 = vpop.f32.mrf.mxu0
    %v1385 = vadd.f32 0.0, %v1384
    %v1386 = vpop.f32.mrf.mxu0
    %1387 = vdwg.mxu0
    %v1388 = vmul.f32 %v853, 0.25
    %v1389 = vmul.f32 %v929, 0.25
    %v1390 = vmul.f32 %v1005, 0.25
    %v1391 = vmul.f32 %v1081, 0.25
    %v1392 = vmul.f32 %v1157, 0.25
    %v1393 = vmul.f32 %v1233, 0.25
    %v1394 = vmul.f32 %v1309, 0.25
    %v1395 = vmul.f32 %v1385, 0.25
    %v1396 = vadd.f32 %v1388, %v584
    %v1397 = vadd.f32 %v1389, %v584
    %v1398 = vadd.f32 %v1390, %v584
    %v1399 = vadd.f32 %v1391, %v584
    %v1400 = vadd.f32 %v1392, %v584
    %v1401 = vadd.f32 %v1393, %v584
    %v1402 = vadd.f32 %v1394, %v584
    %v1403 = vadd.f32 %v1395, %v584
    %vm1404 = vcmask 64512
    %v1405 = vsel %vm1404, %v1396, -inf
    %1406 = vmax.xlane.f32.xlu0 %v1405
    %v1407 = vpop.xlane.xlu0 %1406
    %v1408 = vsel %vm1404, %v1397, -inf
    %1409 = vmax.xlane.f32.xlu0 %v1408
    %v1410 = vpop.xlane.xlu0 %1409
    %v1411 = vsel %vm1404, %v1398, -inf
    %1412 = vmax.xlane.f32.xlu0 %v1411
    %v1413 = vpop.xlane.xlu0 %1412
    %v1414 = vsel %vm1404, %v1399, -inf
    %1415 = vmax.xlane.f32.xlu0 %v1414
    %v1416 = vpop.xlane.xlu0 %1415
    %v1417 = vsel %vm1404, %v1400, -inf
    %1418 = vmax.xlane.f32.xlu0 %v1417
    %v1419 = vpop.xlane.xlu0 %1418
    %v1420 = vsel %vm1404, %v1401, -inf
    %1421 = vmax.xlane.f32.xlu0 %v1420
    %v1422 = vpop.xlane.xlu0 %1421
    %v1423 = vsel %vm1404, %v1402, -inf
    %1424 = vmax.xlane.f32.xlu0 %v1423
    %v1425 = vpop.xlane.xlu0 %1424
    %v1426 = vsel %vm1404, %v1403, -inf
    %1427 = vmax.xlane.f32.xlu0 %v1426
    %v1428 = vpop.xlane.xlu0 %1427
    %v1429 = vsub.f32 %v1396, %v1407
    %v1430 = vsub.f32 %v1397, %v1410
    %v1431 = vsub.f32 %v1398, %v1413
    %v1432 = vsub.f32 %v1399, %v1416
    %v1433 = vsub.f32 %v1400, %v1419
    %v1434 = vsub.f32 %v1401, %v1422
    %v1435 = vsub.f32 %v1402, %v1425
    %v1436 = vsub.f32 %v1403, %v1428
    %v1437 = vmul.f32 %v1429, 1.442695
    %v1438 = vpow.pop %v1437
    %v1439 = vmul.f32 %v1430, 1.442695
    %v1440 = vpow.pop %v1439
    %v1441 = vmul.f32 %v1431, 1.442695
    %v1442 = vpow.pop %v1441
    %v1443 = vmul.f32 %v1432, 1.442695
    %v1444 = vpow.pop %v1443
    %v1445 = vmul.f32 %v1433, 1.442695
    %v1446 = vpow.pop %v1445
    %v1447 = vmul.f32 %v1434, 1.442695
    %v1448 = vpow.pop %v1447
    %v1449 = vmul.f32 %v1435, 1.442695
    %v1450 = vpow.pop %v1449
    %v1451 = vmul.f32 %v1436, 1.442695
    %v1452 = vpow.pop %v1451
    %v1453 = vsel %vm1404, %v1438, 0.0
    %1454 = vadd.xlane.f32.xlu0 %v1453
    %v1455 = vpop.xlane.xlu0 %1454
    %v1456 = vsel %vm1404, %v1440, 0.0
    %1457 = vadd.xlane.f32.xlu0 %v1456
    %v1458 = vpop.xlane.xlu0 %1457
    %v1459 = vsel %vm1404, %v1442, 0.0
    %1460 = vadd.xlane.f32.xlu0 %v1459
    %v1461 = vpop.xlane.xlu0 %1460
    %v1462 = vsel %vm1404, %v1444, 0.0
    %1463 = vadd.xlane.f32.xlu0 %v1462
    %v1464 = vpop.xlane.xlu0 %1463
    %v1465 = vsel %vm1404, %v1446, 0.0
    %1466 = vadd.xlane.f32.xlu0 %v1465
    %v1467 = vpop.xlane.xlu0 %1466
    %v1468 = vsel %vm1404, %v1448, 0.0
    %1469 = vadd.xlane.f32.xlu0 %v1468
    %v1470 = vpop.xlane.xlu0 %1469
    %v1471 = vsel %vm1404, %v1450, 0.0
    %1472 = vadd.xlane.f32.xlu0 %v1471
    %v1473 = vpop.xlane.xlu0 %1472
    %v1474 = vsel %vm1404, %v1452, 0.0
    %1475 = vadd.xlane.f32.xlu0 %v1474
    %v1476 = vpop.xlane.xlu0 %1475
    %v1477 = vrcp.pop %v1455
    %v1478 = vrcp.pop %v1458
    %v1479 = vrcp.pop %v1461
    %v1480 = vrcp.pop %v1464
    %v1481 = vrcp.pop %v1467
    %v1482 = vrcp.pop %v1470
    %v1483 = vrcp.pop %v1473
    %v1484 = vrcp.pop %v1476
    %v1485 = vmul.f32 %v1438, %v1477
    %v1486 = vmul.f32 %v1440, %v1478
    %v1487 = vmul.f32 %v1442, %v1479
    %v1488 = vmul.f32 %v1444, %v1480
    %v1489 = vmul.f32 %v1446, %v1481
    %v1490 = vmul.f32 %v1448, %v1482
    %v1491 = vmul.f32 %v1450, %v1483
    %v1492 = vmul.f32 %v1452, %v1484
    %v1494 = vsel %vm1404, %v1485, 0
    %1496 = vmatprep.subr.mxu0 0.0
    %1497 = vmatpush1.msra.mxu0 0.0
    %1498 = vmatprep.subr.mxu0 0.0
    %1499 = vmatpush1.msra.mxu0 0.0
    %1500 = vmatprep.subr.mxu0 0.0
    %1501 = vmatpush1.msra.mxu0 0.0
    %1502 = vmatprep.subr.mxu0 0.0
    %1503 = vmatpush1.msra.mxu0 0.0
    %1504 = vmatprep.subr.mxu0 0.0
    %1505 = vmatpush1.msra.mxu0 0.0
    %1506 = vmatprep.subr.mxu0 0.0
    %1507 = vmatpush1.msra.mxu0 0.0
    %1508 = vmatprep.subr.mxu0 0.0
    %1509 = vmatpush1.msra.mxu0 0.0
    %1510 = vmatprep.subr.mxu0 0.0
    %1511 = vmatpush1.msra.mxu0 0.0
    %1512 = vmatprep.subr.mxu0 0.0
    %1513 = vmatpush1.msra.mxu0 0.0
    %1514 = vmatprep.subr.mxu0 0.0
    %1515 = vmatpush1.msra.mxu0 0.0
    %1516 = vmatprep.subr.mxu0 0.0
    %1517 = vmatpush1.msra.mxu0 0.0
    %1518 = vmatprep.subr.mxu0 0.0
    %1519 = vmatpush1.msra.mxu0 0.0
    %1520 = vmatprep.subr.mxu0 0.0
    %1521 = vmatpush1.msra.mxu0 0.0
    %1522 = vmatprep.subr.mxu0 0.0
    %1523 = vmatpush1.msra.mxu0 0.0
    %1524 = vmatprep.subr.mxu0 0.0
    %1525 = vmatpush1.msra.mxu0 0.0
    %1526 = vmatprep.subr.mxu0 0.0
    %1527 = vmatpush1.msra.mxu0 %v737
    %1528 = vmatprep.subr.mxu0 0.0
    %1529 = vmatpush2.msra.mxu0 0.0
    %1530 = vmatprep.subr.mxu0 0.0
    %1531 = vmatpush2.msra.mxu0 0.0
    %1532 = vmatprep.subr.mxu0 0.0
    %1533 = vmatpush2.msra.mxu0 0.0
    %1534 = vmatprep.subr.mxu0 0.0
    %1535 = vmatpush2.msra.mxu0 0.0
    %1536 = vmatprep.subr.mxu0 0.0
    %1537 = vmatpush2.msra.mxu0 0.0
    %1538 = vmatprep.subr.mxu0 0.0
    %1539 = vmatpush2.msra.mxu0 0.0
    %1540 = vmatprep.subr.mxu0 0.0
    %1541 = vmatpush2.msra.mxu0 0.0
    %1542 = vmatprep.subr.mxu0 0.0
    %1543 = vmatpush2.msra.mxu0 0.0
    %1544 = vmatprep.subr.mxu0 0.0
    %1545 = vmatpush2.msra.mxu0 0.0
    %1546 = vmatprep.subr.mxu0 0.0
    %1547 = vmatpush2.msra.mxu0 0.0
    %1548 = vmatprep.subr.mxu0 0.0
    %1549 = vmatpush2.msra.mxu0 0.0
    %1550 = vmatprep.subr.mxu0 0.0
    %1551 = vmatpush2.msra.mxu0 0.0
    %1552 = vmatprep.subr.mxu0 0.0
    %1553 = vmatpush2.msra.mxu0 0.0
    %1554 = vmatprep.subr.mxu0 0.0
    %1555 = vmatpush2.msra.mxu0 0.0
    %1556 = vmatprep.subr.mxu0 0.0
    %1557 = vmatpush2.msra.mxu0 0.0
    %1558 = vmatprep.subr.mxu0 0.0
    %1559 = vmatpush2.msra.mxu0 0.0
    %1560 = vmatprep.mubr.f32.mxu0 0.0
    %1561 = vmatmul.mubr.f32.gmra.mxu0 %v1494
    %v1562 = vpop.f32.mrf.mxu0
    %v1563 = vadd.f32 0.0, %v1562
    %v1564 = vpop.f32.mrf.mxu0
    %1565 = vdwg.mxu0
    %v1567 = vsel %vm1404, %v1486, 0
    %1569 = vmatprep.subr.mxu0 0.0
    %1570 = vmatpush1.msra.mxu0 0.0
    %1571 = vmatprep.subr.mxu0 0.0
    %1572 = vmatpush1.msra.mxu0 0.0
    %1573 = vmatprep.subr.mxu0 0.0
    %1574 = vmatpush1.msra.mxu0 0.0
    %1575 = vmatprep.subr.mxu0 0.0
    %1576 = vmatpush1.msra.mxu0 0.0
    %1577 = vmatprep.subr.mxu0 0.0
    %1578 = vmatpush1.msra.mxu0 0.0
    %1579 = vmatprep.subr.mxu0 0.0
    %1580 = vmatpush1.msra.mxu0 0.0
    %1581 = vmatprep.subr.mxu0 0.0
    %1582 = vmatpush1.msra.mxu0 0.0
    %1583 = vmatprep.subr.mxu0 0.0
    %1584 = vmatpush1.msra.mxu0 0.0
    %1585 = vmatprep.subr.mxu0 0.0
    %1586 = vmatpush1.msra.mxu0 0.0
    %1587 = vmatprep.subr.mxu0 0.0
    %1588 = vmatpush1.msra.mxu0 0.0
    %1589 = vmatprep.subr.mxu0 0.0
    %1590 = vmatpush1.msra.mxu0 0.0
    %1591 = vmatprep.subr.mxu0 0.0
    %1592 = vmatpush1.msra.mxu0 0.0
    %1593 = vmatprep.subr.mxu0 0.0
    %1594 = vmatpush1.msra.mxu0 0.0
    %1595 = vmatprep.subr.mxu0 0.0
    %1596 = vmatpush1.msra.mxu0 0.0
    %1597 = vmatprep.subr.mxu0 0.0
    %1598 = vmatpush1.msra.mxu0 0.0
    %1599 = vmatprep.subr.mxu0 0.0
    %1600 = vmatpush1.msra.mxu0 %v743
    %1601 = vmatprep.subr.mxu0 0.0
    %1602 = vmatpush2.msra.mxu0 0.0
    %1603 = vmatprep.subr.mxu0 0.0
    %1604 = vmatpush2.msra.mxu0 0.0
    %1605 = vmatprep.subr.mxu0 0.0
    %1606 = vmatpush2.msra.mxu0 0.0
    %1607 = vmatprep.subr.mxu0 0.0
    %1608 = vmatpush2.msra.mxu0 0.0
    %1609 = vmatprep.subr.mxu0 0.0
    %1610 = vmatpush2.msra.mxu0 0.0
    %1611 = vmatprep.subr.mxu0 0.0
    %1612 = vmatpush2.msra.mxu0 0.0
    %1613 = vmatprep.subr.mxu0 0.0
    %1614 = vmatpush2.msra.mxu0 0.0
    %1615 = vmatprep.subr.mxu0 0.0
    %1616 = vmatpush2.msra.mxu0 0.0
    %1617 = vmatprep.subr.mxu0 0.0
    %1618 = vmatpush2.msra.mxu0 0.0
    %1619 = vmatprep.subr.mxu0 0.0
    %1620 = vmatpush2.msra.mxu0 0.0
    %1621 = vmatprep.subr.mxu0 0.0
    %1622 = vmatpush2.msra.mxu0 0.0
    %1623 = vmatprep.subr.mxu0 0.0
    %1624 = vmatpush2.msra.mxu0 0.0
    %1625 = vmatprep.subr.mxu0 0.0
    %1626 = vmatpush2.msra.mxu0 0.0
    %1627 = vmatprep.subr.mxu0 0.0
    %1628 = vmatpush2.msra.mxu0 0.0
    %1629 = vmatprep.subr.mxu0 0.0
    %1630 = vmatpush2.msra.mxu0 0.0
    %1631 = vmatprep.subr.mxu0 0.0
    %1632 = vmatpush2.msra.mxu0 0.0
    %1633 = vmatprep.mubr.f32.mxu0 0.0
    %1634 = vmatmul.mubr.f32.gmra.mxu0 %v1567
    %v1635 = vpop.f32.mrf.mxu0
    %v1636 = vadd.f32 0.0, %v1635
    %v1637 = vpop.f32.mrf.mxu0
    %1638 = vdwg.mxu0
    %v1640 = vsel %vm1404, %v1487, 0
    %1642 = vmatprep.subr.mxu0 0.0
    %1643 = vmatpush1.msra.mxu0 0.0
    %1644 = vmatprep.subr.mxu0 0.0
    %1645 = vmatpush1.msra.mxu0 0.0
    %1646 = vmatprep.subr.mxu0 0.0
    %1647 = vmatpush1.msra.mxu0 0.0
    %1648 = vmatprep.subr.mxu0 0.0
    %1649 = vmatpush1.msra.mxu0 0.0
    %1650 = vmatprep.subr.mxu0 0.0
    %1651 = vmatpush1.msra.mxu0 0.0
    %1652 = vmatprep.subr.mxu0 0.0
    %1653 = vmatpush1.msra.mxu0 0.0
    %1654 = vmatprep.subr.mxu0 0.0
    %1655 = vmatpush1.msra.mxu0 0.0
    %1656 = vmatprep.subr.mxu0 0.0
    %1657 = vmatpush1.msra.mxu0 0.0
    %1658 = vmatprep.subr.mxu0 0.0
    %1659 = vmatpush1.msra.mxu0 0.0
    %1660 = vmatprep.subr.mxu0 0.0
    %1661 = vmatpush1.msra.mxu0 0.0
    %1662 = vmatprep.subr.mxu0 0.0
    %1663 = vmatpush1.msra.mxu0 0.0
    %1664 = vmatprep.subr.mxu0 0.0
    %1665 = vmatpush1.msra.mxu0 0.0
    %1666 = vmatprep.subr.mxu0 0.0
    %1667 = vmatpush1.msra.mxu0 0.0
    %1668 = vmatprep.subr.mxu0 0.0
    %1669 = vmatpush1.msra.mxu0 0.0
    %1670 = vmatprep.subr.mxu0 0.0
    %1671 = vmatpush1.msra.mxu0 0.0
    %1672 = vmatprep.subr.mxu0 0.0
    %1673 = vmatpush1.msra.mxu0 %v762
    %1674 = vmatprep.subr.mxu0 0.0
    %1675 = vmatpush2.msra.mxu0 0.0
    %1676 = vmatprep.subr.mxu0 0.0
    %1677 = vmatpush2.msra.mxu0 0.0
    %1678 = vmatprep.subr.mxu0 0.0
    %1679 = vmatpush2.msra.mxu0 0.0
    %1680 = vmatprep.subr.mxu0 0.0
    %1681 = vmatpush2.msra.mxu0 0.0
    %1682 = vmatprep.subr.mxu0 0.0
    %1683 = vmatpush2.msra.mxu0 0.0
    %1684 = vmatprep.subr.mxu0 0.0
    %1685 = vmatpush2.msra.mxu0 0.0
    %1686 = vmatprep.subr.mxu0 0.0
    %1687 = vmatpush2.msra.mxu0 0.0
    %1688 = vmatprep.subr.mxu0 0.0
    %1689 = vmatpush2.msra.mxu0 0.0
    %1690 = vmatprep.subr.mxu0 0.0
    %1691 = vmatpush2.msra.mxu0 0.0
    %1692 = vmatprep.subr.mxu0 0.0
    %1693 = vmatpush2.msra.mxu0 0.0
    %1694 = vmatprep.subr.mxu0 0.0
    %1695 = vmatpush2.msra.mxu0 0.0
    %1696 = vmatprep.subr.mxu0 0.0
    %1697 = vmatpush2.msra.mxu0 0.0
    %1698 = vmatprep.subr.mxu0 0.0
    %1699 = vmatpush2.msra.mxu0 0.0
    %1700 = vmatprep.subr.mxu0 0.0
    %1701 = vmatpush2.msra.mxu0 0.0
    %1702 = vmatprep.subr.mxu0 0.0
    %1703 = vmatpush2.msra.mxu0 0.0
    %1704 = vmatprep.subr.mxu0 0.0
    %1705 = vmatpush2.msra.mxu0 0.0
    %1706 = vmatprep.mubr.f32.mxu0 0.0
    %1707 = vmatmul.mubr.f32.gmra.mxu0 %v1640
    %v1708 = vpop.f32.mrf.mxu0
    %v1709 = vadd.f32 0.0, %v1708
    %v1710 = vpop.f32.mrf.mxu0
    %1711 = vdwg.mxu0
    %v1713 = vsel %vm1404, %v1488, 0
    %1715 = vmatprep.subr.mxu0 0.0
    %1716 = vmatpush1.msra.mxu0 0.0
    %1717 = vmatprep.subr.mxu0 0.0
    %1718 = vmatpush1.msra.mxu0 0.0
    %1719 = vmatprep.subr.mxu0 0.0
    %1720 = vmatpush1.msra.mxu0 0.0
    %1721 = vmatprep.subr.mxu0 0.0
    %1722 = vmatpush1.msra.mxu0 0.0
    %1723 = vmatprep.subr.mxu0 0.0
    %1724 = vmatpush1.msra.mxu0 0.0
    %1725 = vmatprep.subr.mxu0 0.0
    %1726 = vmatpush1.msra.mxu0 0.0
    %1727 = vmatprep.subr.mxu0 0.0
    %1728 = vmatpush1.msra.mxu0 0.0
    %1729 = vmatprep.subr.mxu0 0.0
    %1730 = vmatpush1.msra.mxu0 0.0
    %1731 = vmatprep.subr.mxu0 0.0
    %1732 = vmatpush1.msra.mxu0 0.0
    %1733 = vmatprep.subr.mxu0 0.0
    %1734 = vmatpush1.msra.mxu0 0.0
    %1735 = vmatprep.subr.mxu0 0.0
    %1736 = vmatpush1.msra.mxu0 0.0
    %1737 = vmatprep.subr.mxu0 0.0
    %1738 = vmatpush1.msra.mxu0 0.0
    %1739 = vmatprep.subr.mxu0 0.0
    %1740 = vmatpush1.msra.mxu0 0.0
    %1741 = vmatprep.subr.mxu0 0.0
    %1742 = vmatpush1.msra.mxu0 0.0
    %1743 = vmatprep.subr.mxu0 0.0
    %1744 = vmatpush1.msra.mxu0 0.0
    %1745 = vmatprep.subr.mxu0 0.0
    %1746 = vmatpush1.msra.mxu0 %v764
    %1747 = vmatprep.subr.mxu0 0.0
    %1748 = vmatpush2.msra.mxu0 0.0
    %1749 = vmatprep.subr.mxu0 0.0
    %1750 = vmatpush2.msra.mxu0 0.0
    %1751 = vmatprep.subr.mxu0 0.0
    %1752 = vmatpush2.msra.mxu0 0.0
    %1753 = vmatprep.subr.mxu0 0.0
    %1754 = vmatpush2.msra.mxu0 0.0
    %1755 = vmatprep.subr.mxu0 0.0
    %1756 = vmatpush2.msra.mxu0 0.0
    %1757 = vmatprep.subr.mxu0 0.0
    %1758 = vmatpush2.msra.mxu0 0.0
    %1759 = vmatprep.subr.mxu0 0.0
    %1760 = vmatpush2.msra.mxu0 0.0
    %1761 = vmatprep.subr.mxu0 0.0
    %1762 = vmatpush2.msra.mxu0 0.0
    %1763 = vmatprep.subr.mxu0 0.0
    %1764 = vmatpush2.msra.mxu0 0.0
    %1765 = vmatprep.subr.mxu0 0.0
    %1766 = vmatpush2.msra.mxu0 0.0
    %1767 = vmatprep.subr.mxu0 0.0
    %1768 = vmatpush2.msra.mxu0 0.0
    %1769 = vmatprep.subr.mxu0 0.0
    %1770 = vmatpush2.msra.mxu0 0.0
    %1771 = vmatprep.subr.mxu0 0.0
    %1772 = vmatpush2.msra.mxu0 0.0
    %1773 = vmatprep.subr.mxu0 0.0
    %1774 = vmatpush2.msra.mxu0 0.0
    %1775 = vmatprep.subr.mxu0 0.0
    %1776 = vmatpush2.msra.mxu0 0.0
    %1777 = vmatprep.subr.mxu0 0.0
    %1778 = vmatpush2.msra.mxu0 0.0
    %1779 = vmatprep.mubr.f32.mxu0 0.0
    %1780 = vmatmul.mubr.f32.gmra.mxu0 %v1713
    %v1781 = vpop.f32.mrf.mxu0
    %v1782 = vadd.f32 0.0, %v1781
    %v1783 = vpop.f32.mrf.mxu0
    %1784 = vdwg.mxu0
    %v1786 = vsel %vm1404, %v1489, 0
    %1788 = vmatprep.subr.mxu0 0.0
    %1789 = vmatpush1.msra.mxu0 0.0
    %1790 = vmatprep.subr.mxu0 0.0
    %1791 = vmatpush1.msra.mxu0 0.0
    %1792 = vmatprep.subr.mxu0 0.0
    %1793 = vmatpush1.msra.mxu0 0.0
    %1794 = vmatprep.subr.mxu0 0.0
    %1795 = vmatpush1.msra.mxu0 0.0
    %1796 = vmatprep.subr.mxu0 0.0
    %1797 = vmatpush1.msra.mxu0 0.0
    %1798 = vmatprep.subr.mxu0 0.0
    %1799 = vmatpush1.msra.mxu0 0.0
    %1800 = vmatprep.subr.mxu0 0.0
    %1801 = vmatpush1.msra.mxu0 0.0
    %1802 = vmatprep.subr.mxu0 0.0
    %1803 = vmatpush1.msra.mxu0 0.0
    %1804 = vmatprep.subr.mxu0 0.0
    %1805 = vmatpush1.msra.mxu0 0.0
    %1806 = vmatprep.subr.mxu0 0.0
    %1807 = vmatpush1.msra.mxu0 0.0
    %1808 = vmatprep.subr.mxu0 0.0
    %1809 = vmatpush1.msra.mxu0 0.0
    %1810 = vmatprep.subr.mxu0 0.0
    %1811 = vmatpush1.msra.mxu0 0.0
    %1812 = vmatprep.subr.mxu0 0.0
    %1813 = vmatpush1.msra.mxu0 0.0
    %1814 = vmatprep.subr.mxu0 0.0
    %1815 = vmatpush1.msra.mxu0 0.0
    %1816 = vmatprep.subr.mxu0 0.0
    %1817 = vmatpush1.msra.mxu0 0.0
    %1818 = vmatprep.subr.mxu0 0.0
    %1819 = vmatpush1.msra.mxu0 %v768
    %1820 = vmatprep.subr.mxu0 0.0
    %1821 = vmatpush2.msra.mxu0 0.0
    %1822 = vmatprep.subr.mxu0 0.0
    %1823 = vmatpush2.msra.mxu0 0.0
    %1824 = vmatprep.subr.mxu0 0.0
    %1825 = vmatpush2.msra.mxu0 0.0
    %1826 = vmatprep.subr.mxu0 0.0
    %1827 = vmatpush2.msra.mxu0 0.0
    %1828 = vmatprep.subr.mxu0 0.0
    %1829 = vmatpush2.msra.mxu0 0.0
    %1830 = vmatprep.subr.mxu0 0.0
    %1831 = vmatpush2.msra.mxu0 0.0
    %1832 = vmatprep.subr.mxu0 0.0
    %1833 = vmatpush2.msra.mxu0 0.0
    %1834 = vmatprep.subr.mxu0 0.0
    %1835 = vmatpush2.msra.mxu0 0.0
    %1836 = vmatprep.subr.mxu0 0.0
    %1837 = vmatpush2.msra.mxu0 0.0
    %1838 = vmatprep.subr.mxu0 0.0
    %1839 = vmatpush2.msra.mxu0 0.0
    %1840 = vmatprep.subr.mxu0 0.0
    %1841 = vmatpush2.msra.mxu0 0.0
    %1842 = vmatprep.subr.mxu0 0.0
    %1843 = vmatpush2.msra.mxu0 0.0
    %1844 = vmatprep.subr.mxu0 0.0
    %1845 = vmatpush2.msra.mxu0 0.0
    %1846 = vmatprep.subr.mxu0 0.0
    %1847 = vmatpush2.msra.mxu0 0.0
    %1848 = vmatprep.subr.mxu0 0.0
    %1849 = vmatpush2.msra.mxu0 0.0
    %1850 = vmatprep.subr.mxu0 0.0
    %1851 = vmatpush2.msra.mxu0 0.0
    %1852 = vmatprep.mubr.f32.mxu0 0.0
    %1853 = vmatmul.mubr.f32.gmra.mxu0 %v1786
    %v1854 = vpop.f32.mrf.mxu0
    %v1855 = vadd.f32 0.0, %v1854
    %v1856 = vpop.f32.mrf.mxu0
    %1857 = vdwg.mxu0
    %v1859 = vsel %vm1404, %v1490, 0
    %1861 = vmatprep.subr.mxu0 0.0
    %1862 = vmatpush1.msra.mxu0 0.0
    %1863 = vmatprep.subr.mxu0 0.0
    %1864 = vmatpush1.msra.mxu0 0.0
    %1865 = vmatprep.subr.mxu0 0.0
    %1866 = vmatpush1.msra.mxu0 0.0
    %1867 = vmatprep.subr.mxu0 0.0
    %1868 = vmatpush1.msra.mxu0 0.0
    %1869 = vmatprep.subr.mxu0 0.0
    %1870 = vmatpush1.msra.mxu0 0.0
    %1871 = vmatprep.subr.mxu0 0.0
    %1872 = vmatpush1.msra.mxu0 0.0
    %1873 = vmatprep.subr.mxu0 0.0
    %1874 = vmatpush1.msra.mxu0 0.0
    %1875 = vmatprep.subr.mxu0 0.0
    %1876 = vmatpush1.msra.mxu0 0.0
    %1877 = vmatprep.subr.mxu0 0.0
    %1878 = vmatpush1.msra.mxu0 0.0
    %1879 = vmatprep.subr.mxu0 0.0
    %1880 = vmatpush1.msra.mxu0 0.0
    %1881 = vmatprep.subr.mxu0 0.0
    %1882 = vmatpush1.msra.mxu0 0.0
    %1883 = vmatprep.subr.mxu0 0.0
    %1884 = vmatpush1.msra.mxu0 0.0
    %1885 = vmatprep.subr.mxu0 0.0
    %1886 = vmatpush1.msra.mxu0 0.0
    %1887 = vmatprep.subr.mxu0 0.0
    %1888 = vmatpush1.msra.mxu0 0.0
    %1889 = vmatprep.subr.mxu0 0.0
    %1890 = vmatpush1.msra.mxu0 0.0
    %1891 = vmatprep.subr.mxu0 0.0
    %1892 = vmatpush1.msra.mxu0 %v770
    %1893 = vmatprep.subr.mxu0 0.0
    %1894 = vmatpush2.msra.mxu0 0.0
    %1895 = vmatprep.subr.mxu0 0.0
    %1896 = vmatpush2.msra.mxu0 0.0
    %1897 = vmatprep.subr.mxu0 0.0
    %1898 = vmatpush2.msra.mxu0 0.0
    %1899 = vmatprep.subr.mxu0 0.0
    %1900 = vmatpush2.msra.mxu0 0.0
    %1901 = vmatprep.subr.mxu0 0.0
    %1902 = vmatpush2.msra.mxu0 0.0
    %1903 = vmatprep.subr.mxu0 0.0
    %1904 = vmatpush2.msra.mxu0 0.0
    %1905 = vmatprep.subr.mxu0 0.0
    %1906 = vmatpush2.msra.mxu0 0.0
    %1907 = vmatprep.subr.mxu0 0.0
    %1908 = vmatpush2.msra.mxu0 0.0
    %1909 = vmatprep.subr.mxu0 0.0
    %1910 = vmatpush2.msra.mxu0 0.0
    %1911 = vmatprep.subr.mxu0 0.0
    %1912 = vmatpush2.msra.mxu0 0.0
    %1913 = vmatprep.subr.mxu0 0.0
    %1914 = vmatpush2.msra.mxu0 0.0
    %1915 = vmatprep.subr.mxu0 0.0
    %1916 = vmatpush2.msra.mxu0 0.0
    %1917 = vmatprep.subr.mxu0 0.0
    %1918 = vmatpush2.msra.mxu0 0.0
    %1919 = vmatprep.subr.mxu0 0.0
    %1920 = vmatpush2.msra.mxu0 0.0
    %1921 = vmatprep.subr.mxu0 0.0
    %1922 = vmatpush2.msra.mxu0 0.0
    %1923 = vmatprep.subr.mxu0 0.0
    %1924 = vmatpush2.msra.mxu0 0.0
    %1925 = vmatprep.mubr.f32.mxu0 0.0
    %1926 = vmatmul.mubr.f32.gmra.mxu0 %v1859
    %v1927 = vpop.f32.mrf.mxu0
    %v1928 = vadd.f32 0.0, %v1927
    %v1929 = vpop.f32.mrf.mxu0
    %1930 = vdwg.mxu0
    %v1932 = vsel %vm1404, %v1491, 0
    %1934 = vmatprep.subr.mxu0 0.0
    %1935 = vmatpush1.msra.mxu0 0.0
    %1936 = vmatprep.subr.mxu0 0.0
    %1937 = vmatpush1.msra.mxu0 0.0
    %1938 = vmatprep.subr.mxu0 0.0
    %1939 = vmatpush1.msra.mxu0 0.0
    %1940 = vmatprep.subr.mxu0 0.0
    %1941 = vmatpush1.msra.mxu0 0.0
    %1942 = vmatprep.subr.mxu0 0.0
    %1943 = vmatpush1.msra.mxu0 0.0
    %1944 = vmatprep.subr.mxu0 0.0
    %1945 = vmatpush1.msra.mxu0 0.0
    %1946 = vmatprep.subr.mxu0 0.0
    %1947 = vmatpush1.msra.mxu0 0.0
    %1948 = vmatprep.subr.mxu0 0.0
    %1949 = vmatpush1.msra.mxu0 0.0
    %1950 = vmatprep.subr.mxu0 0.0
    %1951 = vmatpush1.msra.mxu0 0.0
    %1952 = vmatprep.subr.mxu0 0.0
    %1953 = vmatpush1.msra.mxu0 0.0
    %1954 = vmatprep.subr.mxu0 0.0
    %1955 = vmatpush1.msra.mxu0 0.0
    %1956 = vmatprep.subr.mxu0 0.0
    %1957 = vmatpush1.msra.mxu0 0.0
    %1958 = vmatprep.subr.mxu0 0.0
    %1959 = vmatpush1.msra.mxu0 0.0
    %1960 = vmatprep.subr.mxu0 0.0
    %1961 = vmatpush1.msra.mxu0 0.0
    %1962 = vmatprep.subr.mxu0 0.0
    %1963 = vmatpush1.msra.mxu0 0.0
    %1964 = vmatprep.subr.mxu0 0.0
    %1965 = vmatpush1.msra.mxu0 %v774
    %1966 = vmatprep.subr.mxu0 0.0
    %1967 = vmatpush2.msra.mxu0 0.0
    %1968 = vmatprep.subr.mxu0 0.0
    %1969 = vmatpush2.msra.mxu0 0.0
    %1970 = vmatprep.subr.mxu0 0.0
    %1971 = vmatpush2.msra.mxu0 0.0
    %1972 = vmatprep.subr.mxu0 0.0
    %1973 = vmatpush2.msra.mxu0 0.0
    %1974 = vmatprep.subr.mxu0 0.0
    %1975 = vmatpush2.msra.mxu0 0.0
    %1976 = vmatprep.subr.mxu0 0.0
    %1977 = vmatpush2.msra.mxu0 0.0
    %1978 = vmatprep.subr.mxu0 0.0
    %1979 = vmatpush2.msra.mxu0 0.0
    %1980 = vmatprep.subr.mxu0 0.0
    %1981 = vmatpush2.msra.mxu0 0.0
    %1982 = vmatprep.subr.mxu0 0.0
    %1983 = vmatpush2.msra.mxu0 0.0
    %1984 = vmatprep.subr.mxu0 0.0
    %1985 = vmatpush2.msra.mxu0 0.0
    %1986 = vmatprep.subr.mxu0 0.0
    %1987 = vmatpush2.msra.mxu0 0.0
    %1988 = vmatprep.subr.mxu0 0.0
    %1989 = vmatpush2.msra.mxu0 0.0
    %1990 = vmatprep.subr.mxu0 0.0
    %1991 = vmatpush2.msra.mxu0 0.0
    %1992 = vmatprep.subr.mxu0 0.0
    %1993 = vmatpush2.msra.mxu0 0.0
    %1994 = vmatprep.subr.mxu0 0.0
    %1995 = vmatpush2.msra.mxu0 0.0
    %1996 = vmatprep.subr.mxu0 0.0
    %1997 = vmatpush2.msra.mxu0 0.0
    %1998 = vmatprep.mubr.f32.mxu0 0.0
    %1999 = vmatmul.mubr.f32.gmra.mxu0 %v1932
    %v2000 = vpop.f32.mrf.mxu0
    %v2001 = vadd.f32 0.0, %v2000
    %v2002 = vpop.f32.mrf.mxu0
    %2003 = vdwg.mxu0
    %v2005 = vsel %vm1404, %v1492, 0
    %2007 = vmatprep.subr.mxu0 0.0
    %2008 = vmatpush1.msra.mxu0 0.0
    %2009 = vmatprep.subr.mxu0 0.0
    %2010 = vmatpush1.msra.mxu0 0.0
    %2011 = vmatprep.subr.mxu0 0.0
    %2012 = vmatpush1.msra.mxu0 0.0
    %2013 = vmatprep.subr.mxu0 0.0
    %2014 = vmatpush1.msra.mxu0 0.0
    %2015 = vmatprep.subr.mxu0 0.0
    %2016 = vmatpush1.msra.mxu0 0.0
    %2017 = vmatprep.subr.mxu0 0.0
    %2018 = vmatpush1.msra.mxu0 0.0
    %2019 = vmatprep.subr.mxu0 0.0
    %2020 = vmatpush1.msra.mxu0 0.0
    %2021 = vmatprep.subr.mxu0 0.0
    %2022 = vmatpush1.msra.mxu0 0.0
    %2023 = vmatprep.subr.mxu0 0.0
    %2024 = vmatpush1.msra.mxu0 0.0
    %2025 = vmatprep.subr.mxu0 0.0
    %2026 = vmatpush1.msra.mxu0 0.0
    %2027 = vmatprep.subr.mxu0 0.0
    %2028 = vmatpush1.msra.mxu0 0.0
    %2029 = vmatprep.subr.mxu0 0.0
    %2030 = vmatpush1.msra.mxu0 0.0
    %2031 = vmatprep.subr.mxu0 0.0
    %2032 = vmatpush1.msra.mxu0 0.0
    %2033 = vmatprep.subr.mxu0 0.0
    %2034 = vmatpush1.msra.mxu0 0.0
    %2035 = vmatprep.subr.mxu0 0.0
    %2036 = vmatpush1.msra.mxu0 0.0
    %2037 = vmatprep.subr.mxu0 0.0
    %2038 = vmatpush1.msra.mxu0 %v776
    %2039 = vmatprep.subr.mxu0 0.0
    %2040 = vmatpush2.msra.mxu0 0.0
    %2041 = vmatprep.subr.mxu0 0.0
    %2042 = vmatpush2.msra.mxu0 0.0
    %2043 = vmatprep.subr.mxu0 0.0
    %2044 = vmatpush2.msra.mxu0 0.0
    %2045 = vmatprep.subr.mxu0 0.0
    %2046 = vmatpush2.msra.mxu0 0.0
    %2047 = vmatprep.subr.mxu0 0.0
    %2048 = vmatpush2.msra.mxu0 0.0
    %2049 = vmatprep.subr.mxu0 0.0
    %2050 = vmatpush2.msra.mxu0 0.0
    %2051 = vmatprep.subr.mxu0 0.0
    %2052 = vmatpush2.msra.mxu0 0.0
    %2053 = vmatprep.subr.mxu0 0.0
    %2054 = vmatpush2.msra.mxu0 0.0
    %2055 = vmatprep.subr.mxu0 0.0
    %2056 = vmatpush2.msra.mxu0 0.0
    %2057 = vmatprep.subr.mxu0 0.0
    %2058 = vmatpush2.msra.mxu0 0.0
    %2059 = vmatprep.subr.mxu0 0.0
    %2060 = vmatpush2.msra.mxu0 0.0
    %2061 = vmatprep.subr.mxu0 0.0
    %2062 = vmatpush2.msra.mxu0 0.0
    %2063 = vmatprep.subr.mxu0 0.0
    %2064 = vmatpush2.msra.mxu0 0.0
    %2065 = vmatprep.subr.mxu0 0.0
    %2066 = vmatpush2.msra.mxu0 0.0
    %2067 = vmatprep.subr.mxu0 0.0
    %2068 = vmatpush2.msra.mxu0 0.0
    %2069 = vmatprep.subr.mxu0 0.0
    %2070 = vmatpush2.msra.mxu0 0.0
    %2071 = vmatprep.mubr.f32.mxu0 0.0
    %2072 = vmatmul.mubr.f32.gmra.mxu0 %v2005
    %v2073 = vpop.f32.mrf.mxu0
    %v2074 = vadd.f32 0.0, %v2073
    %v2075 = vpop.f32.mrf.mxu0
    %2076 = vdwg.mxu0
    %2079 = vrot.lane.b32.xlu0 %v1709, 16
    %v2080 = vpop.permute.xlu0 %2079
    %2081 = vrot.lane.b32.xlu0 %v1782, 16
    %v2082 = vpop.permute.xlu0 %2081
    %2087 = vrot.lane.b32.xlu0 %v1855, 32
    %v2088 = vpop.permute.xlu0 %2087
    %2089 = vrot.lane.b32.xlu0 %v1928, 32
    %v2090 = vpop.permute.xlu0 %2089
    %2095 = vrot.lane.b32.xlu0 %v2001, 48
    %v2096 = vpop.permute.xlu0 %2095
    %2097 = vrot.lane.b32.xlu0 %v2074, 48
    %v2098 = vpop.permute.xlu0 %2097
    %v2101 = vsel %vm781, %v1563, %v2080
    %v2102 = vsel %vm781, %v1636, %v2082
    %vm2103 = vcmask 261120
    %v2104 = vsel %vm2103, %v2101, %v2088
    %v2105 = vsel %vm2103, %v2102, %v2090
    %vm2106 = vcmask 392192
    %v2107 = vsel %vm2106, %v2104, %v2096
    %v2108 = vsel %vm2106, %v2105, %v2098
    %v2109 = vld [vmem:[#allocation2 + $0x80] sm:$0xff]
    %v2110 = vld [vmem:[#allocation2 + $0x88] sm:$0xff]
    %v2111 = vld [vmem:[#allocation2 + $0x90] sm:$0xff]
    %v2112 = vld [vmem:[#allocation2 + $0x98] sm:$0xff]
    %v2113 = vld [vmem:[#allocation2 + $0xa0] sm:$0xff]
    %v2114 = vld [vmem:[#allocation2 + $0xa8] sm:$0xff]
    %v2115 = vld [vmem:[#allocation2 + $0xb0] sm:$0xff]
    %v2116 = vld [vmem:[#allocation2 + $0xb8] sm:$0xff]
    %v2117 = vld [vmem:[#allocation2 + $0xc0] sm:$0xff]
    %v2118 = vld [vmem:[#allocation2 + $0xc8] sm:$0xff]
    %v2119 = vld [vmem:[#allocation2 + $0xd0] sm:$0xff]
    %v2120 = vld [vmem:[#allocation2 + $0xd8] sm:$0xff]
    %v2121 = vld [vmem:[#allocation2 + $0xe0] sm:$0xff]
    %v2122 = vld [vmem:[#allocation2 + $0xe8] sm:$0xff]
    %v2123 = vld [vmem:[#allocation2 + $0xf0] sm:$0xff]
    %v2124 = vld [vmem:[#allocation2 + $0xf8] sm:$0xff]
    %v2126 = vsel %vm589, %v2107, 0
    %v2129 = vsel %vm589, %v2108, 0
    %2131 = vmatprep.subr.mxu0 0.0
    %2132 = vmatpush1.msra.mxu0 0.0
    %2133 = vmatprep.subr.mxu0 0.0
    %2134 = vmatpush1.msra.mxu0 0.0
    %2135 = vmatprep.subr.mxu0 0.0
    %2136 = vmatpush1.msra.mxu0 0.0
    %2137 = vmatprep.subr.mxu0 0.0
    %2138 = vmatpush1.msra.mxu0 0.0
    %2139 = vmatprep.subr.mxu0 0.0
    %2140 = vmatpush1.msra.mxu0 0.0
    %2141 = vmatprep.subr.mxu0 0.0
    %2142 = vmatpush1.msra.mxu0 0.0
    %2143 = vmatprep.subr.mxu0 0.0
    %2144 = vmatpush1.msra.mxu0 0.0
    %2145 = vmatprep.subr.mxu0 0.0
    %2146 = vmatpush1.msra.mxu0 0.0
    %2147 = vmatprep.subr.mxu0 %v2124
    %2148 = vmatpush1.msra.mxu0 %v2123
    %2149 = vmatprep.subr.mxu0 %v2122
    %2150 = vmatpush1.msra.mxu0 %v2121
    %2151 = vmatprep.subr.mxu0 %v2120
    %2152 = vmatpush1.msra.mxu0 %v2119
    %2153 = vmatprep.subr.mxu0 %v2118
    %2154 = vmatpush1.msra.mxu0 %v2117
    %2155 = vmatprep.subr.mxu0 %v2116
    %2156 = vmatpush1.msra.mxu0 %v2115
    %2157 = vmatprep.subr.mxu0 %v2114
    %2158 = vmatpush1.msra.mxu0 %v2113
    %2159 = vmatprep.subr.mxu0 %v2112
    %2160 = vmatpush1.msra.mxu0 %v2111
    %2161 = vmatprep.subr.mxu0 %v2110
    %2162 = vmatpush1.msra.mxu0 %v2109
    %2163 = vmatprep.subr.mxu0 0.0
    %2164 = vmatpush2.msra.mxu0 0.0
    %2165 = vmatprep.subr.mxu0 0.0
    %2166 = vmatpush2.msra.mxu0 0.0
    %2167 = vmatprep.subr.mxu0 0.0
    %2168 = vmatpush2.msra.mxu0 0.0
    %2169 = vmatprep.subr.mxu0 0.0
    %2170 = vmatpush2.msra.mxu0 0.0
    %2171 = vmatprep.subr.mxu0 0.0
    %2172 = vmatpush2.msra.mxu0 0.0
    %2173 = vmatprep.subr.mxu0 0.0
    %2174 = vmatpush2.msra.mxu0 0.0
    %2175 = vmatprep.subr.mxu0 0.0
    %2176 = vmatpush2.msra.mxu0 0.0
    %2177 = vmatprep.subr.mxu0 0.0
    %2178 = vmatpush2.msra.mxu0 0.0
    %2179 = vmatprep.subr.mxu0 0.0
    %2180 = vmatpush2.msra.mxu0 0.0
    %2181 = vmatprep.subr.mxu0 0.0
    %2182 = vmatpush2.msra.mxu0 0.0
    %2183 = vmatprep.subr.mxu0 0.0
    %2184 = vmatpush2.msra.mxu0 0.0
    %2185 = vmatprep.subr.mxu0 0.0
    %2186 = vmatpush2.msra.mxu0 0.0
    %2187 = vmatprep.subr.mxu0 0.0
    %2188 = vmatpush2.msra.mxu0 0.0
    %2189 = vmatprep.subr.mxu0 0.0
    %2190 = vmatpush2.msra.mxu0 0.0
    %2191 = vmatprep.subr.mxu0 0.0
    %2192 = vmatpush2.msra.mxu0 0.0
    %2193 = vmatprep.subr.mxu0 0.0
    %2194 = vmatpush2.msra.mxu0 0.0
    %2195 = vmatprep.mubr.f32.mxu0 0.0
    %2196 = vmatmul.mubr.f32.gmra.mxu0 %v2126
    %v2197 = vpop.f32.mrf.mxu0
    %v2198 = vadd.f32 0.0, %v2197
    %v2199 = vpop.f32.mrf.mxu0
    %2200 = vmatprep.mubr.f32.mxu0 0.0
    %2201 = vmatmul.mubr.f32.gmra.mxu0 %v2129
    %v2202 = vpop.f32.mrf.mxu0
    %v2203 = vadd.f32 0.0, %v2202
    %v2204 = vpop.f32.mrf.mxu0
    %2205 = vdwg.mxu0
    %s2206 = scalar_lea.vmem %s4, 35
    %v2207 = vld [vmem:[%s2206] ss:$8 sm:$0xf]
    %v2209 = vlaneseq
    %v2210 = vshrl.u32 %v2209, 7
    %v2211 = vsub.s32 0, %v2210
    %v2212 = vrot.slane %v2207, %v2211
    %v2214 = vadd.f32 %v2198, %v2212
    %v2215 = vadd.f32 %v2203, %v2212
    %v2216 = vadd.f32 %v579, %v2214
    %v2217 = vadd.f32 %v580, %v2215
    %s2218 = scalar_lea.vmem %s4, 36
    %v2219 = vld [vmem:[%s2218] ss:$8 sm:$0xf]
    %s2220 = scalar_lea.vmem %s4, 37
    %v2221 = vld [vmem:[%s2220] ss:$8 sm:$0xf]
    %v2222 = vsel %vm589, %v2216, 0.0
    %2223 = vadd.xlane.f32.xlu0 %v2222
    %v2224 = vpop.xlane.xlu0 %2223
    %v2225 = vsel %vm589, %v2217, 0.0
    %2226 = vadd.xlane.f32.xlu0 %v2225
    %v2227 = vpop.xlane.xlu0 %2226
    %v2228 = vmul.f32 %v2224, %v596
    %v2229 = vmul.f32 %v2227, %v596
    %v2230 = vsub.f32 %v2216, %v2228
    %v2231 = vsub.f32 %v2217, %v2229
    %v2232 = vmul.f32 %v2230, %v2230
    %v2233 = vmul.f32 %v2231, %v2231
    %v2234 = vsel %vm589, %v2232, 0.0
    %2235 = vadd.xlane.f32.xlu0 %v2234
    %v2236 = vpop.xlane.xlu0 %2235
    %v2237 = vsel %vm589, %v2233, 0.0
    %2238 = vadd.xlane.f32.xlu0 %v2237
    %v2239 = vpop.xlane.xlu0 %2238
    %v2240 = vmul.f32 %v2236, %v596
    %v2241 = vmul.f32 %v2239, %v596
    %v2242 = vadd.f32 %v2240, 1e-12
    %v2243 = vadd.f32 %v2241, 1e-12
    %v2244 = vrsqrt.pop %v2242
    %v2245 = vrsqrt.pop %v2243
    %v2246 = vmul.f32 %v2230, %v2244
    %v2247 = vmul.f32 %v2231, %v2245
    %v2249 = vlaneseq
    %v2250 = vshrl.u32 %v2249, 7
    %v2251 = vsub.s32 0, %v2250
    %v2252 = vrot.slane %v2219, %v2251
    %v2254 = vmul.f32 %v2246, %v2252
    %v2255 = vmul.f32 %v2247, %v2252
    %v2257 = vlaneseq
    %v2258 = vshrl.u32 %v2257, 7
    %v2259 = vsub.s32 0, %v2258
    %v2260 = vrot.slane %v2221, %v2259
    %v2262 = vadd.f32 %v2254, %v2260
    %v2263 = vadd.f32 %v2255, %v2260
    %v2264 = vpack.c.bf16 %v2263, %v2262
    %v2265 = vld [vmem:[%s2 + $0x180] sm:$0xf]
    %v2266 = vld [vmem:[%s2 + $0x184] sm:$0xf]
    %v2267 = vld [vmem:[%s2 + $0x188] sm:$0xf]
    %v2268 = vld [vmem:[%s2 + $0x18c] sm:$0xf]
    %v2269 = vld [vmem:[%s2 + $0x190] sm:$0xf]
    %v2270 = vld [vmem:[%s2 + $0x194] sm:$0xf]
    %v2271 = vld [vmem:[%s2 + $0x198] sm:$0xf]
    %v2272 = vld [vmem:[%s2 + $0x19c] sm:$0xf]
    %s2273 = scalar_lea.vmem %s4, 38
    %v2274 = vld [vmem:[%s2273] ss:$8 sm:$0xf]
    %v2276 = vlaneseq
    %v2277 = vshrl.u32 %v2276, 7
    %v2278 = vsub.s32 0, %v2277
    %v2279 = vrot.slane %v2274, %v2278
    %v2289 = vunpack.c.l.b16 %v2265
    %v2290 = vunpack.c.l.b16 %v2266
    %v2291 = vunpack.c.l.b16 %v2267
    %v2292 = vunpack.c.l.b16 %v2268
    %v2293 = vunpack.c.l.b16 %v2269
    %v2294 = vunpack.c.l.b16 %v2270
    %v2295 = vunpack.c.l.b16 %v2271
    %v2296 = vunpack.c.l.b16 %v2272
    %v2297 = vpack.c.b16 %v2290, %v2289
    %v2298 = vpack.c.b16 %v2292, %v2291
    %v2299 = vpack.c.b16 %v2294, %v2293
    %v2300 = vpack.c.b16 %v2296, %v2295
    %v2306 = vsel %vm589, %v2264, 0
    %2308 = vmatprep.subr.bf16.mxu0 0
    %2309 = vmatpush1.bf16.msra.mxu0 0
    %2310 = vmatprep.subr.bf16.mxu0 0
    %2311 = vmatpush1.bf16.msra.mxu0 0
    %2312 = vmatprep.subr.bf16.mxu0 0
    %2313 = vmatpush1.bf16.msra.mxu0 0
    %2314 = vmatprep.subr.bf16.mxu0 0
    %2315 = vmatpush1.bf16.msra.mxu0 0
    %2316 = vmatprep.subr.bf16.mxu0 0
    %2317 = vmatpush1.bf16.msra.mxu0 %v2300
    %2318 = vmatprep.subr.bf16.mxu0 0
    %2319 = vmatpush1.bf16.msra.mxu0 %v2299
    %2320 = vmatprep.subr.bf16.mxu0 0
    %2321 = vmatpush1.bf16.msra.mxu0 %v2298
    %2322 = vmatprep.subr.bf16.mxu0 0
    %2323 = vmatpush1.bf16.msra.mxu0 %v2297
    %2324 = vmatprep.subr.bf16.mxu0 0
    %2325 = vmatpush2.bf16.msra.mxu0 0
    %2326 = vmatprep.subr.bf16.mxu0 0
    %2327 = vmatpush2.bf16.msra.mxu0 0
    %2328 = vmatprep.subr.bf16.mxu0 0
    %2329 = vmatpush2.bf16.msra.mxu0 0
    %2330 = vmatprep.subr.bf16.mxu0 0
    %2331 = vmatpush2.bf16.msra.mxu0 0
    %2332 = vmatprep.subr.bf16.mxu0 0
    %2333 = vmatpush2.bf16.msra.mxu0 0
    %2334 = vmatprep.subr.bf16.mxu0 0
    %2335 = vmatpush2.bf16.msra.mxu0 0
    %2336 = vmatprep.subr.bf16.mxu0 0
    %2337 = vmatpush2.bf16.msra.mxu0 0
    %2338 = vmatprep.subr.bf16.mxu0 0
    %2339 = vmatpush2.bf16.msra.mxu0 0
    %2340 = vmatprep.mubr.bf16.mxu0 0
    %2341 = vmatmul.mubr.bf16.gmra.mxu0 %v2306
    %v2342 = vpop.f32.mrf.mxu0
    %v2343 = vadd.f32 %v2279, %v2342
    %v2344 = vpop.f32.mrf.mxu0
    %v2345 = vpop.f32.mrf.mxu0
    %v2346 = vadd.f32 %v2279, %v2345
    %v2347 = vpop.f32.mrf.mxu0
    %2348 = vdwg.mxu0
    %v2349 = vmul.f32 %v2343, 0.5
    %v2350 = vmul.f32 %v2346, 0.5
    %v2351 = vmul.f32 %v2343, 0.70710677
    %v2352 = vmul.f32 %v2346, 0.70710677
    %v2353 = verf.f32.pop %v2351
    %v2354 = verf.f32.pop %v2352
    %v2355 = vadd.f32 %v2353, 1.0
    %v2356 = vadd.f32 %v2354, 1.0
    %v2357 = vmul.f32 %v2349, %v2355
    %v2358 = vmul.f32 %v2350, %v2356
    %v2359 = vpack.c.bf16 %v2358, %v2357
    %v2360 = vld [vmem:[%s2 + $0x1a0] sm:$0xf]
    %v2361 = vld [vmem:[%s2 + $0x1a4] sm:$0xf]
    %v2362 = vld [vmem:[%s2 + $0x1a8] sm:$0xf]
    %v2363 = vld [vmem:[%s2 + $0x1ac] sm:$0xf]
    %v2364 = vld [vmem:[%s2 + $0x1b0] sm:$0xf]
    %v2365 = vld [vmem:[%s2 + $0x1b4] sm:$0xf]
    %v2366 = vld [vmem:[%s2 + $0x1b8] sm:$0xf]
    %v2367 = vld [vmem:[%s2 + $0x1bc] sm:$0xf]
    %v2368 = vld [vmem:[%s2 + $0x1c0] sm:$0xf]
    %v2369 = vld [vmem:[%s2 + $0x1c4] sm:$0xf]
    %v2370 = vld [vmem:[%s2 + $0x1c8] sm:$0xf]
    %v2371 = vld [vmem:[%s2 + $0x1cc] sm:$0xf]
    %v2372 = vld [vmem:[%s2 + $0x1d0] sm:$0xf]
    %v2373 = vld [vmem:[%s2 + $0x1d4] sm:$0xf]
    %v2374 = vld [vmem:[%s2 + $0x1d8] sm:$0xf]
    %v2375 = vld [vmem:[%s2 + $0x1dc] sm:$0xf]
    %v2392 = vunpack.c.l.b16 %v2360
    %v2393 = vunpack.c.l.b16 %v2361
    %v2394 = vunpack.c.l.b16 %v2362
    %v2395 = vunpack.c.l.b16 %v2363
    %v2396 = vunpack.c.l.b16 %v2364
    %v2397 = vunpack.c.l.b16 %v2365
    %v2398 = vunpack.c.l.b16 %v2366
    %v2399 = vunpack.c.l.b16 %v2367
    %v2400 = vunpack.c.l.b16 %v2368
    %v2401 = vunpack.c.l.b16 %v2369
    %v2402 = vunpack.c.l.b16 %v2370
    %v2403 = vunpack.c.l.b16 %v2371
    %v2404 = vunpack.c.l.b16 %v2372
    %v2405 = vunpack.c.l.b16 %v2373
    %v2406 = vunpack.c.l.b16 %v2374
    %v2407 = vunpack.c.l.b16 %v2375
    %v2408 = vpack.c.b16 %v2393, %v2392
    %v2409 = vpack.c.b16 %v2395, %v2394
    %v2410 = vpack.c.b16 %v2397, %v2396
    %v2411 = vpack.c.b16 %v2399, %v2398
    %v2412 = vpack.c.b16 %v2401, %v2400
    %v2413 = vpack.c.b16 %v2403, %v2402
    %v2414 = vpack.c.b16 %v2405, %v2404
    %v2415 = vpack.c.b16 %v2407, %v2406
    %2424 = vmatprep.subr.bf16.mxu0 0
    %2425 = vmatpush1.bf16.msra.mxu0 %v2415
    %2426 = vmatprep.subr.bf16.mxu0 0
    %2427 = vmatpush1.bf16.msra.mxu0 %v2414
    %2428 = vmatprep.subr.bf16.mxu0 0
    %2429 = vmatpush1.bf16.msra.mxu0 %v2413
    %2430 = vmatprep.subr.bf16.mxu0 0
    %2431 = vmatpush1.bf16.msra.mxu0 %v2412
    %2432 = vmatprep.subr.bf16.mxu0 0
    %2433 = vmatpush1.bf16.msra.mxu0 %v2411
    %2434 = vmatprep.subr.bf16.mxu0 0
    %2435 = vmatpush1.bf16.msra.mxu0 %v2410
    %2436 = vmatprep.subr.bf16.mxu0 0
    %2437 = vmatpush1.bf16.msra.mxu0 %v2409
    %2438 = vmatprep.subr.bf16.mxu0 0
    %2439 = vmatpush1.bf16.msra.mxu0 %v2408
    %2440 = vmatprep.subr.bf16.mxu0 0
    %2441 = vmatpush2.bf16.msra.mxu0 0
    %2442 = vmatprep.subr.bf16.mxu0 0
    %2443 = vmatpush2.bf16.msra.mxu0 0
    %2444 = vmatprep.subr.bf16.mxu0 0
    %2445 = vmatpush2.bf16.msra.mxu0 0
    %2446 = vmatprep.subr.bf16.mxu0 0
    %2447 = vmatpush2.bf16.msra.mxu0 0
    %2448 = vmatprep.subr.bf16.mxu0 0
    %2449 = vmatpush2.bf16.msra.mxu0 0
    %2450 = vmatprep.subr.bf16.mxu0 0
    %2451 = vmatpush2.bf16.msra.mxu0 0
    %2452 = vmatprep.subr.bf16.mxu0 0
    %2453 = vmatpush2.bf16.msra.mxu0 0
    %2454 = vmatprep.subr.bf16.mxu0 0
    %2455 = vmatpush2.bf16.msra.mxu0 0
    %2456 = vmatprep.mubr.bf16.mxu0 0
    %2457 = vmatmul.mubr.bf16.gmra.mxu0 %v2359
    %v2458 = vpop.f32.mrf.mxu0
    %v2459 = vadd.f32 0.0, %v2458
    %v2460 = vpop.f32.mrf.mxu0
    %v2461 = vpop.f32.mrf.mxu0
    %v2462 = vadd.f32 0.0, %v2461
    %v2463 = vpop.f32.mrf.mxu0
    %2464 = vdwg.mxu0
    %s2465 = scalar_lea.vmem %s4, 39
    %v2466 = vld [vmem:[%s2465] ss:$8 sm:$0xf]
    %v2468 = vlaneseq
    %v2469 = vshrl.u32 %v2468, 7
    %v2470 = vsub.s32 0, %v2469
    %v2471 = vrot.slane %v2466, %v2470
    %v2473 = vadd.f32 %v2459, %v2471
    %v2474 = vadd.f32 %v2462, %v2471
    %v2475 = vadd.f32 %v2216, %v2473
    %v2476 = vadd.f32 %v2217, %v2474
    %s2477 = scalar_lea.vmem %s4, 64
    %v2478 = vld [vmem:[%s2477] ss:$8 sm:$0xf]
    %s2479 = scalar_lea.vmem %s4, 65
    %v2480 = vld [vmem:[%s2479] ss:$8 sm:$0xf]
    %v2481 = vsel %vm589, %v2475, 0.0
    %2482 = vadd.xlane.f32.xlu0 %v2481
    %v2483 = vpop.xlane.xlu0 %2482
    %v2484 = vsel %vm589, %v2476, 0.0
    %2485 = vadd.xlane.f32.xlu0 %v2484
    %v2486 = vpop.xlane.xlu0 %2485
    %v2487 = vmul.f32 %v2483, %v596
    %v2488 = vmul.f32 %v2486, %v596
    %v2489 = vsub.f32 %v2475, %v2487
    %v2490 = vsub.f32 %v2476, %v2488
    %v2491 = vmul.f32 %v2489, %v2489
    %v2492 = vmul.f32 %v2490, %v2490
    %v2493 = vsel %vm589, %v2491, 0.0
    %2494 = vadd.xlane.f32.xlu0 %v2493
    %v2495 = vpop.xlane.xlu0 %2494
    %v2496 = vsel %vm589, %v2492, 0.0
    %2497 = vadd.xlane.f32.xlu0 %v2496
    %v2498 = vpop.xlane.xlu0 %2497
    %v2499 = vmul.f32 %v2495, %v596
    %v2500 = vmul.f32 %v2498, %v596
    %v2501 = vadd.f32 %v2499, 1e-12
    %v2502 = vadd.f32 %v2500, 1e-12
    %v2503 = vrsqrt.pop %v2501
    %v2504 = vrsqrt.pop %v2502
    %v2505 = vmul.f32 %v2489, %v2503
    %v2506 = vmul.f32 %v2490, %v2504
    %v2508 = vlaneseq
    %v2509 = vshrl.u32 %v2508, 7
    %v2510 = vsub.s32 0, %v2509
    %v2511 = vrot.slane %v2478, %v2510
    %v2513 = vmul.f32 %v2505, %v2511
    %v2514 = vmul.f32 %v2506, %v2511
    %v2516 = vlaneseq
    %v2517 = vshrl.u32 %v2516, 7
    %v2518 = vsub.s32 0, %v2517
    %v2519 = vrot.slane %v2480, %v2518
    %v2521 = vadd.f32 %v2513, %v2519
    %v2522 = vadd.f32 %v2514, %v2519
    %s2523 = scalar_lea.vmem [#allocation2], 256
    %v2524 = vld [vmem:[%s2523] sm:$0xff]
    %v2525 = vld [vmem:[%s2523 + $0x8] sm:$0xff]
    %v2526 = vld [vmem:[%s2523 + $0x10] sm:$0xff]
    %v2527 = vld [vmem:[%s2523 + $0x18] sm:$0xff]
    %v2528 = vld [vmem:[%s2523 + $0x20] sm:$0xff]
    %v2529 = vld [vmem:[%s2523 + $0x28] sm:$0xff]
    %v2530 = vld [vmem:[%s2523 + $0x30] sm:$0xff]
    %v2531 = vld [vmem:[%s2523 + $0x38] sm:$0xff]
    %v2532 = vld [vmem:[%s2523 + $0x40] sm:$0xff]
    %v2533 = vld [vmem:[%s2523 + $0x48] sm:$0xff]
    %v2534 = vld [vmem:[%s2523 + $0x50] sm:$0xff]
    %v2535 = vld [vmem:[%s2523 + $0x58] sm:$0xff]
    %v2536 = vld [vmem:[%s2523 + $0x60] sm:$0xff]
    %v2537 = vld [vmem:[%s2523 + $0x68] sm:$0xff]
    %v2538 = vld [vmem:[%s2523 + $0x70] sm:$0xff]
    %v2539 = vld [vmem:[%s2523 + $0x78] sm:$0xff]
    %s2540 = scalar_lea.vmem %s4, 66
    %v2541 = vld [vmem:[%s2540] ss:$8 sm:$0xf]
    %v2543 = vlaneseq
    %v2544 = vshrl.u32 %v2543, 7
    %v2545 = vsub.s32 0, %v2544
    %v2546 = vrot.slane %v2541, %v2545
    %v2547 = vlaneseq
    %v2548 = vshrl.u32 %v2547, 7
    %v2549 = vsub.s32 1, %v2548
    %v2550 = vrot.slane %v2541, %v2549
    %v2554 = vsel %vm589, %v2521, 0
    %v2557 = vsel %vm589, %v2522, 0
    %2559 = vmatprep.subr.mxu0 0.0
    %2560 = vmatpush1.msra.mxu0 0.0
    %2561 = vmatprep.subr.mxu0 0.0
    %2562 = vmatpush1.msra.mxu0 0.0
    %2563 = vmatprep.subr.mxu0 0.0
    %2564 = vmatpush1.msra.mxu0 0.0
    %2565 = vmatprep.subr.mxu0 0.0
    %2566 = vmatpush1.msra.mxu0 0.0
    %2567 = vmatprep.subr.mxu0 0.0
    %2568 = vmatpush1.msra.mxu0 0.0
    %2569 = vmatprep.subr.mxu0 0.0
    %2570 = vmatpush1.msra.mxu0 0.0
    %2571 = vmatprep.subr.mxu0 0.0
    %2572 = vmatpush1.msra.mxu0 0.0
    %2573 = vmatprep.subr.mxu0 0.0
    %2574 = vmatpush1.msra.mxu0 0.0
    %2575 = vmatprep.subr.mxu0 %v2539
    %2576 = vmatpush1.msra.mxu0 %v2538
    %2577 = vmatprep.subr.mxu0 %v2537
    %2578 = vmatpush1.msra.mxu0 %v2536
    %2579 = vmatprep.subr.mxu0 %v2535
    %2580 = vmatpush1.msra.mxu0 %v2534
    %2581 = vmatprep.subr.mxu0 %v2533
    %2582 = vmatpush1.msra.mxu0 %v2532
    %2583 = vmatprep.subr.mxu0 %v2531
    %2584 = vmatpush1.msra.mxu0 %v2530
    %2585 = vmatprep.subr.mxu0 %v2529
    %2586 = vmatpush1.msra.mxu0 %v2528
    %2587 = vmatprep.subr.mxu0 %v2527
    %2588 = vmatpush1.msra.mxu0 %v2526
    %2589 = vmatprep.subr.mxu0 %v2525
    %2590 = vmatpush1.msra.mxu0 %v2524
    %2591 = vmatprep.subr.mxu0 0.0
    %2592 = vmatpush2.msra.mxu0 0.0
    %2593 = vmatprep.subr.mxu0 0.0
    %2594 = vmatpush2.msra.mxu0 0.0
    %2595 = vmatprep.subr.mxu0 0.0
    %2596 = vmatpush2.msra.mxu0 0.0
    %2597 = vmatprep.subr.mxu0 0.0
    %2598 = vmatpush2.msra.mxu0 0.0
    %2599 = vmatprep.subr.mxu0 0.0
    %2600 = vmatpush2.msra.mxu0 0.0
    %2601 = vmatprep.subr.mxu0 0.0
    %2602 = vmatpush2.msra.mxu0 0.0
    %2603 = vmatprep.subr.mxu0 0.0
    %2604 = vmatpush2.msra.mxu0 0.0
    %2605 = vmatprep.subr.mxu0 0.0
    %2606 = vmatpush2.msra.mxu0 0.0
    %2607 = vmatprep.subr.mxu0 0.0
    %2608 = vmatpush2.msra.mxu0 0.0
    %2609 = vmatprep.subr.mxu0 0.0
    %2610 = vmatpush2.msra.mxu0 0.0
    %2611 = vmatprep.subr.mxu0 0.0
    %2612 = vmatpush2.msra.mxu0 0.0
    %2613 = vmatprep.subr.mxu0 0.0
    %2614 = vmatpush2.msra.mxu0 0.0
    %2615 = vmatprep.subr.mxu0 0.0
    %2616 = vmatpush2.msra.mxu0 0.0
    %2617 = vmatprep.subr.mxu0 0.0
    %2618 = vmatpush2.msra.mxu0 0.0
    %2619 = vmatprep.subr.mxu0 0.0
    %2620 = vmatpush2.msra.mxu0 0.0
    %2621 = vmatprep.subr.mxu0 0.0
    %2622 = vmatpush2.msra.mxu0 0.0
    %2623 = vmatprep.mubr.f32.mxu0 0.0
    %2624 = vmatmul.mubr.f32.gmra.mxu0 %v2554
    %v2625 = vpop.f32.mrf.mxu0
    %v2626 = vadd.f32 %v2546, %v2625
    %v2627 = vpop.f32.mrf.mxu0
    %v2628 = vadd.f32 %v2550, %v2627
    %2629 = vmatprep.mubr.f32.mxu0 0.0
    %2630 = vmatmul.mubr.f32.gmra.mxu0 %v2557
    %v2631 = vpop.f32.mrf.mxu0
    %v2632 = vadd.f32 %v2546, %v2631
    %v2633 = vpop.f32.mrf.mxu0
    %v2634 = vadd.f32 %v2550, %v2633
    %2635 = vdwg.mxu0
    %2638 = vrot.lane.b32.xlu0 %v2626, 112
    %v2639 = vpop.permute.xlu0 %2638
    %2640 = vrot.lane.b32.xlu0 %v2632, 112
    %v2641 = vpop.permute.xlu0 %2640
    %2642 = vrot.lane.b32.xlu0 %v2626, 96
    %v2643 = vpop.permute.xlu0 %2642
    %2644 = vrot.lane.b32.xlu0 %v2632, 96
    %v2645 = vpop.permute.xlu0 %2644
    %2646 = vrot.lane.b32.xlu0 %v2626, 80
    %v2647 = vpop.permute.xlu0 %2646
    %2648 = vrot.lane.b32.xlu0 %v2632, 80
    %v2649 = vpop.permute.xlu0 %2648
    %2652 = vrot.lane.b32.xlu0 %v2628, 112
    %v2653 = vpop.permute.xlu0 %2652
    %2654 = vrot.lane.b32.xlu0 %v2634, 112
    %v2655 = vpop.permute.xlu0 %2654
    %2658 = vrot.lane.b32.xlu0 %v2628, 96
    %v2659 = vpop.permute.xlu0 %2658
    %2660 = vrot.lane.b32.xlu0 %v2634, 96
    %v2661 = vpop.permute.xlu0 %2660
    %2664 = vrot.lane.b32.xlu0 %v2628, 80
    %v2665 = vpop.permute.xlu0 %2664
    %2666 = vrot.lane.b32.xlu0 %v2634, 80
    %v2667 = vpop.permute.xlu0 %2666
    %2670 = vrot.lane.b32.xlu0 %v2626, 64
    %v2671 = vpop.permute.xlu0 %2670
    %v2672 = vsel %vm781, %v2626, 0
    %v2674 = vsel %vm781, %v2671, 0
    %2676 = vmatprep.subr.mxu0 0.0
    %2677 = vmatpush1.xpose.msra.mxu0 0.0
    %2678 = vmatprep.subr.mxu0 0.0
    %2679 = vmatpush1.xpose.msra.mxu0 0.0
    %2680 = vmatprep.subr.mxu0 0.0
    %2681 = vmatpush1.xpose.msra.mxu0 0.0
    %2682 = vmatprep.subr.mxu0 0.0
    %2683 = vmatpush1.xpose.msra.mxu0 0.0
    %2684 = vmatprep.subr.mxu0 0.0
    %2685 = vmatpush1.xpose.msra.mxu0 0.0
    %2686 = vmatprep.subr.mxu0 0.0
    %2687 = vmatpush1.xpose.msra.mxu0 0.0
    %2688 = vmatprep.subr.mxu0 0.0
    %2689 = vmatpush1.xpose.msra.mxu0 0.0
    %2690 = vmatprep.subr.mxu0 0.0
    %2691 = vmatpush1.xpose.msra.mxu0 0.0
    %2692 = vmatprep.subr.mxu0 0.0
    %2693 = vmatpush1.xpose.msra.mxu0 0.0
    %2694 = vmatprep.subr.mxu0 0.0
    %2695 = vmatpush1.xpose.msra.mxu0 0.0
    %2696 = vmatprep.subr.mxu0 0.0
    %2697 = vmatpush1.xpose.msra.mxu0 0.0
    %2698 = vmatprep.subr.mxu0 0.0
    %2699 = vmatpush1.xpose.msra.mxu0 0.0
    %2700 = vmatprep.subr.mxu0 0.0
    %2701 = vmatpush1.xpose.msra.mxu0 0.0
    %2702 = vmatprep.subr.mxu0 0.0
    %2703 = vmatpush1.xpose.msra.mxu0 0.0
    %2704 = vmatprep.subr.mxu0 0.0
    %2705 = vmatpush1.xpose.msra.mxu0 0.0
    %2706 = vmatprep.subr.mxu0 0.0
    %2707 = vmatpush1.xpose.msra.mxu0 %v2674
    %2708 = vmatprep.subr.mxu0 0.0
    %2709 = vmatpush2.xpose.msra.mxu0 0.0
    %2710 = vmatprep.subr.mxu0 0.0
    %2711 = vmatpush2.xpose.msra.mxu0 0.0
    %2712 = vmatprep.subr.mxu0 0.0
    %2713 = vmatpush2.xpose.msra.mxu0 0.0
    %2714 = vmatprep.subr.mxu0 0.0
    %2715 = vmatpush2.xpose.msra.mxu0 0.0
    %2716 = vmatprep.subr.mxu0 0.0
    %2717 = vmatpush2.xpose.msra.mxu0 0.0
    %2718 = vmatprep.subr.mxu0 0.0
    %2719 = vmatpush2.xpose.msra.mxu0 0.0
    %2720 = vmatprep.subr.mxu0 0.0
    %2721 = vmatpush2.xpose.msra.mxu0 0.0
    %2722 = vmatprep.subr.mxu0 0.0
    %2723 = vmatpush2.xpose.msra.mxu0 0.0
    %2724 = vmatprep.subr.mxu0 0.0
    %2725 = vmatpush2.xpose.msra.mxu0 0.0
    %2726 = vmatprep.subr.mxu0 0.0
    %2727 = vmatpush2.xpose.msra.mxu0 0.0
    %2728 = vmatprep.subr.mxu0 0.0
    %2729 = vmatpush2.xpose.msra.mxu0 0.0
    %2730 = vmatprep.subr.mxu0 0.0
    %2731 = vmatpush2.xpose.msra.mxu0 0.0
    %2732 = vmatprep.subr.mxu0 0.0
    %2733 = vmatpush2.xpose.msra.mxu0 0.0
    %2734 = vmatprep.subr.mxu0 0.0
    %2735 = vmatpush2.xpose.msra.mxu0 0.0
    %2736 = vmatprep.subr.mxu0 0.0
    %2737 = vmatpush2.xpose.msra.mxu0 0.0
    %2738 = vmatprep.subr.mxu0 0.0
    %2739 = vmatpush2.xpose.msra.mxu0 0.0
    %2740 = vmatprep.mubr.f32.mxu0 0.0
    %2741 = vmatmul.mubr.f32.gmra.mxu0 %v2672
    %v2742 = vpop.f32.mrf.mxu0
    %v2743 = vadd.f32 0.0, %v2742
    %v2744 = vpop.f32.mrf.mxu0
    %2745 = vdwg.mxu0
    %2746 = vrot.lane.b32.xlu0 %v2632, 64
    %v2747 = vpop.permute.xlu0 %2746
    %v2748 = vsel %vm781, %v2632, 0
    %v2750 = vsel %vm781, %v2747, 0
    %2752 = vmatprep.subr.mxu0 0.0
    %2753 = vmatpush1.xpose.msra.mxu0 0.0
    %2754 = vmatprep.subr.mxu0 0.0
    %2755 = vmatpush1.xpose.msra.mxu0 0.0
    %2756 = vmatprep.subr.mxu0 0.0
    %2757 = vmatpush1.xpose.msra.mxu0 0.0
    %2758 = vmatprep.subr.mxu0 0.0
    %2759 = vmatpush1.xpose.msra.mxu0 0.0
    %2760 = vmatprep.subr.mxu0 0.0
    %2761 = vmatpush1.xpose.msra.mxu0 0.0
    %2762 = vmatprep.subr.mxu0 0.0
    %2763 = vmatpush1.xpose.msra.mxu0 0.0
    %2764 = vmatprep.subr.mxu0 0.0
    %2765 = vmatpush1.xpose.msra.mxu0 0.0
    %2766 = vmatprep.subr.mxu0 0.0
    %2767 = vmatpush1.xpose.msra.mxu0 0.0
    %2768 = vmatprep.subr.mxu0 0.0
    %2769 = vmatpush1.xpose.msra.mxu0 0.0
    %2770 = vmatprep.subr.mxu0 0.0
    %2771 = vmatpush1.xpose.msra.mxu0 0.0
    %2772 = vmatprep.subr.mxu0 0.0
    %2773 = vmatpush1.xpose.msra.mxu0 0.0
    %2774 = vmatprep.subr.mxu0 0.0
    %2775 = vmatpush1.xpose.msra.mxu0 0.0
    %2776 = vmatprep.subr.mxu0 0.0
    %2777 = vmatpush1.xpose.msra.mxu0 0.0
    %2778 = vmatprep.subr.mxu0 0.0
    %2779 = vmatpush1.xpose.msra.mxu0 0.0
    %2780 = vmatprep.subr.mxu0 0.0
    %2781 = vmatpush1.xpose.msra.mxu0 0.0
    %2782 = vmatprep.subr.mxu0 0.0
    %2783 = vmatpush1.xpose.msra.mxu0 %v2750
    %2784 = vmatprep.subr.mxu0 0.0
    %2785 = vmatpush2.xpose.msra.mxu0 0.0
    %2786 = vmatprep.subr.mxu0 0.0
    %2787 = vmatpush2.xpose.msra.mxu0 0.0
    %2788 = vmatprep.subr.mxu0 0.0
    %2789 = vmatpush2.xpose.msra.mxu0 0.0
    %2790 = vmatprep.subr.mxu0 0.0
    %2791 = vmatpush2.xpose.msra.mxu0 0.0
    %2792 = vmatprep.subr.mxu0 0.0
    %2793 = vmatpush2.xpose.msra.mxu0 0.0
    %2794 = vmatprep.subr.mxu0 0.0
    %2795 = vmatpush2.xpose.msra.mxu0 0.0
    %2796 = vmatprep.subr.mxu0 0.0
    %2797 = vmatpush2.xpose.msra.mxu0 0.0
    %2798 = vmatprep.subr.mxu0 0.0
    %2799 = vmatpush2.xpose.msra.mxu0 0.0
    %2800 = vmatprep.subr.mxu0 0.0
    %2801 = vmatpush2.xpose.msra.mxu0 0.0
    %2802 = vmatprep.subr.mxu0 0.0
    %2803 = vmatpush2.xpose.msra.mxu0 0.0
    %2804 = vmatprep.subr.mxu0 0.0
    %2805 = vmatpush2.xpose.msra.mxu0 0.0
    %2806 = vmatprep.subr.mxu0 0.0
    %2807 = vmatpush2.xpose.msra.mxu0 0.0
    %2808 = vmatprep.subr.mxu0 0.0
    %2809 = vmatpush2.xpose.msra.mxu0 0.0
    %2810 = vmatprep.subr.mxu0 0.0
    %2811 = vmatpush2.xpose.msra.mxu0 0.0
    %2812 = vmatprep.subr.mxu0 0.0
    %2813 = vmatpush2.xpose.msra.mxu0 0.0
    %2814 = vmatprep.subr.mxu0 0.0
    %2815 = vmatpush2.xpose.msra.mxu0 0.0
    %2816 = vmatprep.mubr.f32.mxu0 0.0
    %2817 = vmatmul.mubr.f32.gmra.mxu0 %v2748
    %v2818 = vpop.f32.mrf.mxu0
    %v2819 = vadd.f32 0.0, %v2818
    %v2820 = vpop.f32.mrf.mxu0
    %2821 = vdwg.mxu0
    %2822 = vrot.lane.b32.xlu0 %v2639, 64
    %v2823 = vpop.permute.xlu0 %2822
    %v2824 = vsel %vm781, %v2639, 0
    %v2826 = vsel %vm781, %v2823, 0
    %2828 = vmatprep.subr.mxu0 0.0
    %2829 = vmatpush1.xpose.msra.mxu0 0.0
    %2830 = vmatprep.subr.mxu0 0.0
    %2831 = vmatpush1.xpose.msra.mxu0 0.0
    %2832 = vmatprep.subr.mxu0 0.0
    %2833 = vmatpush1.xpose.msra.mxu0 0.0
    %2834 = vmatprep.subr.mxu0 0.0
    %2835 = vmatpush1.xpose.msra.mxu0 0.0
    %2836 = vmatprep.subr.mxu0 0.0
    %2837 = vmatpush1.xpose.msra.mxu0 0.0
    %2838 = vmatprep.subr.mxu0 0.0
    %2839 = vmatpush1.xpose.msra.mxu0 0.0
    %2840 = vmatprep.subr.mxu0 0.0
    %2841 = vmatpush1.xpose.msra.mxu0 0.0
    %2842 = vmatprep.subr.mxu0 0.0
    %2843 = vmatpush1.xpose.msra.mxu0 0.0
    %2844 = vmatprep.subr.mxu0 0.0
    %2845 = vmatpush1.xpose.msra.mxu0 0.0
    %2846 = vmatprep.subr.mxu0 0.0
    %2847 = vmatpush1.xpose.msra.mxu0 0.0
    %2848 = vmatprep.subr.mxu0 0.0
    %2849 = vmatpush1.xpose.msra.mxu0 0.0
    %2850 = vmatprep.subr.mxu0 0.0
    %2851 = vmatpush1.xpose.msra.mxu0 0.0
    %2852 = vmatprep.subr.mxu0 0.0
    %2853 = vmatpush1.xpose.msra.mxu0 0.0
    %2854 = vmatprep.subr.mxu0 0.0
    %2855 = vmatpush1.xpose.msra.mxu0 0.0
    %2856 = vmatprep.subr.mxu0 0.0
    %2857 = vmatpush1.xpose.msra.mxu0 0.0
    %2858 = vmatprep.subr.mxu0 0.0
    %2859 = vmatpush1.xpose.msra.mxu0 %v2826
    %2860 = vmatprep.subr.mxu0 0.0
    %2861 = vmatpush2.xpose.msra.mxu0 0.0
    %2862 = vmatprep.subr.mxu0 0.0
    %2863 = vmatpush2.xpose.msra.mxu0 0.0
    %2864 = vmatprep.subr.mxu0 0.0
    %2865 = vmatpush2.xpose.msra.mxu0 0.0
    %2866 = vmatprep.subr.mxu0 0.0
    %2867 = vmatpush2.xpose.msra.mxu0 0.0
    %2868 = vmatprep.subr.mxu0 0.0
    %2869 = vmatpush2.xpose.msra.mxu0 0.0
    %2870 = vmatprep.subr.mxu0 0.0
    %2871 = vmatpush2.xpose.msra.mxu0 0.0
    %2872 = vmatprep.subr.mxu0 0.0
    %2873 = vmatpush2.xpose.msra.mxu0 0.0
    %2874 = vmatprep.subr.mxu0 0.0
    %2875 = vmatpush2.xpose.msra.mxu0 0.0
    %2876 = vmatprep.subr.mxu0 0.0
    %2877 = vmatpush2.xpose.msra.mxu0 0.0
    %2878 = vmatprep.subr.mxu0 0.0
    %2879 = vmatpush2.xpose.msra.mxu0 0.0
    %2880 = vmatprep.subr.mxu0 0.0
    %2881 = vmatpush2.xpose.msra.mxu0 0.0
    %2882 = vmatprep.subr.mxu0 0.0
    %2883 = vmatpush2.xpose.msra.mxu0 0.0
    %2884 = vmatprep.subr.mxu0 0.0
    %2885 = vmatpush2.xpose.msra.mxu0 0.0
    %2886 = vmatprep.subr.mxu0 0.0
    %2887 = vmatpush2.xpose.msra.mxu0 0.0
    %2888 = vmatprep.subr.mxu0 0.0
    %2889 = vmatpush2.xpose.msra.mxu0 0.0
    %2890 = vmatprep.subr.mxu0 0.0
    %2891 = vmatpush2.xpose.msra.mxu0 0.0
    %2892 = vmatprep.mubr.f32.mxu0 0.0
    %2893 = vmatmul.mubr.f32.gmra.mxu0 %v2824
    %v2894 = vpop.f32.mrf.mxu0
    %v2895 = vadd.f32 0.0, %v2894
    %v2896 = vpop.f32.mrf.mxu0
    %2897 = vdwg.mxu0
    %2898 = vrot.lane.b32.xlu0 %v2641, 64
    %v2899 = vpop.permute.xlu0 %2898
    %v2900 = vsel %vm781, %v2641, 0
    %v2902 = vsel %vm781, %v2899, 0
    %2904 = vmatprep.subr.mxu0 0.0
    %2905 = vmatpush1.xpose.msra.mxu0 0.0
    %2906 = vmatprep.subr.mxu0 0.0
    %2907 = vmatpush1.xpose.msra.mxu0 0.0
    %2908 = vmatprep.subr.mxu0 0.0
    %2909 = vmatpush1.xpose.msra.mxu0 0.0
    %2910 = vmatprep.subr.mxu0 0.0
    %2911 = vmatpush1.xpose.msra.mxu0 0.0
    %2912 = vmatprep.subr.mxu0 0.0
    %2913 = vmatpush1.xpose.msra.mxu0 0.0
    %2914 = vmatprep.subr.mxu0 0.0
    %2915 = vmatpush1.xpose.msra.mxu0 0.0
    %2916 = vmatprep.subr.mxu0 0.0
    %2917 = vmatpush1.xpose.msra.mxu0 0.0
    %2918 = vmatprep.subr.mxu0 0.0
    %2919 = vmatpush1.xpose.msra.mxu0 0.0
    %2920 = vmatprep.subr.mxu0 0.0
    %2921 = vmatpush1.xpose.msra.mxu0 0.0
    %2922 = vmatprep.subr.mxu0 0.0
    %2923 = vmatpush1.xpose.msra.mxu0 0.0
    %2924 = vmatprep.subr.mxu0 0.0
    %2925 = vmatpush1.xpose.msra.mxu0 0.0
    %2926 = vmatprep.subr.mxu0 0.0
    %2927 = vmatpush1.xpose.msra.mxu0 0.0
    %2928 = vmatprep.subr.mxu0 0.0
    %2929 = vmatpush1.xpose.msra.mxu0 0.0
    %2930 = vmatprep.subr.mxu0 0.0
    %2931 = vmatpush1.xpose.msra.mxu0 0.0
    %2932 = vmatprep.subr.mxu0 0.0
    %2933 = vmatpush1.xpose.msra.mxu0 0.0
    %2934 = vmatprep.subr.mxu0 0.0
    %2935 = vmatpush1.xpose.msra.mxu0 %v2902
    %2936 = vmatprep.subr.mxu0 0.0
    %2937 = vmatpush2.xpose.msra.mxu0 0.0
    %2938 = vmatprep.subr.mxu0 0.0
    %2939 = vmatpush2.xpose.msra.mxu0 0.0
    %2940 = vmatprep.subr.mxu0 0.0
    %2941 = vmatpush2.xpose.msra.mxu0 0.0
    %2942 = vmatprep.subr.mxu0 0.0
    %2943 = vmatpush2.xpose.msra.mxu0 0.0
    %2944 = vmatprep.subr.mxu0 0.0
    %2945 = vmatpush2.xpose.msra.mxu0 0.0
    %2946 = vmatprep.subr.mxu0 0.0
    %2947 = vmatpush2.xpose.msra.mxu0 0.0
    %2948 = vmatprep.subr.mxu0 0.0
    %2949 = vmatpush2.xpose.msra.mxu0 0.0
    %2950 = vmatprep.subr.mxu0 0.0
    %2951 = vmatpush2.xpose.msra.mxu0 0.0
    %2952 = vmatprep.subr.mxu0 0.0
    %2953 = vmatpush2.xpose.msra.mxu0 0.0
    %2954 = vmatprep.subr.mxu0 0.0
    %2955 = vmatpush2.xpose.msra.mxu0 0.0
    %2956 = vmatprep.subr.mxu0 0.0
    %2957 = vmatpush2.xpose.msra.mxu0 0.0
    %2958 = vmatprep.subr.mxu0 0.0
    %2959 = vmatpush2.xpose.msra.mxu0 0.0
    %2960 = vmatprep.subr.mxu0 0.0
    %2961 = vmatpush2.xpose.msra.mxu0 0.0
    %2962 = vmatprep.subr.mxu0 0.0
    %2963 = vmatpush2.xpose.msra.mxu0 0.0
    %2964 = vmatprep.subr.mxu0 0.0
    %2965 = vmatpush2.xpose.msra.mxu0 0.0
    %2966 = vmatprep.subr.mxu0 0.0
    %2967 = vmatpush2.xpose.msra.mxu0 0.0
    %2968 = vmatprep.mubr.f32.mxu0 0.0
    %2969 = vmatmul.mubr.f32.gmra.mxu0 %v2900
    %v2970 = vpop.f32.mrf.mxu0
    %v2971 = vadd.f32 0.0, %v2970
    %v2972 = vpop.f32.mrf.mxu0
    %2973 = vdwg.mxu0
    %2974 = vrot.lane.b32.xlu0 %v2643, 64
    %v2975 = vpop.permute.xlu0 %2974
    %v2976 = vsel %vm781, %v2643, 0
    %v2978 = vsel %vm781, %v2975, 0
    %2980 = vmatprep.subr.mxu0 0.0
    %2981 = vmatpush1.xpose.msra.mxu0 0.0
    %2982 = vmatprep.subr.mxu0 0.0
    %2983 = vmatpush1.xpose.msra.mxu0 0.0
    %2984 = vmatprep.subr.mxu0 0.0
    %2985 = vmatpush1.xpose.msra.mxu0 0.0
    %2986 = vmatprep.subr.mxu0 0.0
    %2987 = vmatpush1.xpose.msra.mxu0 0.0
    %2988 = vmatprep.subr.mxu0 0.0
    %2989 = vmatpush1.xpose.msra.mxu0 0.0
    %2990 = vmatprep.subr.mxu0 0.0
    %2991 = vmatpush1.xpose.msra.mxu0 0.0
    %2992 = vmatprep.subr.mxu0 0.0
    %2993 = vmatpush1.xpose.msra.mxu0 0.0
    %2994 = vmatprep.subr.mxu0 0.0
    %2995 = vmatpush1.xpose.msra.mxu0 0.0
    %2996 = vmatprep.subr.mxu0 0.0
    %2997 = vmatpush1.xpose.msra.mxu0 0.0
    %2998 = vmatprep.subr.mxu0 0.0
    %2999 = vmatpush1.xpose.msra.mxu0 0.0
    %3000 = vmatprep.subr.mxu0 0.0
    %3001 = vmatpush1.xpose.msra.mxu0 0.0
    %3002 = vmatprep.subr.mxu0 0.0
    %3003 = vmatpush1.xpose.msra.mxu0 0.0
    %3004 = vmatprep.subr.mxu0 0.0
    %3005 = vmatpush1.xpose.msra.mxu0 0.0
    %3006 = vmatprep.subr.mxu0 0.0
    %3007 = vmatpush1.xpose.msra.mxu0 0.0
    %3008 = vmatprep.subr.mxu0 0.0
    %3009 = vmatpush1.xpose.msra.mxu0 0.0
    %3010 = vmatprep.subr.mxu0 0.0
    %3011 = vmatpush1.xpose.msra.mxu0 %v2978
    %3012 = vmatprep.subr.mxu0 0.0
    %3013 = vmatpush2.xpose.msra.mxu0 0.0
    %3014 = vmatprep.subr.mxu0 0.0
    %3015 = vmatpush2.xpose.msra.mxu0 0.0
    %3016 = vmatprep.subr.mxu0 0.0
    %3017 = vmatpush2.xpose.msra.mxu0 0.0
    %3018 = vmatprep.subr.mxu0 0.0
    %3019 = vmatpush2.xpose.msra.mxu0 0.0
    %3020 = vmatprep.subr.mxu0 0.0
    %3021 = vmatpush2.xpose.msra.mxu0 0.0
    %3022 = vmatprep.subr.mxu0 0.0
    %3023 = vmatpush2.xpose.msra.mxu0 0.0
    %3024 = vmatprep.subr.mxu0 0.0
    %3025 = vmatpush2.xpose.msra.mxu0 0.0
    %3026 = vmatprep.subr.mxu0 0.0
    %3027 = vmatpush2.xpose.msra.mxu0 0.0
    %3028 = vmatprep.subr.mxu0 0.0
    %3029 = vmatpush2.xpose.msra.mxu0 0.0
    %3030 = vmatprep.subr.mxu0 0.0
    %3031 = vmatpush2.xpose.msra.mxu0 0.0
    %3032 = vmatprep.subr.mxu0 0.0
    %3033 = vmatpush2.xpose.msra.mxu0 0.0
    %3034 = vmatprep.subr.mxu0 0.0
    %3035 = vmatpush2.xpose.msra.mxu0 0.0
    %3036 = vmatprep.subr.mxu0 0.0
    %3037 = vmatpush2.xpose.msra.mxu0 0.0
    %3038 = vmatprep.subr.mxu0 0.0
    %3039 = vmatpush2.xpose.msra.mxu0 0.0
    %3040 = vmatprep.subr.mxu0 0.0
    %3041 = vmatpush2.xpose.msra.mxu0 0.0
    %3042 = vmatprep.subr.mxu0 0.0
    %3043 = vmatpush2.xpose.msra.mxu0 0.0
    %3044 = vmatprep.mubr.f32.mxu0 0.0
    %3045 = vmatmul.mubr.f32.gmra.mxu0 %v2976
    %v3046 = vpop.f32.mrf.mxu0
    %v3047 = vadd.f32 0.0, %v3046
    %v3048 = vpop.f32.mrf.mxu0
    %3049 = vdwg.mxu0
    %3050 = vrot.lane.b32.xlu0 %v2645, 64
    %v3051 = vpop.permute.xlu0 %3050
    %v3052 = vsel %vm781, %v2645, 0
    %v3054 = vsel %vm781, %v3051, 0
    %3056 = vmatprep.subr.mxu0 0.0
    %3057 = vmatpush1.xpose.msra.mxu0 0.0
    %3058 = vmatprep.subr.mxu0 0.0
    %3059 = vmatpush1.xpose.msra.mxu0 0.0
    %3060 = vmatprep.subr.mxu0 0.0
    %3061 = vmatpush1.xpose.msra.mxu0 0.0
    %3062 = vmatprep.subr.mxu0 0.0
    %3063 = vmatpush1.xpose.msra.mxu0 0.0
    %3064 = vmatprep.subr.mxu0 0.0
    %3065 = vmatpush1.xpose.msra.mxu0 0.0
    %3066 = vmatprep.subr.mxu0 0.0
    %3067 = vmatpush1.xpose.msra.mxu0 0.0
    %3068 = vmatprep.subr.mxu0 0.0
    %3069 = vmatpush1.xpose.msra.mxu0 0.0
    %3070 = vmatprep.subr.mxu0 0.0
    %3071 = vmatpush1.xpose.msra.mxu0 0.0
    %3072 = vmatprep.subr.mxu0 0.0
    %3073 = vmatpush1.xpose.msra.mxu0 0.0
    %3074 = vmatprep.subr.mxu0 0.0
    %3075 = vmatpush1.xpose.msra.mxu0 0.0
    %3076 = vmatprep.subr.mxu0 0.0
    %3077 = vmatpush1.xpose.msra.mxu0 0.0
    %3078 = vmatprep.subr.mxu0 0.0
    %3079 = vmatpush1.xpose.msra.mxu0 0.0
    %3080 = vmatprep.subr.mxu0 0.0
    %3081 = vmatpush1.xpose.msra.mxu0 0.0
    %3082 = vmatprep.subr.mxu0 0.0
    %3083 = vmatpush1.xpose.msra.mxu0 0.0
    %3084 = vmatprep.subr.mxu0 0.0
    %3085 = vmatpush1.xpose.msra.mxu0 0.0
    %3086 = vmatprep.subr.mxu0 0.0
    %3087 = vmatpush1.xpose.msra.mxu0 %v3054
    %3088 = vmatprep.subr.mxu0 0.0
    %3089 = vmatpush2.xpose.msra.mxu0 0.0
    %3090 = vmatprep.subr.mxu0 0.0
    %3091 = vmatpush2.xpose.msra.mxu0 0.0
    %3092 = vmatprep.subr.mxu0 0.0
    %3093 = vmatpush2.xpose.msra.mxu0 0.0
    %3094 = vmatprep.subr.mxu0 0.0
    %3095 = vmatpush2.xpose.msra.mxu0 0.0
    %3096 = vmatprep.subr.mxu0 0.0
    %3097 = vmatpush2.xpose.msra.mxu0 0.0
    %3098 = vmatprep.subr.mxu0 0.0
    %3099 = vmatpush2.xpose.msra.mxu0 0.0
    %3100 = vmatprep.subr.mxu0 0.0
    %3101 = vmatpush2.xpose.msra.mxu0 0.0
    %3102 = vmatprep.subr.mxu0 0.0
    %3103 = vmatpush2.xpose.msra.mxu0 0.0
    %3104 = vmatprep.subr.mxu0 0.0
    %3105 = vmatpush2.xpose.msra.mxu0 0.0
    %3106 = vmatprep.subr.mxu0 0.0
    %3107 = vmatpush2.xpose.msra.mxu0 0.0
    %3108 = vmatprep.subr.mxu0 0.0
    %3109 = vmatpush2.xpose.msra.mxu0 0.0
    %3110 = vmatprep.subr.mxu0 0.0
    %3111 = vmatpush2.xpose.msra.mxu0 0.0
    %3112 = vmatprep.subr.mxu0 0.0
    %3113 = vmatpush2.xpose.msra.mxu0 0.0
    %3114 = vmatprep.subr.mxu0 0.0
    %3115 = vmatpush2.xpose.msra.mxu0 0.0
    %3116 = vmatprep.subr.mxu0 0.0
    %3117 = vmatpush2.xpose.msra.mxu0 0.0
    %3118 = vmatprep.subr.mxu0 0.0
    %3119 = vmatpush2.xpose.msra.mxu0 0.0
    %3120 = vmatprep.mubr.f32.mxu0 0.0
    %3121 = vmatmul.mubr.f32.gmra.mxu0 %v3052
    %v3122 = vpop.f32.mrf.mxu0
    %v3123 = vadd.f32 0.0, %v3122
    %v3124 = vpop.f32.mrf.mxu0
    %3125 = vdwg.mxu0
    %3126 = vrot.lane.b32.xlu0 %v2647, 64
    %v3127 = vpop.permute.xlu0 %3126
    %v3128 = vsel %vm781, %v2647, 0
    %v3130 = vsel %vm781, %v3127, 0
    %3132 = vmatprep.subr.mxu0 0.0
    %3133 = vmatpush1.xpose.msra.mxu0 0.0
    %3134 = vmatprep.subr.mxu0 0.0
    %3135 = vmatpush1.xpose.msra.mxu0 0.0
    %3136 = vmatprep.subr.mxu0 0.0
    %3137 = vmatpush1.xpose.msra.mxu0 0.0
    %3138 = vmatprep.subr.mxu0 0.0
    %3139 = vmatpush1.xpose.msra.mxu0 0.0
    %3140 = vmatprep.subr.mxu0 0.0
    %3141 = vmatpush1.xpose.msra.mxu0 0.0
    %3142 = vmatprep.subr.mxu0 0.0
    %3143 = vmatpush1.xpose.msra.mxu0 0.0
    %3144 = vmatprep.subr.mxu0 0.0
    %3145 = vmatpush1.xpose.msra.mxu0 0.0
    %3146 = vmatprep.subr.mxu0 0.0
    %3147 = vmatpush1.xpose.msra.mxu0 0.0
    %3148 = vmatprep.subr.mxu0 0.0
    %3149 = vmatpush1.xpose.msra.mxu0 0.0
    %3150 = vmatprep.subr.mxu0 0.0
    %3151 = vmatpush1.xpose.msra.mxu0 0.0
    %3152 = vmatprep.subr.mxu0 0.0
    %3153 = vmatpush1.xpose.msra.mxu0 0.0
    %3154 = vmatprep.subr.mxu0 0.0
    %3155 = vmatpush1.xpose.msra.mxu0 0.0
    %3156 = vmatprep.subr.mxu0 0.0
    %3157 = vmatpush1.xpose.msra.mxu0 0.0
    %3158 = vmatprep.subr.mxu0 0.0
    %3159 = vmatpush1.xpose.msra.mxu0 0.0
    %3160 = vmatprep.subr.mxu0 0.0
    %3161 = vmatpush1.xpose.msra.mxu0 0.0
    %3162 = vmatprep.subr.mxu0 0.0
    %3163 = vmatpush1.xpose.msra.mxu0 %v3130
    %3164 = vmatprep.subr.mxu0 0.0
    %3165 = vmatpush2.xpose.msra.mxu0 0.0
    %3166 = vmatprep.subr.mxu0 0.0
    %3167 = vmatpush2.xpose.msra.mxu0 0.0
    %3168 = vmatprep.subr.mxu0 0.0
    %3169 = vmatpush2.xpose.msra.mxu0 0.0
    %3170 = vmatprep.subr.mxu0 0.0
    %3171 = vmatpush2.xpose.msra.mxu0 0.0
    %3172 = vmatprep.subr.mxu0 0.0
    %3173 = vmatpush2.xpose.msra.mxu0 0.0
    %3174 = vmatprep.subr.mxu0 0.0
    %3175 = vmatpush2.xpose.msra.mxu0 0.0
    %3176 = vmatprep.subr.mxu0 0.0
    %3177 = vmatpush2.xpose.msra.mxu0 0.0
    %3178 = vmatprep.subr.mxu0 0.0
    %3179 = vmatpush2.xpose.msra.mxu0 0.0
    %3180 = vmatprep.subr.mxu0 0.0
    %3181 = vmatpush2.xpose.msra.mxu0 0.0
    %3182 = vmatprep.subr.mxu0 0.0
    %3183 = vmatpush2.xpose.msra.mxu0 0.0
    %3184 = vmatprep.subr.mxu0 0.0
    %3185 = vmatpush2.xpose.msra.mxu0 0.0
    %3186 = vmatprep.subr.mxu0 0.0
    %3187 = vmatpush2.xpose.msra.mxu0 0.0
    %3188 = vmatprep.subr.mxu0 0.0
    %3189 = vmatpush2.xpose.msra.mxu0 0.0
    %3190 = vmatprep.subr.mxu0 0.0
    %3191 = vmatpush2.xpose.msra.mxu0 0.0
    %3192 = vmatprep.subr.mxu0 0.0
    %3193 = vmatpush2.xpose.msra.mxu0 0.0
    %3194 = vmatprep.subr.mxu0 0.0
    %3195 = vmatpush2.xpose.msra.mxu0 0.0
    %3196 = vmatprep.mubr.f32.mxu0 0.0
    %3197 = vmatmul.mubr.f32.gmra.mxu0 %v3128
    %v3198 = vpop.f32.mrf.mxu0
    %v3199 = vadd.f32 0.0, %v3198
    %v3200 = vpop.f32.mrf.mxu0
    %3201 = vdwg.mxu0
    %3202 = vrot.lane.b32.xlu0 %v2649, 64
    %v3203 = vpop.permute.xlu0 %3202
    %v3204 = vsel %vm781, %v2649, 0
    %v3206 = vsel %vm781, %v3203, 0
    %3208 = vmatprep.subr.mxu0 0.0
    %3209 = vmatpush1.xpose.msra.mxu0 0.0
    %3210 = vmatprep.subr.mxu0 0.0
    %3211 = vmatpush1.xpose.msra.mxu0 0.0
    %3212 = vmatprep.subr.mxu0 0.0
    %3213 = vmatpush1.xpose.msra.mxu0 0.0
    %3214 = vmatprep.subr.mxu0 0.0
    %3215 = vmatpush1.xpose.msra.mxu0 0.0
    %3216 = vmatprep.subr.mxu0 0.0
    %3217 = vmatpush1.xpose.msra.mxu0 0.0
    %3218 = vmatprep.subr.mxu0 0.0
    %3219 = vmatpush1.xpose.msra.mxu0 0.0
    %3220 = vmatprep.subr.mxu0 0.0
    %3221 = vmatpush1.xpose.msra.mxu0 0.0
    %3222 = vmatprep.subr.mxu0 0.0
    %3223 = vmatpush1.xpose.msra.mxu0 0.0
    %3224 = vmatprep.subr.mxu0 0.0
    %3225 = vmatpush1.xpose.msra.mxu0 0.0
    %3226 = vmatprep.subr.mxu0 0.0
    %3227 = vmatpush1.xpose.msra.mxu0 0.0
    %3228 = vmatprep.subr.mxu0 0.0
    %3229 = vmatpush1.xpose.msra.mxu0 0.0
    %3230 = vmatprep.subr.mxu0 0.0
    %3231 = vmatpush1.xpose.msra.mxu0 0.0
    %3232 = vmatprep.subr.mxu0 0.0
    %3233 = vmatpush1.xpose.msra.mxu0 0.0
    %3234 = vmatprep.subr.mxu0 0.0
    %3235 = vmatpush1.xpose.msra.mxu0 0.0
    %3236 = vmatprep.subr.mxu0 0.0
    %3237 = vmatpush1.xpose.msra.mxu0 0.0
    %3238 = vmatprep.subr.mxu0 0.0
    %3239 = vmatpush1.xpose.msra.mxu0 %v3206
    %3240 = vmatprep.subr.mxu0 0.0
    %3241 = vmatpush2.xpose.msra.mxu0 0.0
    %3242 = vmatprep.subr.mxu0 0.0
    %3243 = vmatpush2.xpose.msra.mxu0 0.0
    %3244 = vmatprep.subr.mxu0 0.0
    %3245 = vmatpush2.xpose.msra.mxu0 0.0
    %3246 = vmatprep.subr.mxu0 0.0
    %3247 = vmatpush2.xpose.msra.mxu0 0.0
    %3248 = vmatprep.subr.mxu0 0.0
    %3249 = vmatpush2.xpose.msra.mxu0 0.0
    %3250 = vmatprep.subr.mxu0 0.0
    %3251 = vmatpush2.xpose.msra.mxu0 0.0
    %3252 = vmatprep.subr.mxu0 0.0
    %3253 = vmatpush2.xpose.msra.mxu0 0.0
    %3254 = vmatprep.subr.mxu0 0.0
    %3255 = vmatpush2.xpose.msra.mxu0 0.0
    %3256 = vmatprep.subr.mxu0 0.0
    %3257 = vmatpush2.xpose.msra.mxu0 0.0
    %3258 = vmatprep.subr.mxu0 0.0
    %3259 = vmatpush2.xpose.msra.mxu0 0.0
    %3260 = vmatprep.subr.mxu0 0.0
    %3261 = vmatpush2.xpose.msra.mxu0 0.0
    %3262 = vmatprep.subr.mxu0 0.0
    %3263 = vmatpush2.xpose.msra.mxu0 0.0
    %3264 = vmatprep.subr.mxu0 0.0
    %3265 = vmatpush2.xpose.msra.mxu0 0.0
    %3266 = vmatprep.subr.mxu0 0.0
    %3267 = vmatpush2.xpose.msra.mxu0 0.0
    %3268 = vmatprep.subr.mxu0 0.0
    %3269 = vmatpush2.xpose.msra.mxu0 0.0
    %3270 = vmatprep.subr.mxu0 0.0
    %3271 = vmatpush2.xpose.msra.mxu0 0.0
    %3272 = vmatprep.mubr.f32.mxu0 0.0
    %3273 = vmatmul.mubr.f32.gmra.mxu0 %v3204
    %v3274 = vpop.f32.mrf.mxu0
    %v3275 = vadd.f32 0.0, %v3274
    %v3276 = vpop.f32.mrf.mxu0
    %3277 = vdwg.mxu0
    %v3278 = vmul.f32 %v2743, 0.25
    %v3279 = vmul.f32 %v2819, 0.25
    %v3280 = vmul.f32 %v2895, 0.25
    %v3281 = vmul.f32 %v2971, 0.25
    %v3282 = vmul.f32 %v3047, 0.25
    %v3283 = vmul.f32 %v3123, 0.25
    %v3284 = vmul.f32 %v3199, 0.25
    %v3285 = vmul.f32 %v3275, 0.25
    %v3286 = vadd.f32 %v3278, %v584
    %v3287 = vadd.f32 %v3279, %v584
    %v3288 = vadd.f32 %v3280, %v584
    %v3289 = vadd.f32 %v3281, %v584
    %v3290 = vadd.f32 %v3282, %v584
    %v3291 = vadd.f32 %v3283, %v584
    %v3292 = vadd.f32 %v3284, %v584
    %v3293 = vadd.f32 %v3285, %v584
    %v3294 = vsel %vm1404, %v3286, -inf
    %3295 = vmax.xlane.f32.xlu0 %v3294
    %v3296 = vpop.xlane.xlu0 %3295
    %v3297 = vsel %vm1404, %v3287, -inf
    %3298 = vmax.xlane.f32.xlu0 %v3297
    %v3299 = vpop.xlane.xlu0 %3298
    %v3300 = vsel %vm1404, %v3288, -inf
    %3301 = vmax.xlane.f32.xlu0 %v3300
    %v3302 = vpop.xlane.xlu0 %3301
    %v3303 = vsel %vm1404, %v3289, -inf
    %3304 = vmax.xlane.f32.xlu0 %v3303
    %v3305 = vpop.xlane.xlu0 %3304
    %v3306 = vsel %vm1404, %v3290, -inf
    %3307 = vmax.xlane.f32.xlu0 %v3306
    %v3308 = vpop.xlane.xlu0 %3307
    %v3309 = vsel %vm1404, %v3291, -inf
    %3310 = vmax.xlane.f32.xlu0 %v3309
    %v3311 = vpop.xlane.xlu0 %3310
    %v3312 = vsel %vm1404, %v3292, -inf
    %3313 = vmax.xlane.f32.xlu0 %v3312
    %v3314 = vpop.xlane.xlu0 %3313
    %v3315 = vsel %vm1404, %v3293, -inf
    %3316 = vmax.xlane.f32.xlu0 %v3315
    %v3317 = vpop.xlane.xlu0 %3316
    %v3318 = vsub.f32 %v3286, %v3296
    %v3319 = vsub.f32 %v3287, %v3299
    %v3320 = vsub.f32 %v3288, %v3302
    %v3321 = vsub.f32 %v3289, %v3305
    %v3322 = vsub.f32 %v3290, %v3308
    %v3323 = vsub.f32 %v3291, %v3311
    %v3324 = vsub.f32 %v3292, %v3314
    %v3325 = vsub.f32 %v3293, %v3317
    %v3326 = vmul.f32 %v3318, 1.442695
    %v3327 = vpow.pop %v3326
    %v3328 = vmul.f32 %v3319, 1.442695
    %v3329 = vpow.pop %v3328
    %v3330 = vmul.f32 %v3320, 1.442695
    %v3331 = vpow.pop %v3330
    %v3332 = vmul.f32 %v3321, 1.442695
    %v3333 = vpow.pop %v3332
    %v3334 = vmul.f32 %v3322, 1.442695
    %v3335 = vpow.pop %v3334
    %v3336 = vmul.f32 %v3323, 1.442695
    %v3337 = vpow.pop %v3336
    %v3338 = vmul.f32 %v3324, 1.442695
    %v3339 = vpow.pop %v3338
    %v3340 = vmul.f32 %v3325, 1.442695
    %v3341 = vpow.pop %v3340
    %v3342 = vsel %vm1404, %v3327, 0.0
    %3343 = vadd.xlane.f32.xlu0 %v3342
    %v3344 = vpop.xlane.xlu0 %3343
    %v3345 = vsel %vm1404, %v3329, 0.0
    %3346 = vadd.xlane.f32.xlu0 %v3345
    %v3347 = vpop.xlane.xlu0 %3346
    %v3348 = vsel %vm1404, %v3331, 0.0
    %3349 = vadd.xlane.f32.xlu0 %v3348
    %v3350 = vpop.xlane.xlu0 %3349
    %v3351 = vsel %vm1404, %v3333, 0.0
    %3352 = vadd.xlane.f32.xlu0 %v3351
    %v3353 = vpop.xlane.xlu0 %3352
    %v3354 = vsel %vm1404, %v3335, 0.0
    %3355 = vadd.xlane.f32.xlu0 %v3354
    %v3356 = vpop.xlane.xlu0 %3355
    %v3357 = vsel %vm1404, %v3337, 0.0
    %3358 = vadd.xlane.f32.xlu0 %v3357
    %v3359 = vpop.xlane.xlu0 %3358
    %v3360 = vsel %vm1404, %v3339, 0.0
    %3361 = vadd.xlane.f32.xlu0 %v3360
    %v3362 = vpop.xlane.xlu0 %3361
    %v3363 = vsel %vm1404, %v3341, 0.0
    %3364 = vadd.xlane.f32.xlu0 %v3363
    %v3365 = vpop.xlane.xlu0 %3364
    %v3366 = vrcp.pop %v3344
    %v3367 = vrcp.pop %v3347
    %v3368 = vrcp.pop %v3350
    %v3369 = vrcp.pop %v3353
    %v3370 = vrcp.pop %v3356
    %v3371 = vrcp.pop %v3359
    %v3372 = vrcp.pop %v3362
    %v3373 = vrcp.pop %v3365
    %v3374 = vmul.f32 %v3327, %v3366
    %v3375 = vmul.f32 %v3329, %v3367
    %v3376 = vmul.f32 %v3331, %v3368
    %v3377 = vmul.f32 %v3333, %v3369
    %v3378 = vmul.f32 %v3335, %v3370
    %v3379 = vmul.f32 %v3337, %v3371
    %v3380 = vmul.f32 %v3339, %v3372
    %v3381 = vmul.f32 %v3341, %v3373
    %v3383 = vsel %vm1404, %v3374, 0
    %3385 = vmatprep.subr.mxu0 0.0
    %3386 = vmatpush1.msra.mxu0 0.0
    %3387 = vmatprep.subr.mxu0 0.0
    %3388 = vmatpush1.msra.mxu0 0.0
    %3389 = vmatprep.subr.mxu0 0.0
    %3390 = vmatpush1.msra.mxu0 0.0
    %3391 = vmatprep.subr.mxu0 0.0
    %3392 = vmatpush1.msra.mxu0 0.0
    %3393 = vmatprep.subr.mxu0 0.0
    %3394 = vmatpush1.msra.mxu0 0.0
    %3395 = vmatprep.subr.mxu0 0.0
    %3396 = vmatpush1.msra.mxu0 0.0
    %3397 = vmatprep.subr.mxu0 0.0
    %3398 = vmatpush1.msra.mxu0 0.0
    %3399 = vmatprep.subr.mxu0 0.0
    %3400 = vmatpush1.msra.mxu0 0.0
    %3401 = vmatprep.subr.mxu0 0.0
    %3402 = vmatpush1.msra.mxu0 0.0
    %3403 = vmatprep.subr.mxu0 0.0
    %3404 = vmatpush1.msra.mxu0 0.0
    %3405 = vmatprep.subr.mxu0 0.0
    %3406 = vmatpush1.msra.mxu0 0.0
    %3407 = vmatprep.subr.mxu0 0.0
    %3408 = vmatpush1.msra.mxu0 0.0
    %3409 = vmatprep.subr.mxu0 0.0
    %3410 = vmatpush1.msra.mxu0 0.0
    %3411 = vmatprep.subr.mxu0 0.0
    %3412 = vmatpush1.msra.mxu0 0.0
    %3413 = vmatprep.subr.mxu0 0.0
    %3414 = vmatpush1.msra.mxu0 0.0
    %3415 = vmatprep.subr.mxu0 0.0
    %3416 = vmatpush1.msra.mxu0 %v2628
    %3417 = vmatprep.subr.mxu0 0.0
    %3418 = vmatpush2.msra.mxu0 0.0
    %3419 = vmatprep.subr.mxu0 0.0
    %3420 = vmatpush2.msra.mxu0 0.0
    %3421 = vmatprep.subr.mxu0 0.0
    %3422 = vmatpush2.msra.mxu0 0.0
    %3423 = vmatprep.subr.mxu0 0.0
    %3424 = vmatpush2.msra.mxu0 0.0
    %3425 = vmatprep.subr.mxu0 0.0
    %3426 = vmatpush2.msra.mxu0 0.0
    %3427 = vmatprep.subr.mxu0 0.0
    %3428 = vmatpush2.msra.mxu0 0.0
    %3429 = vmatprep.subr.mxu0 0.0
    %3430 = vmatpush2.msra.mxu0 0.0
    %3431 = vmatprep.subr.mxu0 0.0
    %3432 = vmatpush2.msra.mxu0 0.0
    %3433 = vmatprep.subr.mxu0 0.0
    %3434 = vmatpush2.msra.mxu0 0.0
    %3435 = vmatprep.subr.mxu0 0.0
    %3436 = vmatpush2.msra.mxu0 0.0
    %3437 = vmatprep.subr.mxu0 0.0
    %3438 = vmatpush2.msra.mxu0 0.0
    %3439 = vmatprep.subr.mxu0 0.0
    %3440 = vmatpush2.msra.mxu0 0.0
    %3441 = vmatprep.subr.mxu0 0.0
    %3442 = vmatpush2.msra.mxu0 0.0
    %3443 = vmatprep.subr.mxu0 0.0
    %3444 = vmatpush2.msra.mxu0 0.0
    %3445 = vmatprep.subr.mxu0 0.0
    %3446 = vmatpush2.msra.mxu0 0.0
    %3447 = vmatprep.subr.mxu0 0.0
    %3448 = vmatpush2.msra.mxu0 0.0
    %3449 = vmatprep.mubr.f32.mxu0 0.0
    %3450 = vmatmul.mubr.f32.gmra.mxu0 %v3383
    %v3451 = vpop.f32.mrf.mxu0
    %v3452 = vadd.f32 0.0, %v3451
    %v3453 = vpop.f32.mrf.mxu0
    %3454 = vdwg.mxu0
    %v3456 = vsel %vm1404, %v3375, 0
    %3458 = vmatprep.subr.mxu0 0.0
    %3459 = vmatpush1.msra.mxu0 0.0
    %3460 = vmatprep.subr.mxu0 0.0
    %3461 = vmatpush1.msra.mxu0 0.0
    %3462 = vmatprep.subr.mxu0 0.0
    %3463 = vmatpush1.msra.mxu0 0.0
    %3464 = vmatprep.subr.mxu0 0.0
    %3465 = vmatpush1.msra.mxu0 0.0
    %3466 = vmatprep.subr.mxu0 0.0
    %3467 = vmatpush1.msra.mxu0 0.0
    %3468 = vmatprep.subr.mxu0 0.0
    %3469 = vmatpush1.msra.mxu0 0.0
    %3470 = vmatprep.subr.mxu0 0.0
    %3471 = vmatpush1.msra.mxu0 0.0
    %3472 = vmatprep.subr.mxu0 0.0
    %3473 = vmatpush1.msra.mxu0 0.0
    %3474 = vmatprep.subr.mxu0 0.0
    %3475 = vmatpush1.msra.mxu0 0.0
    %3476 = vmatprep.subr.mxu0 0.0
    %3477 = vmatpush1.msra.mxu0 0.0
    %3478 = vmatprep.subr.mxu0 0.0
    %3479 = vmatpush1.msra.mxu0 0.0
    %3480 = vmatprep.subr.mxu0 0.0
    %3481 = vmatpush1.msra.mxu0 0.0
    %3482 = vmatprep.subr.mxu0 0.0
    %3483 = vmatpush1.msra.mxu0 0.0
    %3484 = vmatprep.subr.mxu0 0.0
    %3485 = vmatpush1.msra.mxu0 0.0
    %3486 = vmatprep.subr.mxu0 0.0
    %3487 = vmatpush1.msra.mxu0 0.0
    %3488 = vmatprep.subr.mxu0 0.0
    %3489 = vmatpush1.msra.mxu0 %v2634
    %3490 = vmatprep.subr.mxu0 0.0
    %3491 = vmatpush2.msra.mxu0 0.0
    %3492 = vmatprep.subr.mxu0 0.0
    %3493 = vmatpush2.msra.mxu0 0.0
    %3494 = vmatprep.subr.mxu0 0.0
    %3495 = vmatpush2.msra.mxu0 0.0
    %3496 = vmatprep.subr.mxu0 0.0
    %3497 = vmatpush2.msra.mxu0 0.0
    %3498 = vmatprep.subr.mxu0 0.0
    %3499 = vmatpush2.msra.mxu0 0.0
    %3500 = vmatprep.subr.mxu0 0.0
    %3501 = vmatpush2.msra.mxu0 0.0
    %3502 = vmatprep.subr.mxu0 0.0
    %3503 = vmatpush2.msra.mxu0 0.0
    %3504 = vmatprep.subr.mxu0 0.0
    %3505 = vmatpush2.msra.mxu0 0.0
    %3506 = vmatprep.subr.mxu0 0.0
    %3507 = vmatpush2.msra.mxu0 0.0
    %3508 = vmatprep.subr.mxu0 0.0
    %3509 = vmatpush2.msra.mxu0 0.0
    %3510 = vmatprep.subr.mxu0 0.0
    %3511 = vmatpush2.msra.mxu0 0.0
    %3512 = vmatprep.subr.mxu0 0.0
    %3513 = vmatpush2.msra.mxu0 0.0
    %3514 = vmatprep.subr.mxu0 0.0
    %3515 = vmatpush2.msra.mxu0 0.0
    %3516 = vmatprep.subr.mxu0 0.0
    %3517 = vmatpush2.msra.mxu0 0.0
    %3518 = vmatprep.subr.mxu0 0.0
    %3519 = vmatpush2.msra.mxu0 0.0
    %3520 = vmatprep.subr.mxu0 0.0
    %3521 = vmatpush2.msra.mxu0 0.0
    %3522 = vmatprep.mubr.f32.mxu0 0.0
    %3523 = vmatmul.mubr.f32.gmra.mxu0 %v3456
    %v3524 = vpop.f32.mrf.mxu0
    %v3525 = vadd.f32 0.0, %v3524
    %v3526 = vpop.f32.mrf.mxu0
    %3527 = vdwg.mxu0
    %v3529 = vsel %vm1404, %v3376, 0
    %3531 = vmatprep.subr.mxu0 0.0
    %3532 = vmatpush1.msra.mxu0 0.0
    %3533 = vmatprep.subr.mxu0 0.0
    %3534 = vmatpush1.msra.mxu0 0.0
    %3535 = vmatprep.subr.mxu0 0.0
    %3536 = vmatpush1.msra.mxu0 0.0
    %3537 = vmatprep.subr.mxu0 0.0
    %3538 = vmatpush1.msra.mxu0 0.0
    %3539 = vmatprep.subr.mxu0 0.0
    %3540 = vmatpush1.msra.mxu0 0.0
    %3541 = vmatprep.subr.mxu0 0.0
    %3542 = vmatpush1.msra.mxu0 0.0
    %3543 = vmatprep.subr.mxu0 0.0
    %3544 = vmatpush1.msra.mxu0 0.0
    %3545 = vmatprep.subr.mxu0 0.0
    %3546 = vmatpush1.msra.mxu0 0.0
    %3547 = vmatprep.subr.mxu0 0.0
    %3548 = vmatpush1.msra.mxu0 0.0
    %3549 = vmatprep.subr.mxu0 0.0
    %3550 = vmatpush1.msra.mxu0 0.0
    %3551 = vmatprep.subr.mxu0 0.0
    %3552 = vmatpush1.msra.mxu0 0.0
    %3553 = vmatprep.subr.mxu0 0.0
    %3554 = vmatpush1.msra.mxu0 0.0
    %3555 = vmatprep.subr.mxu0 0.0
    %3556 = vmatpush1.msra.mxu0 0.0
    %3557 = vmatprep.subr.mxu0 0.0
    %3558 = vmatpush1.msra.mxu0 0.0
    %3559 = vmatprep.subr.mxu0 0.0
    %3560 = vmatpush1.msra.mxu0 0.0
    %3561 = vmatprep.subr.mxu0 0.0
    %3562 = vmatpush1.msra.mxu0 %v2653
    %3563 = vmatprep.subr.mxu0 0.0
    %3564 = vmatpush2.msra.mxu0 0.0
    %3565 = vmatprep.subr.mxu0 0.0
    %3566 = vmatpush2.msra.mxu0 0.0
    %3567 = vmatprep.subr.mxu0 0.0
    %3568 = vmatpush2.msra.mxu0 0.0
    %3569 = vmatprep.subr.mxu0 0.0
    %3570 = vmatpush2.msra.mxu0 0.0
    %3571 = vmatprep.subr.mxu0 0.0
    %3572 = vmatpush2.msra.mxu0 0.0
    %3573 = vmatprep.subr.mxu0 0.0
    %3574 = vmatpush2.msra.mxu0 0.0
    %3575 = vmatprep.subr.mxu0 0.0
    %3576 = vmatpush2.msra.mxu0 0.0
    %3577 = vmatprep.subr.mxu0 0.0
    %3578 = vmatpush2.msra.mxu0 0.0
    %3579 = vmatprep.subr.mxu0 0.0
    %3580 = vmatpush2.msra.mxu0 0.0
    %3581 = vmatprep.subr.mxu0 0.0
    %3582 = vmatpush2.msra.mxu0 0.0
    %3583 = vmatprep.subr.mxu0 0.0
    %3584 = vmatpush2.msra.mxu0 0.0
    %3585 = vmatprep.subr.mxu0 0.0
    %3586 = vmatpush2.msra.mxu0 0.0
    %3587 = vmatprep.subr.mxu0 0.0
    %3588 = vmatpush2.msra.mxu0 0.0
    %3589 = vmatprep.subr.mxu0 0.0
    %3590 = vmatpush2.msra.mxu0 0.0
    %3591 = vmatprep.subr.mxu0 0.0
    %3592 = vmatpush2.msra.mxu0 0.0
    %3593 = vmatprep.subr.mxu0 0.0
    %3594 = vmatpush2.msra.mxu0 0.0
    %3595 = vmatprep.mubr.f32.mxu0 0.0
    %3596 = vmatmul.mubr.f32.gmra.mxu0 %v3529
    %v3597 = vpop.f32.mrf.mxu0
    %v3598 = vadd.f32 0.0, %v3597
    %v3599 = vpop.f32.mrf.mxu0
    %3600 = vdwg.mxu0
    %v3602 = vsel %vm1404, %v3377, 0
    %3604 = vmatprep.subr.mxu0 0.0
    %3605 = vmatpush1.msra.mxu0 0.0
    %3606 = vmatprep.subr.mxu0 0.0
    %3607 = vmatpush1.msra.mxu0 0.0
    %3608 = vmatprep.subr.mxu0 0.0
    %3609 = vmatpush1.msra.mxu0 0.0
    %3610 = vmatprep.subr.mxu0 0.0
    %3611 = vmatpush1.msra.mxu0 0.0
    %3612 = vmatprep.subr.mxu0 0.0
    %3613 = vmatpush1.msra.mxu0 0.0
    %3614 = vmatprep.subr.mxu0 0.0
    %3615 = vmatpush1.msra.mxu0 0.0
    %3616 = vmatprep.subr.mxu0 0.0
    %3617 = vmatpush1.msra.mxu0 0.0
    %3618 = vmatprep.subr.mxu0 0.0
    %3619 = vmatpush1.msra.mxu0 0.0
    %3620 = vmatprep.subr.mxu0 0.0
    %3621 = vmatpush1.msra.mxu0 0.0
    %3622 = vmatprep.subr.mxu0 0.0
    %3623 = vmatpush1.msra.mxu0 0.0
    %3624 = vmatprep.subr.mxu0 0.0
    %3625 = vmatpush1.msra.mxu0 0.0
    %3626 = vmatprep.subr.mxu0 0.0
    %3627 = vmatpush1.msra.mxu0 0.0
    %3628 = vmatprep.subr.mxu0 0.0
    %3629 = vmatpush1.msra.mxu0 0.0
    %3630 = vmatprep.subr.mxu0 0.0
    %3631 = vmatpush1.msra.mxu0 0.0
    %3632 = vmatprep.subr.mxu0 0.0
    %3633 = vmatpush1.msra.mxu0 0.0
    %3634 = vmatprep.subr.mxu0 0.0
    %3635 = vmatpush1.msra.mxu0 %v2655
    %3636 = vmatprep.subr.mxu0 0.0
    %3637 = vmatpush2.msra.mxu0 0.0
    %3638 = vmatprep.subr.mxu0 0.0
    %3639 = vmatpush2.msra.mxu0 0.0
    %3640 = vmatprep.subr.mxu0 0.0
    %3641 = vmatpush2.msra.mxu0 0.0
    %3642 = vmatprep.subr.mxu0 0.0
    %3643 = vmatpush2.msra.mxu0 0.0
    %3644 = vmatprep.subr.mxu0 0.0
    %3645 = vmatpush2.msra.mxu0 0.0
    %3646 = vmatprep.subr.mxu0 0.0
    %3647 = vmatpush2.msra.mxu0 0.0
    %3648 = vmatprep.subr.mxu0 0.0
    %3649 = vmatpush2.msra.mxu0 0.0
    %3650 = vmatprep.subr.mxu0 0.0
    %3651 = vmatpush2.msra.mxu0 0.0
    %3652 = vmatprep.subr.mxu0 0.0
    %3653 = vmatpush2.msra.mxu0 0.0
    %3654 = vmatprep.subr.mxu0 0.0
    %3655 = vmatpush2.msra.mxu0 0.0
    %3656 = vmatprep.subr.mxu0 0.0
    %3657 = vmatpush2.msra.mxu0 0.0
    %3658 = vmatprep.subr.mxu0 0.0
    %3659 = vmatpush2.msra.mxu0 0.0
    %3660 = vmatprep.subr.mxu0 0.0
    %3661 = vmatpush2.msra.mxu0 0.0
    %3662 = vmatprep.subr.mxu0 0.0
    %3663 = vmatpush2.msra.mxu0 0.0
    %3664 = vmatprep.subr.mxu0 0.0
    %3665 = vmatpush2.msra.mxu0 0.0
    %3666 = vmatprep.subr.mxu0 0.0
    %3667 = vmatpush2.msra.mxu0 0.0
    %3668 = vmatprep.mubr.f32.mxu0 0.0
    %3669 = vmatmul.mubr.f32.gmra.mxu0 %v3602
    %v3670 = vpop.f32.mrf.mxu0
    %v3671 = vadd.f32 0.0, %v3670
    %v3672 = vpop.f32.mrf.mxu0
    %3673 = vdwg.mxu0
    %v3675 = vsel %vm1404, %v3378, 0
    %3677 = vmatprep.subr.mxu0 0.0
    %3678 = vmatpush1.msra.mxu0 0.0
    %3679 = vmatprep.subr.mxu0 0.0
    %3680 = vmatpush1.msra.mxu0 0.0
    %3681 = vmatprep.subr.mxu0 0.0
    %3682 = vmatpush1.msra.mxu0 0.0
    %3683 = vmatprep.subr.mxu0 0.0
    %3684 = vmatpush1.msra.mxu0 0.0
    %3685 = vmatprep.subr.mxu0 0.0
    %3686 = vmatpush1.msra.mxu0 0.0
    %3687 = vmatprep.subr.mxu0 0.0
    %3688 = vmatpush1.msra.mxu0 0.0
    %3689 = vmatprep.subr.mxu0 0.0
    %3690 = vmatpush1.msra.mxu0 0.0
    %3691 = vmatprep.subr.mxu0 0.0
    %3692 = vmatpush1.msra.mxu0 0.0
    %3693 = vmatprep.subr.mxu0 0.0
    %3694 = vmatpush1.msra.mxu0 0.0
    %3695 = vmatprep.subr.mxu0 0.0
    %3696 = vmatpush1.msra.mxu0 0.0
    %3697 = vmatprep.subr.mxu0 0.0
    %3698 = vmatpush1.msra.mxu0 0.0
    %3699 = vmatprep.subr.mxu0 0.0
    %3700 = vmatpush1.msra.mxu0 0.0
    %3701 = vmatprep.subr.mxu0 0.0
    %3702 = vmatpush1.msra.mxu0 0.0
    %3703 = vmatprep.subr.mxu0 0.0
    %3704 = vmatpush1.msra.mxu0 0.0
    %3705 = vmatprep.subr.mxu0 0.0
    %3706 = vmatpush1.msra.mxu0 0.0
    %3707 = vmatprep.subr.mxu0 0.0
    %3708 = vmatpush1.msra.mxu0 %v2659
    %3709 = vmatprep.subr.mxu0 0.0
    %3710 = vmatpush2.msra.mxu0 0.0
    %3711 = vmatprep.subr.mxu0 0.0
    %3712 = vmatpush2.msra.mxu0 0.0
    %3713 = vmatprep.subr.mxu0 0.0
    %3714 = vmatpush2.msra.mxu0 0.0
    %3715 = vmatprep.subr.mxu0 0.0
    %3716 = vmatpush2.msra.mxu0 0.0
    %3717 = vmatprep.subr.mxu0 0.0
    %3718 = vmatpush2.msra.mxu0 0.0
    %3719 = vmatprep.subr.mxu0 0.0
    %3720 = vmatpush2.msra.mxu0 0.0
    %3721 = vmatprep.subr.mxu0 0.0
    %3722 = vmatpush2.msra.mxu0 0.0
    %3723 = vmatprep.subr.mxu0 0.0
    %3724 = vmatpush2.msra.mxu0 0.0
    %3725 = vmatprep.subr.mxu0 0.0
    %3726 = vmatpush2.msra.mxu0 0.0
    %3727 = vmatprep.subr.mxu0 0.0
    %3728 = vmatpush2.msra.mxu0 0.0
    %3729 = vmatprep.subr.mxu0 0.0
    %3730 = vmatpush2.msra.mxu0 0.0
    %3731 = vmatprep.subr.mxu0 0.0
    %3732 = vmatpush2.msra.mxu0 0.0
    %3733 = vmatprep.subr.mxu0 0.0
    %3734 = vmatpush2.msra.mxu0 0.0
    %3735 = vmatprep.subr.mxu0 0.0
    %3736 = vmatpush2.msra.mxu0 0.0
    %3737 = vmatprep.subr.mxu0 0.0
    %3738 = vmatpush2.msra.mxu0 0.0
    %3739 = vmatprep.subr.mxu0 0.0
    %3740 = vmatpush2.msra.mxu0 0.0
    %3741 = vmatprep.mubr.f32.mxu0 0.0
    %3742 = vmatmul.mubr.f32.gmra.mxu0 %v3675
    %v3743 = vpop.f32.mrf.mxu0
    %v3744 = vadd.f32 0.0, %v3743
    %v3745 = vpop.f32.mrf.mxu0
    %3746 = vdwg.mxu0
    %v3748 = vsel %vm1404, %v3379, 0
    %3750 = vmatprep.subr.mxu0 0.0
    %3751 = vmatpush1.msra.mxu0 0.0
    %3752 = vmatprep.subr.mxu0 0.0
    %3753 = vmatpush1.msra.mxu0 0.0
    %3754 = vmatprep.subr.mxu0 0.0
    %3755 = vmatpush1.msra.mxu0 0.0
    %3756 = vmatprep.subr.mxu0 0.0
    %3757 = vmatpush1.msra.mxu0 0.0
    %3758 = vmatprep.subr.mxu0 0.0
    %3759 = vmatpush1.msra.mxu0 0.0
    %3760 = vmatprep.subr.mxu0 0.0
    %3761 = vmatpush1.msra.mxu0 0.0
    %3762 = vmatprep.subr.mxu0 0.0
    %3763 = vmatpush1.msra.mxu0 0.0
    %3764 = vmatprep.subr.mxu0 0.0
    %3765 = vmatpush1.msra.mxu0 0.0
    %3766 = vmatprep.subr.mxu0 0.0
    %3767 = vmatpush1.msra.mxu0 0.0
    %3768 = vmatprep.subr.mxu0 0.0
    %3769 = vmatpush1.msra.mxu0 0.0
    %3770 = vmatprep.subr.mxu0 0.0
    %3771 = vmatpush1.msra.mxu0 0.0
    %3772 = vmatprep.subr.mxu0 0.0
    %3773 = vmatpush1.msra.mxu0 0.0
    %3774 = vmatprep.subr.mxu0 0.0
    %3775 = vmatpush1.msra.mxu0 0.0
    %3776 = vmatprep.subr.mxu0 0.0
    %3777 = vmatpush1.msra.mxu0 0.0
    %3778 = vmatprep.subr.mxu0 0.0
    %3779 = vmatpush1.msra.mxu0 0.0
    %3780 = vmatprep.subr.mxu0 0.0
    %3781 = vmatpush1.msra.mxu0 %v2661
    %3782 = vmatprep.subr.mxu0 0.0
    %3783 = vmatpush2.msra.mxu0 0.0
    %3784 = vmatprep.subr.mxu0 0.0
    %3785 = vmatpush2.msra.mxu0 0.0
    %3786 = vmatprep.subr.mxu0 0.0
    %3787 = vmatpush2.msra.mxu0 0.0
    %3788 = vmatprep.subr.mxu0 0.0
    %3789 = vmatpush2.msra.mxu0 0.0
    %3790 = vmatprep.subr.mxu0 0.0
    %3791 = vmatpush2.msra.mxu0 0.0
    %3792 = vmatprep.subr.mxu0 0.0
    %3793 = vmatpush2.msra.mxu0 0.0
    %3794 = vmatprep.subr.mxu0 0.0
    %3795 = vmatpush2.msra.mxu0 0.0
    %3796 = vmatprep.subr.mxu0 0.0
    %3797 = vmatpush2.msra.mxu0 0.0
    %3798 = vmatprep.subr.mxu0 0.0
    %3799 = vmatpush2.msra.mxu0 0.0
    %3800 = vmatprep.subr.mxu0 0.0
    %3801 = vmatpush2.msra.mxu0 0.0
    %3802 = vmatprep.subr.mxu0 0.0
    %3803 = vmatpush2.msra.mxu0 0.0
    %3804 = vmatprep.subr.mxu0 0.0
    %3805 = vmatpush2.msra.mxu0 0.0
    %3806 = vmatprep.subr.mxu0 0.0
    %3807 = vmatpush2.msra.mxu0 0.0
    %3808 = vmatprep.subr.mxu0 0.0
    %3809 = vmatpush2.msra.mxu0 0.0
    %3810 = vmatprep.subr.mxu0 0.0
    %3811 = vmatpush2.msra.mxu0 0.0
    %3812 = vmatprep.subr.mxu0 0.0
    %3813 = vmatpush2.msra.mxu0 0.0
    %3814 = vmatprep.mubr.f32.mxu0 0.0
    %3815 = vmatmul.mubr.f32.gmra.mxu0 %v3748
    %v3816 = vpop.f32.mrf.mxu0
    %v3817 = vadd.f32 0.0, %v3816
    %v3818 = vpop.f32.mrf.mxu0
    %3819 = vdwg.mxu0
    %v3821 = vsel %vm1404, %v3380, 0
    %3823 = vmatprep.subr.mxu0 0.0
    %3824 = vmatpush1.msra.mxu0 0.0
    %3825 = vmatprep.subr.mxu0 0.0
    %3826 = vmatpush1.msra.mxu0 0.0
    %3827 = vmatprep.subr.mxu0 0.0
    %3828 = vmatpush1.msra.mxu0 0.0
    %3829 = vmatprep.subr.mxu0 0.0
    %3830 = vmatpush1.msra.mxu0 0.0
    %3831 = vmatprep.subr.mxu0 0.0
    %3832 = vmatpush1.msra.mxu0 0.0
    %3833 = vmatprep.subr.mxu0 0.0
    %3834 = vmatpush1.msra.mxu0 0.0
    %3835 = vmatprep.subr.mxu0 0.0
    %3836 = vmatpush1.msra.mxu0 0.0
    %3837 = vmatprep.subr.mxu0 0.0
    %3838 = vmatpush1.msra.mxu0 0.0
    %3839 = vmatprep.subr.mxu0 0.0
    %3840 = vmatpush1.msra.mxu0 0.0
    %3841 = vmatprep.subr.mxu0 0.0
    %3842 = vmatpush1.msra.mxu0 0.0
    %3843 = vmatprep.subr.mxu0 0.0
    %3844 = vmatpush1.msra.mxu0 0.0
    %3845 = vmatprep.subr.mxu0 0.0
    %3846 = vmatpush1.msra.mxu0 0.0
    %3847 = vmatprep.subr.mxu0 0.0
    %3848 = vmatpush1.msra.mxu0 0.0
    %3849 = vmatprep.subr.mxu0 0.0
    %3850 = vmatpush1.msra.mxu0 0.0
    %3851 = vmatprep.subr.mxu0 0.0
    %3852 = vmatpush1.msra.mxu0 0.0
    %3853 = vmatprep.subr.mxu0 0.0
    %3854 = vmatpush1.msra.mxu0 %v2665
    %3855 = vmatprep.subr.mxu0 0.0
    %3856 = vmatpush2.msra.mxu0 0.0
    %3857 = vmatprep.subr.mxu0 0.0
    %3858 = vmatpush2.msra.mxu0 0.0
    %3859 = vmatprep.subr.mxu0 0.0
    %3860 = vmatpush2.msra.mxu0 0.0
    %3861 = vmatprep.subr.mxu0 0.0
    %3862 = vmatpush2.msra.mxu0 0.0
    %3863 = vmatprep.subr.mxu0 0.0
    %3864 = vmatpush2.msra.mxu0 0.0
    %3865 = vmatprep.subr.mxu0 0.0
    %3866 = vmatpush2.msra.mxu0 0.0
    %3867 = vmatprep.subr.mxu0 0.0
    %3868 = vmatpush2.msra.mxu0 0.0
    %3869 = vmatprep.subr.mxu0 0.0
    %3870 = vmatpush2.msra.mxu0 0.0
    %3871 = vmatprep.subr.mxu0 0.0
    %3872 = vmatpush2.msra.mxu0 0.0
    %3873 = vmatprep.subr.mxu0 0.0
    %3874 = vmatpush2.msra.mxu0 0.0
    %3875 = vmatprep.subr.mxu0 0.0
    %3876 = vmatpush2.msra.mxu0 0.0
    %3877 = vmatprep.subr.mxu0 0.0
    %3878 = vmatpush2.msra.mxu0 0.0
    %3879 = vmatprep.subr.mxu0 0.0
    %3880 = vmatpush2.msra.mxu0 0.0
    %3881 = vmatprep.subr.mxu0 0.0
    %3882 = vmatpush2.msra.mxu0 0.0
    %3883 = vmatprep.subr.mxu0 0.0
    %3884 = vmatpush2.msra.mxu0 0.0
    %3885 = vmatprep.subr.mxu0 0.0
    %3886 = vmatpush2.msra.mxu0 0.0
    %3887 = vmatprep.mubr.f32.mxu0 0.0
    %3888 = vmatmul.mubr.f32.gmra.mxu0 %v3821
    %v3889 = vpop.f32.mrf.mxu0
    %v3890 = vadd.f32 0.0, %v3889
    %v3891 = vpop.f32.mrf.mxu0
    %3892 = vdwg.mxu0
    %v3894 = vsel %vm1404, %v3381, 0
    %3896 = vmatprep.subr.mxu0 0.0
    %3897 = vmatpush1.msra.mxu0 0.0
    %3898 = vmatprep.subr.mxu0 0.0
    %3899 = vmatpush1.msra.mxu0 0.0
    %3900 = vmatprep.subr.mxu0 0.0
    %3901 = vmatpush1.msra.mxu0 0.0
    %3902 = vmatprep.subr.mxu0 0.0
    %3903 = vmatpush1.msra.mxu0 0.0
    %3904 = vmatprep.subr.mxu0 0.0
    %3905 = vmatpush1.msra.mxu0 0.0
    %3906 = vmatprep.subr.mxu0 0.0
    %3907 = vmatpush1.msra.mxu0 0.0
    %3908 = vmatprep.subr.mxu0 0.0
    %3909 = vmatpush1.msra.mxu0 0.0
    %3910 = vmatprep.subr.mxu0 0.0
    %3911 = vmatpush1.msra.mxu0 0.0
    %3912 = vmatprep.subr.mxu0 0.0
    %3913 = vmatpush1.msra.mxu0 0.0
    %3914 = vmatprep.subr.mxu0 0.0
    %3915 = vmatpush1.msra.mxu0 0.0
    %3916 = vmatprep.subr.mxu0 0.0
    %3917 = vmatpush1.msra.mxu0 0.0
    %3918 = vmatprep.subr.mxu0 0.0
    %3919 = vmatpush1.msra.mxu0 0.0
    %3920 = vmatprep.subr.mxu0 0.0
    %3921 = vmatpush1.msra.mxu0 0.0
    %3922 = vmatprep.subr.mxu0 0.0
    %3923 = vmatpush1.msra.mxu0 0.0
    %3924 = vmatprep.subr.mxu0 0.0
    %3925 = vmatpush1.msra.mxu0 0.0
    %3926 = vmatprep.subr.mxu0 0.0
    %3927 = vmatpush1.msra.mxu0 %v2667
    %3928 = vmatprep.subr.mxu0 0.0
    %3929 = vmatpush2.msra.mxu0 0.0
    %3930 = vmatprep.subr.mxu0 0.0
    %3931 = vmatpush2.msra.mxu0 0.0
    %3932 = vmatprep.subr.mxu0 0.0
    %3933 = vmatpush2.msra.mxu0 0.0
    %3934 = vmatprep.subr.mxu0 0.0
    %3935 = vmatpush2.msra.mxu0 0.0
    %3936 = vmatprep.subr.mxu0 0.0
    %3937 = vmatpush2.msra.mxu0 0.0
    %3938 = vmatprep.subr.mxu0 0.0
    %3939 = vmatpush2.msra.mxu0 0.0
    %3940 = vmatprep.subr.mxu0 0.0
    %3941 = vmatpush2.msra.mxu0 0.0
    %3942 = vmatprep.subr.mxu0 0.0
    %3943 = vmatpush2.msra.mxu0 0.0
    %3944 = vmatprep.subr.mxu0 0.0
    %3945 = vmatpush2.msra.mxu0 0.0
    %3946 = vmatprep.subr.mxu0 0.0
    %3947 = vmatpush2.msra.mxu0 0.0
    %3948 = vmatprep.subr.mxu0 0.0
    %3949 = vmatpush2.msra.mxu0 0.0
    %3950 = vmatprep.subr.mxu0 0.0
    %3951 = vmatpush2.msra.mxu0 0.0
    %3952 = vmatprep.subr.mxu0 0.0
    %3953 = vmatpush2.msra.mxu0 0.0
    %3954 = vmatprep.subr.mxu0 0.0
    %3955 = vmatpush2.msra.mxu0 0.0
    %3956 = vmatprep.subr.mxu0 0.0
    %3957 = vmatpush2.msra.mxu0 0.0
    %3958 = vmatprep.subr.mxu0 0.0
    %3959 = vmatpush2.msra.mxu0 0.0
    %3960 = vmatprep.mubr.f32.mxu0 0.0
    %3961 = vmatmul.mubr.f32.gmra.mxu0 %v3894
    %v3962 = vpop.f32.mrf.mxu0
    %v3963 = vadd.f32 0.0, %v3962
    %v3964 = vpop.f32.mrf.mxu0
    %3965 = vdwg.mxu0
    %3968 = vrot.lane.b32.xlu0 %v3598, 16
    %v3969 = vpop.permute.xlu0 %3968
    %3970 = vrot.lane.b32.xlu0 %v3671, 16
    %v3971 = vpop.permute.xlu0 %3970
    %3976 = vrot.lane.b32.xlu0 %v3744, 32
    %v3977 = vpop.permute.xlu0 %3976
    %3978 = vrot.lane.b32.xlu0 %v3817, 32
    %v3979 = vpop.permute.xlu0 %3978
    %3984 = vrot.lane.b32.xlu0 %v3890, 48
    %v3985 = vpop.permute.xlu0 %3984
    %3986 = vrot.lane.b32.xlu0 %v3963, 48
    %v3987 = vpop.permute.xlu0 %3986
    %v3990 = vsel %vm781, %v3452, %v3969
    %v3991 = vsel %vm781, %v3525, %v3971
    %v3992 = vsel %vm2103, %v3990, %v3977
    %v3993 = vsel %vm2103, %v3991, %v3979
    %v3994 = vsel %vm2106, %v3992, %v3985
    %v3995 = vsel %vm2106, %v3993, %v3987
    %v3996 = vld [vmem:[%s2523 + $0x80] sm:$0xff]
    %v3997 = vld [vmem:[%s2523 + $0x88] sm:$0xff]
    %v3998 = vld [vmem:[%s2523 + $0x90] sm:$0xff]
    %v3999 = vld [vmem:[%s2523 + $0x98] sm:$0xff]
    %v4000 = vld [vmem:[%s2523 + $0xa0] sm:$0xff]
    %v4001 = vld [vmem:[%s2523 + $0xa8] sm:$0xff]
    %v4002 = vld [vmem:[%s2523 + $0xb0] sm:$0xff]
    %v4003 = vld [vmem:[%s2523 + $0xb8] sm:$0xff]
    %v4004 = vld [vmem:[%s2523 + $0xc0] sm:$0xff]
    %v4005 = vld [vmem:[%s2523 + $0xc8] sm:$0xff]
    %v4006 = vld [vmem:[%s2523 + $0xd0] sm:$0xff]
    %v4007 = vld [vmem:[%s2523 + $0xd8] sm:$0xff]
    %v4008 = vld [vmem:[%s2523 + $0xe0] sm:$0xff]
    %v4009 = vld [vmem:[%s2523 + $0xe8] sm:$0xff]
    %v4010 = vld [vmem:[%s2523 + $0xf0] sm:$0xff]
    %v4011 = vld [vmem:[%s2523 + $0xf8] sm:$0xff]
    %v4013 = vsel %vm589, %v3994, 0
    %v4016 = vsel %vm589, %v3995, 0
    %4018 = vmatprep.subr.mxu0 0.0
    %4019 = vmatpush1.msra.mxu0 0.0
    %4020 = vmatprep.subr.mxu0 0.0
    %4021 = vmatpush1.msra.mxu0 0.0
    %4022 = vmatprep.subr.mxu0 0.0
    %4023 = vmatpush1.msra.mxu0 0.0
    %4024 = vmatprep.subr.mxu0 0.0
    %4025 = vmatpush1.msra.mxu0 0.0
    %4026 = vmatprep.subr.mxu0 0.0
    %4027 = vmatpush1.msra.mxu0 0.0
    %4028 = vmatprep.subr.mxu0 0.0
    %4029 = vmatpush1.msra.mxu0 0.0
    %4030 = vmatprep.subr.mxu0 0.0
    %4031 = vmatpush1.msra.mxu0 0.0
    %4032 = vmatprep.subr.mxu0 0.0
    %4033 = vmatpush1.msra.mxu0 0.0
    %4034 = vmatprep.subr.mxu0 %v4011
    %4035 = vmatpush1.msra.mxu0 %v4010
    %4036 = vmatprep.subr.mxu0 %v4009
    %4037 = vmatpush1.msra.mxu0 %v4008
    %4038 = vmatprep.subr.mxu0 %v4007
    %4039 = vmatpush1.msra.mxu0 %v4006
    %4040 = vmatprep.subr.mxu0 %v4005
    %4041 = vmatpush1.msra.mxu0 %v4004
    %4042 = vmatprep.subr.mxu0 %v4003
    %4043 = vmatpush1.msra.mxu0 %v4002
    %4044 = vmatprep.subr.mxu0 %v4001
    %4045 = vmatpush1.msra.mxu0 %v4000
    %4046 = vmatprep.subr.mxu0 %v3999
    %4047 = vmatpush1.msra.mxu0 %v3998
    %4048 = vmatprep.subr.mxu0 %v3997
    %4049 = vmatpush1.msra.mxu0 %v3996
    %4050 = vmatprep.subr.mxu0 0.0
    %4051 = vmatpush2.msra.mxu0 0.0
    %4052 = vmatprep.subr.mxu0 0.0
    %4053 = vmatpush2.msra.mxu0 0.0
    %4054 = vmatprep.subr.mxu0 0.0
    %4055 = vmatpush2.msra.mxu0 0.0
    %4056 = vmatprep.subr.mxu0 0.0
    %4057 = vmatpush2.msra.mxu0 0.0
    %4058 = vmatprep.subr.mxu0 0.0
    %4059 = vmatpush2.msra.mxu0 0.0
    %4060 = vmatprep.subr.mxu0 0.0
    %4061 = vmatpush2.msra.mxu0 0.0
    %4062 = vmatprep.subr.mxu0 0.0
    %4063 = vmatpush2.msra.mxu0 0.0
    %4064 = vmatprep.subr.mxu0 0.0
    %4065 = vmatpush2.msra.mxu0 0.0
    %4066 = vmatprep.subr.mxu0 0.0
    %4067 = vmatpush2.msra.mxu0 0.0
    %4068 = vmatprep.subr.mxu0 0.0
    %4069 = vmatpush2.msra.mxu0 0.0
    %4070 = vmatprep.subr.mxu0 0.0
    %4071 = vmatpush2.msra.mxu0 0.0
    %4072 = vmatprep.subr.mxu0 0.0
    %4073 = vmatpush2.msra.mxu0 0.0
    %4074 = vmatprep.subr.mxu0 0.0
    %4075 = vmatpush2.msra.mxu0 0.0
    %4076 = vmatprep.subr.mxu0 0.0
    %4077 = vmatpush2.msra.mxu0 0.0
    %4078 = vmatprep.subr.mxu0 0.0
    %4079 = vmatpush2.msra.mxu0 0.0
    %4080 = vmatprep.subr.mxu0 0.0
    %4081 = vmatpush2.msra.mxu0 0.0
    %4082 = vmatprep.mubr.f32.mxu0 0.0
    %4083 = vmatmul.mubr.f32.gmra.mxu0 %v4013
    %v4084 = vpop.f32.mrf.mxu0
    %v4085 = vadd.f32 0.0, %v4084
    %v4086 = vpop.f32.mrf.mxu0
    %4087 = vmatprep.mubr.f32.mxu0 0.0
    %4088 = vmatmul.mubr.f32.gmra.mxu0 %v4016
    %v4089 = vpop.f32.mrf.mxu0
    %v4090 = vadd.f32 0.0, %v4089
    %v4091 = vpop.f32.mrf.mxu0
    %4092 = vdwg.mxu0
    %s4093 = scalar_lea.vmem %s4, 67
    %v4094 = vld [vmem:[%s4093] ss:$8 sm:$0xf]
    %v4096 = vlaneseq
    %v4097 = vshrl.u32 %v4096, 7
    %v4098 = vsub.s32 0, %v4097
    %v4099 = vrot.slane %v4094, %v4098
    %v4101 = vadd.f32 %v4085, %v4099
    %v4102 = vadd.f32 %v4090, %v4099
    %v4103 = vadd.f32 %v2475, %v4101
    %v4104 = vadd.f32 %v2476, %v4102
    %s4105 = scalar_lea.vmem %s4, 68
    %v4106 = vld [vmem:[%s4105] ss:$8 sm:$0xf]
    %s4107 = scalar_lea.vmem %s4, 69
    %v4108 = vld [vmem:[%s4107] ss:$8 sm:$0xf]
    %v4109 = vsel %vm589, %v4103, 0.0
    %4110 = vadd.xlane.f32.xlu0 %v4109
    %v4111 = vpop.xlane.xlu0 %4110
    %v4112 = vsel %vm589, %v4104, 0.0
    %4113 = vadd.xlane.f32.xlu0 %v4112
    %v4114 = vpop.xlane.xlu0 %4113
    %v4115 = vmul.f32 %v4111, %v596
    %v4116 = vmul.f32 %v4114, %v596
    %v4117 = vsub.f32 %v4103, %v4115
    %v4118 = vsub.f32 %v4104, %v4116
    %v4119 = vmul.f32 %v4117, %v4117
    %v4120 = vmul.f32 %v4118, %v4118
    %v4121 = vsel %vm589, %v4119, 0.0
    %4122 = vadd.xlane.f32.xlu0 %v4121
    %v4123 = vpop.xlane.xlu0 %4122
    %v4124 = vsel %vm589, %v4120, 0.0
    %4125 = vadd.xlane.f32.xlu0 %v4124
    %v4126 = vpop.xlane.xlu0 %4125
    %v4127 = vmul.f32 %v4123, %v596
    %v4128 = vmul.f32 %v4126, %v596
    %v4129 = vadd.f32 %v4127, 1e-12
    %v4130 = vadd.f32 %v4128, 1e-12
    %v4131 = vrsqrt.pop %v4129
    %v4132 = vrsqrt.pop %v4130
    %v4133 = vmul.f32 %v4117, %v4131
    %v4134 = vmul.f32 %v4118, %v4132
    %v4136 = vlaneseq
    %v4137 = vshrl.u32 %v4136, 7
    %v4138 = vsub.s32 0, %v4137
    %v4139 = vrot.slane %v4106, %v4138
    %v4141 = vmul.f32 %v4133, %v4139
    %v4142 = vmul.f32 %v4134, %v4139
    %v4144 = vlaneseq
    %v4145 = vshrl.u32 %v4144, 7
    %v4146 = vsub.s32 0, %v4145
    %v4147 = vrot.slane %v4108, %v4146
    %v4149 = vadd.f32 %v4141, %v4147
    %v4150 = vadd.f32 %v4142, %v4147
    %v4151 = vpack.c.bf16 %v4150, %v4149
    %v4152 = vld [vmem:[%s2 + $0x1e0] sm:$0xf]
    %v4153 = vld [vmem:[%s2 + $0x1e4] sm:$0xf]
    %v4154 = vld [vmem:[%s2 + $0x1e8] sm:$0xf]
    %v4155 = vld [vmem:[%s2 + $0x1ec] sm:$0xf]
    %v4156 = vld [vmem:[%s2 + $0x1f0] sm:$0xf]
    %v4157 = vld [vmem:[%s2 + $0x1f4] sm:$0xf]
    %v4158 = vld [vmem:[%s2 + $0x1f8] sm:$0xf]
    %v4159 = vld [vmem:[%s2 + $0x1fc] sm:$0xf]
    %s4160 = scalar_lea.vmem %s4, 70
    %v4161 = vld [vmem:[%s4160] ss:$8 sm:$0xf]
    %v4163 = vlaneseq
    %v4164 = vshrl.u32 %v4163, 7
    %v4165 = vsub.s32 0, %v4164
    %v4166 = vrot.slane %v4161, %v4165
    %v4176 = vunpack.c.l.b16 %v4152
    %v4177 = vunpack.c.l.b16 %v4153
    %v4178 = vunpack.c.l.b16 %v4154
    %v4179 = vunpack.c.l.b16 %v4155
    %v4180 = vunpack.c.l.b16 %v4156
    %v4181 = vunpack.c.l.b16 %v4157
    %v4182 = vunpack.c.l.b16 %v4158
    %v4183 = vunpack.c.l.b16 %v4159
    %v4184 = vpack.c.b16 %v4177, %v4176
    %v4185 = vpack.c.b16 %v4179, %v4178
    %v4186 = vpack.c.b16 %v4181, %v4180
    %v4187 = vpack.c.b16 %v4183, %v4182
    %v4193 = vsel %vm589, %v4151, 0
    %4195 = vmatprep.subr.bf16.mxu0 0
    %4196 = vmatpush1.bf16.msra.mxu0 0
    %4197 = vmatprep.subr.bf16.mxu0 0
    %4198 = vmatpush1.bf16.msra.mxu0 0
    %4199 = vmatprep.subr.bf16.mxu0 0
    %4200 = vmatpush1.bf16.msra.mxu0 0
    %4201 = vmatprep.subr.bf16.mxu0 0
    %4202 = vmatpush1.bf16.msra.mxu0 0
    %4203 = vmatprep.subr.bf16.mxu0 0
    %4204 = vmatpush1.bf16.msra.mxu0 %v4187
    %4205 = vmatprep.subr.bf16.mxu0 0
    %4206 = vmatpush1.bf16.msra.mxu0 %v4186
    %4207 = vmatprep.subr.bf16.mxu0 0
    %4208 = vmatpush1.bf16.msra.mxu0 %v4185
    %4209 = vmatprep.subr.bf16.mxu0 0
    %4210 = vmatpush1.bf16.msra.mxu0 %v4184
    %4211 = vmatprep.subr.bf16.mxu0 0
    %4212 = vmatpush2.bf16.msra.mxu0 0
    %4213 = vmatprep.subr.bf16.mxu0 0
    %4214 = vmatpush2.bf16.msra.mxu0 0
    %4215 = vmatprep.subr.bf16.mxu0 0
    %4216 = vmatpush2.bf16.msra.mxu0 0
    %4217 = vmatprep.subr.bf16.mxu0 0
    %4218 = vmatpush2.bf16.msra.mxu0 0
    %4219 = vmatprep.subr.bf16.mxu0 0
    %4220 = vmatpush2.bf16.msra.mxu0 0
    %4221 = vmatprep.subr.bf16.mxu0 0
    %4222 = vmatpush2.bf16.msra.mxu0 0
    %4223 = vmatprep.subr.bf16.mxu0 0
    %4224 = vmatpush2.bf16.msra.mxu0 0
    %4225 = vmatprep.subr.bf16.mxu0 0
    %4226 = vmatpush2.bf16.msra.mxu0 0
    %4227 = vmatprep.mubr.bf16.mxu0 0
    %4228 = vmatmul.mubr.bf16.gmra.mxu0 %v4193
    %v4229 = vpop.f32.mrf.mxu0
    %v4230 = vadd.f32 %v4166, %v4229
    %v4231 = vpop.f32.mrf.mxu0
    %v4232 = vpop.f32.mrf.mxu0
    %v4233 = vadd.f32 %v4166, %v4232
    %v4234 = vpop.f32.mrf.mxu0
    %4235 = vdwg.mxu0
    %v4236 = vmul.f32 %v4230, 0.5
    %v4237 = vmul.f32 %v4233, 0.5
    %v4238 = vmul.f32 %v4230, 0.70710677
    %v4239 = vmul.f32 %v4233, 0.70710677
    %v4240 = verf.f32.pop %v4238
    %v4241 = verf.f32.pop %v4239
    %v4242 = vadd.f32 %v4240, 1.0
    %v4243 = vadd.f32 %v4241, 1.0
    %v4244 = vmul.f32 %v4236, %v4242
    %v4245 = vmul.f32 %v4237, %v4243
    %v4246 = vpack.c.bf16 %v4245, %v4244
    %v4247 = vld [vmem:[%s2 + $0x200] sm:$0xf]
    %v4248 = vld [vmem:[%s2 + $0x204] sm:$0xf]
    %v4249 = vld [vmem:[%s2 + $0x208] sm:$0xf]
    %v4250 = vld [vmem:[%s2 + $0x20c] sm:$0xf]
    %v4251 = vld [vmem:[%s2 + $0x210] sm:$0xf]
    %v4252 = vld [vmem:[%s2 + $0x214] sm:$0xf]
    %v4253 = vld [vmem:[%s2 + $0x218] sm:$0xf]
    %v4254 = vld [vmem:[%s2 + $0x21c] sm:$0xf]
    %v4255 = vld [vmem:[%s2 + $0x220] sm:$0xf]
    %v4256 = vld [vmem:[%s2 + $0x224] sm:$0xf]
    %v4257 = vld [vmem:[%s2 + $0x228] sm:$0xf]
    %v4258 = vld [vmem:[%s2 + $0x22c] sm:$0xf]
    %v4259 = vld [vmem:[%s2 + $0x230] sm:$0xf]
    %v4260 = vld [vmem:[%s2 + $0x234] sm:$0xf]
    %v4261 = vld [vmem:[%s2 + $0x238] sm:$0xf]
    %v4262 = vld [vmem:[%s2 + $0x23c] sm:$0xf]
    %v4279 = vunpack.c.l.b16 %v4247
    %v4280 = vunpack.c.l.b16 %v4248
    %v4281 = vunpack.c.l.b16 %v4249
    %v4282 = vunpack.c.l.b16 %v4250
    %v4283 = vunpack.c.l.b16 %v4251
    %v4284 = vunpack.c.l.b16 %v4252
    %v4285 = vunpack.c.l.b16 %v4253
    %v4286 = vunpack.c.l.b16 %v4254
    %v4287 = vunpack.c.l.b16 %v4255
    %v4288 = vunpack.c.l.b16 %v4256
    %v4289 = vunpack.c.l.b16 %v4257
    %v4290 = vunpack.c.l.b16 %v4258
    %v4291 = vunpack.c.l.b16 %v4259
    %v4292 = vunpack.c.l.b16 %v4260
    %v4293 = vunpack.c.l.b16 %v4261
    %v4294 = vunpack.c.l.b16 %v4262
    %v4295 = vpack.c.b16 %v4280, %v4279
    %v4296 = vpack.c.b16 %v4282, %v4281
    %v4297 = vpack.c.b16 %v4284, %v4283
    %v4298 = vpack.c.b16 %v4286, %v4285
    %v4299 = vpack.c.b16 %v4288, %v4287
    %v4300 = vpack.c.b16 %v4290, %v4289
    %v4301 = vpack.c.b16 %v4292, %v4291
    %v4302 = vpack.c.b16 %v4294, %v4293
    %4311 = vmatprep.subr.bf16.mxu0 0
    %4312 = vmatpush1.bf16.msra.mxu0 %v4302
    %4313 = vmatprep.subr.bf16.mxu0 0
    %4314 = vmatpush1.bf16.msra.mxu0 %v4301
    %4315 = vmatprep.subr.bf16.mxu0 0
    %4316 = vmatpush1.bf16.msra.mxu0 %v4300
    %4317 = vmatprep.subr.bf16.mxu0 0
    %4318 = vmatpush1.bf16.msra.mxu0 %v4299
    %4319 = vmatprep.subr.bf16.mxu0 0
    %4320 = vmatpush1.bf16.msra.mxu0 %v4298
    %4321 = vmatprep.subr.bf16.mxu0 0
    %4322 = vmatpush1.bf16.msra.mxu0 %v4297
    %4323 = vmatprep.subr.bf16.mxu0 0
    %4324 = vmatpush1.bf16.msra.mxu0 %v4296
    %4325 = vmatprep.subr.bf16.mxu0 0
    %4326 = vmatpush1.bf16.msra.mxu0 %v4295
    %4327 = vmatprep.subr.bf16.mxu0 0
    %4328 = vmatpush2.bf16.msra.mxu0 0
    %4329 = vmatprep.subr.bf16.mxu0 0
    %4330 = vmatpush2.bf16.msra.mxu0 0
    %4331 = vmatprep.subr.bf16.mxu0 0
    %4332 = vmatpush2.bf16.msra.mxu0 0
    %4333 = vmatprep.subr.bf16.mxu0 0
    %4334 = vmatpush2.bf16.msra.mxu0 0
    %4335 = vmatprep.subr.bf16.mxu0 0
    %4336 = vmatpush2.bf16.msra.mxu0 0
    %4337 = vmatprep.subr.bf16.mxu0 0
    %4338 = vmatpush2.bf16.msra.mxu0 0
    %4339 = vmatprep.subr.bf16.mxu0 0
    %4340 = vmatpush2.bf16.msra.mxu0 0
    %4341 = vmatprep.subr.bf16.mxu0 0
    %4342 = vmatpush2.bf16.msra.mxu0 0
    %4343 = vmatprep.mubr.bf16.mxu0 0
    %4344 = vmatmul.mubr.bf16.gmra.mxu0 %v4246
    %v4345 = vpop.f32.mrf.mxu0
    %v4346 = vadd.f32 0.0, %v4345
    %v4347 = vpop.f32.mrf.mxu0
    %v4348 = vpop.f32.mrf.mxu0
    %v4349 = vadd.f32 0.0, %v4348
    %v4350 = vpop.f32.mrf.mxu0
    %4351 = vdwg.mxu0
    %s4352 = scalar_lea.vmem %s4, 71
    %v4353 = vld [vmem:[%s4352] ss:$8 sm:$0xf]
    %v4355 = vlaneseq
    %v4356 = vshrl.u32 %v4355, 7
    %v4357 = vsub.s32 0, %v4356
    %v4358 = vrot.slane %v4353, %v4357
    %v4360 = vadd.f32 %v4346, %v4358
    %v4361 = vadd.f32 %v4349, %v4358
    %v4362 = vadd.f32 %v4103, %v4360
    %v4363 = vadd.f32 %v4104, %v4361
    %s4364 = scalar_lea.vmem %s4, 96
    %v4365 = vld [vmem:[%s4364] ss:$8 sm:$0xf]
    %s4366 = scalar_lea.vmem %s4, 97
    %v4367 = vld [vmem:[%s4366] ss:$8 sm:$0xf]
    %v4370 = vrot.slane %v4363, 7
    %vm4371 = vcmask 1041409
    %v4372 = vsel %vm4371, %v4370, %v4362
    %vm4374 = vcmask 517120
    %v4375 = vsel %vm4374, %v4372, 0.0
    %4376 = vadd.xlane.f32.xlu0 %v4375
    %v4377 = vpop.xlane.xlu0 %4376
    %v4378 = vmul.f32 %v4377, %v596
    %v4380 = vrot.slane %v4378, 1
    %v4383 = vsub.f32 %v4362, %v4378
    %v4384 = vsub.f32 %v4363, %v4380
    %v4385 = vmul.f32 %v4383, %v4383
    %v4386 = vmul.f32 %v4384, %v4384
    %v4389 = vrot.slane %v4386, 7
    %v4390 = vsel %vm4371, %v4389, %v4385
    %v4392 = vsel %vm4374, %v4390, 0.0
    %4393 = vadd.xlane.f32.xlu0 %v4392
    %v4394 = vpop.xlane.xlu0 %4393
    %v4395 = vmul.f32 %v4394, %v596
    %v4396 = vadd.f32 %v4395, 1e-12
    %v4397 = vrsqrt.pop %v4396
    %v4399 = vrot.slane %v4397, 1
    %v4402 = vmul.f32 %v4383, %v4397
    %v4403 = vmul.f32 %v4384, %v4399
    %v4405 = vlaneseq
    %v4406 = vshrl.u32 %v4405, 7
    %v4407 = vsub.s32 0, %v4406
    %v4408 = vrot.slane %v4365, %v4407
    %v4410 = vmul.f32 %v4402, %v4408
    %v4411 = vmul.f32 %v4403, %v4408
    %v4413 = vlaneseq
    %v4414 = vshrl.u32 %v4413, 7
    %v4415 = vsub.s32 0, %v4414
    %v4416 = vrot.slane %v4367, %v4415
    %v4418 = vadd.f32 %v4410, %v4416
    %v4419 = vadd.f32 %v4411, %v4416
    %v4420 = vpack.c.bf16 %v4418, %v4418
    %v4421 = vpack.c.bf16 %v4419, %v4419
    %v4422 = vld [vmem:[%s3] sm:$0xff]
    %v4423 = vld [vmem:[%s3 + $0x8] sm:$0xff]
    %v4424 = vld [vmem:[%s3 + $0x10] sm:$0xff]
    %v4425 = vld [vmem:[%s3 + $0x18] sm:$0xff]
    %v4426 = vld [vmem:[%s3 + $0x20] sm:$0xff]
    %v4427 = vld [vmem:[%s3 + $0x28] sm:$0xff]
    %v4428 = vld [vmem:[%s3 + $0x30] sm:$0xff]
    %v4429 = vld [vmem:[%s3 + $0x38] sm:$0xff]
    %v4430 = vld [vmem:[%s3 + $0x40] sm:$0xff]
    %v4431 = vld [vmem:[%s3 + $0x48] sm:$0xff]
    %v4432 = vld [vmem:[%s3 + $0x50] sm:$0xff]
    %v4433 = vld [vmem:[%s3 + $0x58] sm:$0xff]
    %v4434 = vld [vmem:[%s3 + $0x60] sm:$0xff]
    %v4435 = vld [vmem:[%s3 + $0x68] sm:$0xff]
    %v4436 = vld [vmem:[%s3 + $0x70] sm:$0xff]
    %v4437 = vld [vmem:[%s3 + $0x78] sm:$0xff]
    %s4438 = scalar_lea.vmem %s4, 98
    %v4439 = vld [vmem:[%s4438] ss:$8 sm:$0xf]
    %v4441 = vlaneseq
    %v4442 = vshrl.u32 %v4441, 7
    %v4443 = vsub.s32 0, %v4442
    %v4444 = vrot.slane %v4439, %v4443
    %v4445 = vlaneseq
    %v4446 = vshrl.u32 %v4445, 7
    %v4447 = vsub.s32 1, %v4446
    %v4448 = vrot.slane %v4439, %v4447
    %v4449 = vlaneseq
    %v4450 = vshrl.u32 %v4449, 7
    %v4451 = vsub.s32 2, %v4450
    %v4452 = vrot.slane %v4439, %v4451
    %v4453 = vlaneseq
    %v4454 = vshrl.u32 %v4453, 7
    %v4455 = vsub.s32 3, %v4454
    %v4456 = vrot.slane %v4439, %v4455
    %v4463 = vunpack.c.l.b16 %v4420
    %v4464 = vunpack.c.l.b16 %v4421
    %v4465 = vrot.slane %v4464, 7
    %v4466 = vsel %vm4371, %v4465, %v4463
    %v4467 = vpack.c.b16 %v4466, %v4466
    %v4484 = vunpack.c.l.b16 %v4422
    %v4485 = vunpack.c.h.b16 %v4422
    %v4486 = vunpack.c.l.b16 %v4423
    %v4487 = vunpack.c.h.b16 %v4423
    %v4488 = vunpack.c.l.b16 %v4424
    %v4489 = vunpack.c.h.b16 %v4424
    %v4490 = vunpack.c.l.b16 %v4425
    %v4491 = vunpack.c.h.b16 %v4425
    %v4492 = vunpack.c.l.b16 %v4426
    %v4493 = vunpack.c.h.b16 %v4426
    %v4494 = vunpack.c.l.b16 %v4427
    %v4495 = vunpack.c.h.b16 %v4427
    %v4496 = vunpack.c.l.b16 %v4428
    %v4497 = vunpack.c.h.b16 %v4428
    %v4498 = vunpack.c.l.b16 %v4429
    %v4499 = vunpack.c.h.b16 %v4429
    %v4500 = vunpack.c.l.b16 %v4430
    %v4501 = vunpack.c.h.b16 %v4430
    %v4502 = vunpack.c.l.b16 %v4431
    %v4503 = vunpack.c.h.b16 %v4431
    %v4504 = vunpack.c.l.b16 %v4432
    %v4505 = vunpack.c.h.b16 %v4432
    %v4506 = vunpack.c.l.b16 %v4433
    %v4507 = vunpack.c.h.b16 %v4433
    %v4508 = vunpack.c.l.b16 %v4434
    %v4509 = vunpack.c.h.b16 %v4434
    %v4510 = vunpack.c.l.b16 %v4435
    %v4511 = vunpack.c.h.b16 %v4435
    %v4512 = vunpack.c.l.b16 %v4436
    %v4513 = vunpack.c.h.b16 %v4436
    %v4514 = vunpack.c.l.b16 %v4437
    %v4515 = vunpack.c.h.b16 %v4437
    %v4516 = vpack.c.b16 %v4488, %v4484
    %v4517 = vpack.c.b16 %v4489, %v4485
    %v4518 = vpack.c.b16 %v4490, %v4486
    %v4519 = vpack.c.b16 %v4491, %v4487
    %v4520 = vpack.c.b16 %v4496, %v4492
    %v4521 = vpack.c.b16 %v4497, %v4493
    %v4522 = vpack.c.b16 %v4498, %v4494
    %v4523 = vpack.c.b16 %v4499, %v4495
    %v4524 = vpack.c.b16 %v4504, %v4500
    %v4525 = vpack.c.b16 %v4505, %v4501
    %v4526 = vpack.c.b16 %v4506, %v4502
    %v4527 = vpack.c.b16 %v4507, %v4503
    %v4528 = vpack.c.b16 %v4512, %v4508
    %v4529 = vpack.c.b16 %v4513, %v4509
    %v4530 = vpack.c.b16 %v4514, %v4510
    %v4531 = vpack.c.b16 %v4515, %v4511
    %v4549 = vsel %vm589, %v4467, 0
    %4551 = vmatprep.subr.bf16.mxu0 0
    %4552 = vmatpush1.bf16.msra.mxu0 0
    %4553 = vmatprep.subr.bf16.mxu0 0
    %4554 = vmatpush1.bf16.msra.mxu0 0
    %4555 = vmatprep.subr.bf16.mxu0 0
    %4556 = vmatpush1.bf16.msra.mxu0 0
    %4557 = vmatprep.subr.bf16.mxu0 0
    %4558 = vmatpush1.bf16.msra.mxu0 0
    %4559 = vmatprep.subr.bf16.mxu0 %v4529
    %4560 = vmatpush1.bf16.msra.mxu0 %v4528
    %4561 = vmatprep.subr.bf16.mxu0 %v4525
    %4562 = vmatpush1.bf16.msra.mxu0 %v4524
    %4563 = vmatprep.subr.bf16.mxu0 %v4521
    %4564 = vmatpush1.bf16.msra.mxu0 %v4520
    %4565 = vmatprep.subr.bf16.mxu0 %v4517
    %4566 = vmatpush1.bf16.msra.mxu0 %v4516
    %4567 = vmatprep.subr.bf16.mxu0 0
    %4568 = vmatpush2.bf16.msra.mxu0 0
    %4569 = vmatprep.subr.bf16.mxu0 0
    %4570 = vmatpush2.bf16.msra.mxu0 0
    %4571 = vmatprep.subr.bf16.mxu0 0
    %4572 = vmatpush2.bf16.msra.mxu0 0
    %4573 = vmatprep.subr.bf16.mxu0 0
    %4574 = vmatpush2.bf16.msra.mxu0 0
    %4575 = vmatprep.subr.bf16.mxu0 0
    %4576 = vmatpush2.bf16.msra.mxu0 0
    %4577 = vmatprep.subr.bf16.mxu0 0
    %4578 = vmatpush2.bf16.msra.mxu0 0
    %4579 = vmatprep.subr.bf16.mxu0 0
    %4580 = vmatpush2.bf16.msra.mxu0 0
    %4581 = vmatprep.subr.bf16.mxu0 0
    %4582 = vmatpush2.bf16.msra.mxu0 0
    %4583 = vmatprep.mubr.bf16.mxu0 0
    %4584 = vmatmul.mubr.bf16.gmra.mxu0 %v4549
    %v4585 = vpop.f32.mrf.mxu0
    %v4586 = vadd.f32 %v4444, %v4585
    %v4587 = vpop.f32.mrf.mxu0
    %v4588 = vadd.f32 %v4448, %v4587
    %v4589 = vpop.f32.mrf.mxu0
    %v4590 = vpop.f32.mrf.mxu0
    %4591 = vdwg.mxu0
    %4592 = vmatprep.subr.bf16.mxu0 0
    %4593 = vmatpush1.bf16.msra.mxu0 0
    %4594 = vmatprep.subr.bf16.mxu0 0
    %4595 = vmatpush1.bf16.msra.mxu0 0
    %4596 = vmatprep.subr.bf16.mxu0 0
    %4597 = vmatpush1.bf16.msra.mxu0 0
    %4598 = vmatprep.subr.bf16.mxu0 0
    %4599 = vmatpush1.bf16.msra.mxu0 0
    %4600 = vmatprep.subr.bf16.mxu0 %v4531
    %4601 = vmatpush1.bf16.msra.mxu0 %v4530
    %4602 = vmatprep.subr.bf16.mxu0 %v4527
    %4603 = vmatpush1.bf16.msra.mxu0 %v4526
    %4604 = vmatprep.subr.bf16.mxu0 %v4523
    %4605 = vmatpush1.bf16.msra.mxu0 %v4522
    %4606 = vmatprep.subr.bf16.mxu0 %v4519
    %4607 = vmatpush1.bf16.msra.mxu0 %v4518
    %4608 = vmatprep.subr.bf16.mxu0 0
    %4609 = vmatpush2.bf16.msra.mxu0 0
    %4610 = vmatprep.subr.bf16.mxu0 0
    %4611 = vmatpush2.bf16.msra.mxu0 0
    %4612 = vmatprep.subr.bf16.mxu0 0
    %4613 = vmatpush2.bf16.msra.mxu0 0
    %4614 = vmatprep.subr.bf16.mxu0 0
    %4615 = vmatpush2.bf16.msra.mxu0 0
    %4616 = vmatprep.subr.bf16.mxu0 0
    %4617 = vmatpush2.bf16.msra.mxu0 0
    %4618 = vmatprep.subr.bf16.mxu0 0
    %4619 = vmatpush2.bf16.msra.mxu0 0
    %4620 = vmatprep.subr.bf16.mxu0 0
    %4621 = vmatpush2.bf16.msra.mxu0 0
    %4622 = vmatprep.subr.bf16.mxu0 0
    %4623 = vmatpush2.bf16.msra.mxu0 0
    %4624 = vmatprep.mubr.bf16.mxu0 0
    %4625 = vmatmul.mubr.bf16.gmra.mxu0 %v4549
    %v4626 = vpop.f32.mrf.mxu0
    %v4627 = vadd.f32 %v4452, %v4626
    %v4628 = vpop.f32.mrf.mxu0
    %v4629 = vadd.f32 %v4456, %v4628
    %v4630 = vpop.f32.mrf.mxu0
    %v4631 = vpop.f32.mrf.mxu0
    %4632 = vdwg.mxu0
    %v4633 = vmax.f32 %v4586, 0.0
    %v4634 = vmax.f32 %v4588, 0.0
    %v4635 = vmax.f32 %v4627, 0.0
    %v4636 = vmax.f32 %v4629, 0.0
    %v4637 = vpack.c.bf16 %v4633, %v4633
    %v4638 = vpack.c.bf16 %v4634, %v4634
    %v4639 = vpack.c.bf16 %v4635, %v4635
    %v4640 = vpack.c.bf16 %v4636, %v4636
    %v4641 = vld [vmem:[%s2 + $0x240] sm:$0xf]
    %v4642 = vld [vmem:[%s2 + $0x244] sm:$0xf]
    %v4643 = vld [vmem:[%s2 + $0x248] sm:$0xf]
    %v4644 = vld [vmem:[%s2 + $0x24c] sm:$0xf]
    %v4645 = vld [vmem:[%s2 + $0x250] sm:$0xf]
    %v4646 = vld [vmem:[%s2 + $0x254] sm:$0xf]
    %v4647 = vld [vmem:[%s2 + $0x258] sm:$0xf]
    %v4648 = vld [vmem:[%s2 + $0x25c] sm:$0xf]
    %v4649 = vld [vmem:[%s2 + $0x260] sm:$0xf]
    %v4650 = vld [vmem:[%s2 + $0x264] sm:$0xf]
    %v4651 = vld [vmem:[%s2 + $0x268] sm:$0xf]
    %v4652 = vld [vmem:[%s2 + $0x26c] sm:$0xf]
    %v4653 = vld [vmem:[%s2 + $0x270] sm:$0xf]
    %v4654 = vld [vmem:[%s2 + $0x274] sm:$0xf]
    %v4655 = vld [vmem:[%s2 + $0x278] sm:$0xf]
    %v4656 = vld [vmem:[%s2 + $0x27c] sm:$0xf]
    %v4657 = vld [vmem:[%s2 + $0x280] sm:$0xf]
    %v4658 = vld [vmem:[%s2 + $0x284] sm:$0xf]
    %v4659 = vld [vmem:[%s2 + $0x288] sm:$0xf]
    %v4660 = vld [vmem:[%s2 + $0x28c] sm:$0xf]
    %v4661 = vld [vmem:[%s2 + $0x290] sm:$0xf]
    %v4662 = vld [vmem:[%s2 + $0x294] sm:$0xf]
    %v4663 = vld [vmem:[%s2 + $0x298] sm:$0xf]
    %v4664 = vld [vmem:[%s2 + $0x29c] sm:$0xf]
    %v4665 = vld [vmem:[%s2 + $0x2a0] sm:$0xf]
    %v4666 = vld [vmem:[%s2 + $0x2a4] sm:$0xf]
    %v4667 = vld [vmem:[%s2 + $0x2a8] sm:$0xf]
    %v4668 = vld [vmem:[%s2 + $0x2ac] sm:$0xf]
    %v4669 = vld [vmem:[%s2 + $0x2b0] sm:$0xf]
    %v4670 = vld [vmem:[%s2 + $0x2b4] sm:$0xf]
    %v4671 = vld [vmem:[%s2 + $0x2b8] sm:$0xf]
    %v4672 = vld [vmem:[%s2 + $0x2bc] sm:$0xf]
    %v4673 = vld [vmem:[%s2 + $0x2c0] sm:$0xf]
    %v4674 = vld [vmem:[%s2 + $0x2c4] sm:$0xf]
    %v4675 = vld [vmem:[%s2 + $0x2c8] sm:$0xf]
    %v4676 = vld [vmem:[%s2 + $0x2cc] sm:$0xf]
    %v4677 = vld [vmem:[%s2 + $0x2d0] sm:$0xf]
    %v4678 = vld [vmem:[%s2 + $0x2d4] sm:$0xf]
    %v4679 = vld [vmem:[%s2 + $0x2d8] sm:$0xf]
    %v4680 = vld [vmem:[%s2 + $0x2dc] sm:$0xf]
    %v4681 = vld [vmem:[%s2 + $0x2e0] sm:$0xf]
    %v4682 = vld [vmem:[%s2 + $0x2e4] sm:$0xf]
    %v4683 = vld [vmem:[%s2 + $0x2e8] sm:$0xf]
    %v4684 = vld [vmem:[%s2 + $0x2ec] sm:$0xf]
    %v4685 = vld [vmem:[%s2 + $0x2f0] sm:$0xf]
    %v4686 = vld [vmem:[%s2 + $0x2f4] sm:$0xf]
    %v4687 = vld [vmem:[%s2 + $0x2f8] sm:$0xf]
    %v4688 = vld [vmem:[%s2 + $0x2fc] sm:$0xf]
    %v4689 = vld [vmem:[%s2 + $0x300] sm:$0xf]
    %v4690 = vld [vmem:[%s2 + $0x304] sm:$0xf]
    %v4691 = vld [vmem:[%s2 + $0x308] sm:$0xf]
    %v4692 = vld [vmem:[%s2 + $0x30c] sm:$0xf]
    %v4693 = vld [vmem:[%s2 + $0x310] sm:$0xf]
    %v4694 = vld [vmem:[%s2 + $0x314] sm:$0xf]
    %v4695 = vld [vmem:[%s2 + $0x318] sm:$0xf]
    %v4696 = vld [vmem:[%s2 + $0x31c] sm:$0xf]
    %v4697 = vld [vmem:[%s2 + $0x320] sm:$0xf]
    %v4698 = vld [vmem:[%s2 + $0x324] sm:$0xf]
    %v4699 = vld [vmem:[%s2 + $0x328] sm:$0xf]
    %v4700 = vld [vmem:[%s2 + $0x32c] sm:$0xf]
    %v4701 = vld [vmem:[%s2 + $0x330] sm:$0xf]
    %v4702 = vld [vmem:[%s2 + $0x334] sm:$0xf]
    %v4703 = vld [vmem:[%s2 + $0x338] sm:$0xf]
    %v4704 = vld [vmem:[%s2 + $0x33c] sm:$0xf]
    %s4705 = scalar_lea.vmem %s4, 99
    %v4706 = vld [vmem:[%s4705] ss:$8 sm:$0xf]
    %v4708 = vlaneseq
    %v4709 = vshrl.u32 %v4708, 7
    %v4710 = vsub.s32 0, %v4709
    %v4711 = vrot.slane %v4706, %v4710
    %v4777 = vunpack.c.l.b16 %v4641
    %v4778 = vunpack.c.l.b16 %v4642
    %v4779 = vunpack.c.l.b16 %v4643
    %v4780 = vunpack.c.l.b16 %v4644
    %v4781 = vunpack.c.l.b16 %v4645
    %v4782 = vunpack.c.l.b16 %v4646
    %v4783 = vunpack.c.l.b16 %v4647
    %v4784 = vunpack.c.l.b16 %v4648
    %v4785 = vunpack.c.l.b16 %v4649
    %v4786 = vunpack.c.l.b16 %v4650
    %v4787 = vunpack.c.l.b16 %v4651
    %v4788 = vunpack.c.l.b16 %v4652
    %v4789 = vunpack.c.l.b16 %v4653
    %v4790 = vunpack.c.l.b16 %v4654
    %v4791 = vunpack.c.l.b16 %v4655
    %v4792 = vunpack.c.l.b16 %v4656
    %v4793 = vunpack.c.l.b16 %v4657
    %v4794 = vunpack.c.l.b16 %v4658
    %v4795 = vunpack.c.l.b16 %v4659
    %v4796 = vunpack.c.l.b16 %v4660
    %v4797 = vunpack.c.l.b16 %v4661
    %v4798 = vunpack.c.l.b16 %v4662
    %v4799 = vunpack.c.l.b16 %v4663
    %v4800 = vunpack.c.l.b16 %v4664
    %v4801 = vunpack.c.l.b16 %v4665
    %v4802 = vunpack.c.l.b16 %v4666
    %v4803 = vunpack.c.l.b16 %v4667
    %v4804 = vunpack.c.l.b16 %v4668
    %v4805 = vunpack.c.l.b16 %v4669
    %v4806 = vunpack.c.l.b16 %v4670
    %v4807 = vunpack.c.l.b16 %v4671
    %v4808 = vunpack.c.l.b16 %v4672
    %v4809 = vunpack.c.l.b16 %v4673
    %v4810 = vunpack.c.l.b16 %v4674
    %v4811 = vunpack.c.l.b16 %v4675
    %v4812 = vunpack.c.l.b16 %v4676
    %v4813 = vunpack.c.l.b16 %v4677
    %v4814 = vunpack.c.l.b16 %v4678
    %v4815 = vunpack.c.l.b16 %v4679
    %v4816 = vunpack.c.l.b16 %v4680
    %v4817 = vunpack.c.l.b16 %v4681
    %v4818 = vunpack.c.l.b16 %v4682
    %v4819 = vunpack.c.l.b16 %v4683
    %v4820 = vunpack.c.l.b16 %v4684
    %v4821 = vunpack.c.l.b16 %v4685
    %v4822 = vunpack.c.l.b16 %v4686
    %v4823 = vunpack.c.l.b16 %v4687
    %v4824 = vunpack.c.l.b16 %v4688
    %v4825 = vunpack.c.l.b16 %v4689
    %v4826 = vunpack.c.l.b16 %v4690
    %v4827 = vunpack.c.l.b16 %v4691
    %v4828 = vunpack.c.l.b16 %v4692
    %v4829 = vunpack.c.l.b16 %v4693
    %v4830 = vunpack.c.l.b16 %v4694
    %v4831 = vunpack.c.l.b16 %v4695
    %v4832 = vunpack.c.l.b16 %v4696
    %v4833 = vunpack.c.l.b16 %v4697
    %v4834 = vunpack.c.l.b16 %v4698
    %v4835 = vunpack.c.l.b16 %v4699
    %v4836 = vunpack.c.l.b16 %v4700
    %v4837 = vunpack.c.l.b16 %v4701
    %v4838 = vunpack.c.l.b16 %v4702
    %v4839 = vunpack.c.l.b16 %v4703
    %v4840 = vunpack.c.l.b16 %v4704
    %v4841 = vpack.c.b16 %v4778, %v4777
    %v4842 = vpack.c.b16 %v4780, %v4779
    %v4843 = vpack.c.b16 %v4782, %v4781
    %v4844 = vpack.c.b16 %v4784, %v4783
    %v4845 = vpack.c.b16 %v4786, %v4785
    %v4846 = vpack.c.b16 %v4788, %v4787
    %v4847 = vpack.c.b16 %v4790, %v4789
    %v4848 = vpack.c.b16 %v4792, %v4791
    %v4849 = vpack.c.b16 %v4794, %v4793
    %v4850 = vpack.c.b16 %v4796, %v4795
    %v4851 = vpack.c.b16 %v4798, %v4797
    %v4852 = vpack.c.b16 %v4800, %v4799
    %v4853 = vpack.c.b16 %v4802, %v4801
    %v4854 = vpack.c.b16 %v4804, %v4803
    %v4855 = vpack.c.b16 %v4806, %v4805
    %v4856 = vpack.c.b16 %v4808, %v4807
    %v4857 = vpack.c.b16 %v4810, %v4809
    %v4858 = vpack.c.b16 %v4812, %v4811
    %v4859 = vpack.c.b16 %v4814, %v4813
    %v4860 = vpack.c.b16 %v4816, %v4815
    %v4861 = vpack.c.b16 %v4818, %v4817
    %v4862 = vpack.c.b16 %v4820, %v4819
    %v4863 = vpack.c.b16 %v4822, %v4821
    %v4864 = vpack.c.b16 %v4824, %v4823
    %v4865 = vpack.c.b16 %v4826, %v4825
    %v4866 = vpack.c.b16 %v4828, %v4827
    %v4867 = vpack.c.b16 %v4830, %v4829
    %v4868 = vpack.c.b16 %v4832, %v4831
    %v4869 = vpack.c.b16 %v4834, %v4833
    %v4870 = vpack.c.b16 %v4836, %v4835
    %v4871 = vpack.c.b16 %v4838, %v4837
    %v4872 = vpack.c.b16 %v4840, %v4839
    %4905 = vmatprep.subr.bf16.mxu0 0
    %4906 = vmatpush1.bf16.msra.mxu0 %v4848
    %4907 = vmatprep.subr.bf16.mxu0 0
    %4908 = vmatpush1.bf16.msra.mxu0 %v4847
    %4909 = vmatprep.subr.bf16.mxu0 0
    %4910 = vmatpush1.bf16.msra.mxu0 %v4846
    %4911 = vmatprep.subr.bf16.mxu0 0
    %4912 = vmatpush1.bf16.msra.mxu0 %v4845
    %4913 = vmatprep.subr.bf16.mxu0 0
    %4914 = vmatpush1.bf16.msra.mxu0 %v4844
    %4915 = vmatprep.subr.bf16.mxu0 0
    %4916 = vmatpush1.bf16.msra.mxu0 %v4843
    %4917 = vmatprep.subr.bf16.mxu0 0
    %4918 = vmatpush1.bf16.msra.mxu0 %v4842
    %4919 = vmatprep.subr.bf16.mxu0 0
    %4920 = vmatpush1.bf16.msra.mxu0 %v4841
    %4921 = vmatprep.subr.bf16.mxu0 0
    %4922 = vmatpush2.bf16.msra.mxu0 %v4856
    %4923 = vmatprep.subr.bf16.mxu0 0
    %4924 = vmatpush2.bf16.msra.mxu0 %v4855
    %4925 = vmatprep.subr.bf16.mxu0 0
    %4926 = vmatpush2.bf16.msra.mxu0 %v4854
    %4927 = vmatprep.subr.bf16.mxu0 0
    %4928 = vmatpush2.bf16.msra.mxu0 %v4853
    %4929 = vmatprep.subr.bf16.mxu0 0
    %4930 = vmatpush2.bf16.msra.mxu0 %v4852
    %4931 = vmatprep.subr.bf16.mxu0 0
    %4932 = vmatpush2.bf16.msra.mxu0 %v4851
    %4933 = vmatprep.subr.bf16.mxu0 0
    %4934 = vmatpush2.bf16.msra.mxu0 %v4850
    %4935 = vmatprep.subr.bf16.mxu0 0
    %4936 = vmatpush2.bf16.msra.mxu0 %v4849
    %4937 = vmatprep.mubr.bf16.mxu0 %v4638
    %4938 = vmatmul.mubr.bf16.gmra.mxu0 %v4637
    %v4939 = vpop.f32.mrf.mxu0
    %v4940 = vadd.f32 %v4711, %v4939
    %v4941 = vpop.f32.mrf.mxu0
    %v4942 = vpop.f32.mrf.mxu0
    %v4943 = vpop.f32.mrf.mxu0
    %4944 = vdwg.mxu0
    %4945 = vmatprep.subr.bf16.mxu0 0
    %4946 = vmatpush1.bf16.msra.mxu0 %v4864
    %4947 = vmatprep.subr.bf16.mxu0 0
    %4948 = vmatpush1.bf16.msra.mxu0 %v4863
    %4949 = vmatprep.subr.bf16.mxu0 0
    %4950 = vmatpush1.bf16.msra.mxu0 %v4862
    %4951 = vmatprep.subr.bf16.mxu0 0
    %4952 = vmatpush1.bf16.msra.mxu0 %v4861
    %4953 = vmatprep.subr.bf16.mxu0 0
    %4954 = vmatpush1.bf16.msra.mxu0 %v4860
    %4955 = vmatprep.subr.bf16.mxu0 0
    %4956 = vmatpush1.bf16.msra.mxu0 %v4859
    %4957 = vmatprep.subr.bf16.mxu0 0
    %4958 = vmatpush1.bf16.msra.mxu0 %v4858
    %4959 = vmatprep.subr.bf16.mxu0 0
    %4960 = vmatpush1.bf16.msra.mxu0 %v4857
    %4961 = vmatprep.subr.bf16.mxu0 0
    %4962 = vmatpush2.bf16.msra.mxu0 %v4872
    %4963 = vmatprep.subr.bf16.mxu0 0
    %4964 = vmatpush2.bf16.msra.mxu0 %v4871
    %4965 = vmatprep.subr.bf16.mxu0 0
    %4966 = vmatpush2.bf16.msra.mxu0 %v4870
    %4967 = vmatprep.subr.bf16.mxu0 0
    %4968 = vmatpush2.bf16.msra.mxu0 %v4869
    %4969 = vmatprep.subr.bf16.mxu0 0
    %4970 = vmatpush2.bf16.msra.mxu0 %v4868
    %4971 = vmatprep.subr.bf16.mxu0 0
    %4972 = vmatpush2.bf16.msra.mxu0 %v4867
    %4973 = vmatprep.subr.bf16.mxu0 0
    %4974 = vmatpush2.bf16.msra.mxu0 %v4866
    %4975 = vmatprep.subr.bf16.mxu0 0
    %4976 = vmatpush2.bf16.msra.mxu0 %v4865
    %4977 = vmatprep.mubr.bf16.mxu0 %v4640
    %4978 = vmatmul.mubr.bf16.gmra.mxu0 %v4639
    %v4979 = vpop.f32.mrf.mxu0
    %v4980 = vadd.f32 %v4940, %v4979
    %v4981 = vpop.f32.mrf.mxu0
    %v4982 = vpop.f32.mrf.mxu0
    %v4983 = vpop.f32.mrf.mxu0
    %4984 = vdwg.mxu0
    %4985 = vst [vmem:[%s5] sm:$0x3] %v4980
    // Predicated region
    $region26: #{vit_distortion_scene_forward.1} parent=1 // pred_check
      _
    $region27: #{vit_distortion_scene_forward.1} parent=1 // pred_check_branch
      %4987 = sbr.rel (0) target = $region29
    $region28: #{vit_distortion_scene_forward.1} parent=1 // pred_region
      _
    $region29: #{vit_distortion_scene_forward.1} parent=1 // pred_fallthru
      _
    // Predicated region
    $region30: #{vit_distortion_scene_forward.1} parent=1 // pred_check
      _
    $region31: #{vit_distortion_scene_forward.1} parent=1 // pred_check_branch
      %4989 = sbr.rel (0) target = $region33
    $region32: #{vit_distortion_scene_forward.1} parent=1 // pred_region
      _
    $region33: #{vit_distortion_scene_forward.1} parent=1 // pred_fallthru
      _
    %4990 = vsyncpa [#allocation3], 1

</llo_original>
